<compile_context>
chip_gen: v7x
topology: tpu7x:2x2x1
jax: 0.10.0
libtpu: 0.0.40
codegen_flags: <defaults>
</compile_context>

<pallas_src>
import functools

import jax
import jax.numpy as jnp
from jax.experimental import pallas as pl
from jax.experimental.pallas import tpu as pltpu

EPS = 1e-5


# ----------------------------------------------------------------------------
# Parameter folding: conv bias + inference BatchNorm -> per-channel scale/shift,
# conv weight -> kernel-ready matmul operand [9*Cin, Cout] (bf16).
# ----------------------------------------------------------------------------
def _fold_conv_bn(w_pt, b_pt, gamma, beta, mean, var, compute_dtype):
    cout, cin = w_pt.shape[0], w_pt.shape[1]
    scale = gamma / jnp.sqrt(var + EPS)                        # [Cout]
    shift = beta + (b_pt - mean) * scale                       # [Cout]
    # [Cout, Cin, 3, 3] -> [3, 3, Cin, Cout] -> [9*Cin, Cout]   (kh, kw, cin) order
    w_mat = jnp.transpose(w_pt, (2, 3, 1, 0)).reshape(9 * cin, cout)
    return (w_mat.astype(compute_dtype),
            scale.reshape(1, cout).astype(jnp.float32),
            shift.reshape(1, cout).astype(jnp.float32))


# ----------------------------------------------------------------------------
# Fused DoubleConv kernel (one batch element per grid step).
# ----------------------------------------------------------------------------
def _double_conv_kernel(H, W, Cin, Cmid, Cout, compute_dtype,
                        xp_ref, w1_ref, s1_ref, b1_ref, w2_ref, s2_ref, b2_ref,
                        out_ref, h_ref):
    # ---- conv1 (3x3, pad=1) + BN1 + ReLU : one matmul with K = 9*Cin ----
    taps = [xp_ref[0, kh:kh + H, kw:kw + W, :]          # shifted [H, W, Cin] windows
            for kh in range(3) for kw in range(3)]
    xs = jnp.concatenate(taps, axis=-1).reshape(H * W, 9 * Cin)
    y = jnp.dot(xs.astype(compute_dtype), w1_ref[...],
                preferred_element_type=jnp.float32)            # [H*W, Cmid] f32
    y = jnp.maximum(y * s1_ref[...] + b1_ref[...], 0.0)

    # stash intermediate in zero-padded VMEM scratch (halo for conv2)
    h_ref[...] = jnp.zeros_like(h_ref)
    h_ref[1:1 + H, 1:1 + W, :] = y.reshape(H, W, Cmid)

    # ---- conv2 (3x3, pad=1) + BN2 + ReLU : one matmul with K = 9*Cmid ----
    taps2 = [h_ref[kh:kh + H, kw:kw + W, :]
             for kh in range(3) for kw in range(3)]
    xs2 = jnp.concatenate(taps2, axis=-1).reshape(H * W, 9 * Cmid)
    z = jnp.dot(xs2.astype(compute_dtype), w2_ref[...],
                preferred_element_type=jnp.float32)            # [H*W, Cout] f32
    z = jnp.maximum(z * s2_ref[...] + b2_ref[...], 0.0)

    # single lane-dense, full-block output store
    out_ref[0] = z.reshape(H, W, Cout).astype(out_ref.dtype)


# ----------------------------------------------------------------------------
# InConv forward (NCHW in / NCHW out)
# ----------------------------------------------------------------------------
def in_conv_forward(x_nchw, params, compute_dtype=jnp.bfloat16):
    N, Cin, H, W = x_nchw.shape
    x = jnp.transpose(x_nchw, (0, 2, 3, 1))                    # NCHW -> NHWC
    xp = jnp.pad(x, ((0, 0), (1, 1), (1, 1), (0, 0)))          # halo for conv1

    # TODO(synk): BatchNorm is evaluated in inference mode (running stats folded
    # into scale/shift); training-mode batch statistics are not implemented.
    w1, s1, b1 = _fold_conv_bn(params["w1"], params["b1"], params["bn1_g"],
                               params["bn1_b"], params["bn1_m"], params["bn1_v"],
                               compute_dtype)
    w2, s2, b2 = _fold_conv_bn(params["w2"], params["b2"], params["bn2_g"],
                               params["bn2_b"], params["bn2_m"], params["bn2_v"],
                               compute_dtype)
    Cmid, Cout = w1.shape[1], w2.shape[1]

    kernel = functools.partial(_double_conv_kernel, H, W, Cin, Cmid, Cout,
                               compute_dtype)

    out_nhwc = pl.pallas_call(
        kernel,
        out_shape=jax.ShapeDtypeStruct((N, H, W, Cout), x_nchw.dtype),
        grid=(N,),
        in_specs=[
            pl.BlockSpec((1, H + 2, W + 2, Cin), lambda n: (n, 0, 0, 0)),
            pl.BlockSpec((9 * Cin, Cmid), lambda n: (0, 0)),
            pl.BlockSpec((1, Cmid), lambda n: (0, 0)),
            pl.BlockSpec((1, Cmid), lambda n: (0, 0)),
            pl.BlockSpec((9 * Cmid, Cout), lambda n: (0, 0)),
            pl.BlockSpec((1, Cout), lambda n: (0, 0)),
            pl.BlockSpec((1, Cout), lambda n: (0, 0)),
        ],
        out_specs=pl.BlockSpec((1, H, W, Cout), lambda n: (n, 0, 0, 0)),
        scratch_shapes=[pltpu.VMEM((H + 2, W + 2, Cmid), jnp.float32)],
        compiler_params=pltpu.CompilerParams(
            dimension_semantics=("parallel",)),
    )(xp, w1, s1, b1, w2, s2, b2)

    return jnp.transpose(out_nhwc, (0, 3, 1, 2))               # NHWC -> NCHW


# ----------------------------------------------------------------------------
# Deterministic synthetic parameters (PyTorch layouts).
# ----------------------------------------------------------------------------
def make_params(key, in_ch, out_ch):
    ks = iter(jax.random.split(key, 16))

    def nrm(shape, scale=0.1):
        return jax.random.normal(next(ks), shape, jnp.float32) * scale

    return {
        "w1": nrm((out_ch, in_ch, 3, 3)),        # Conv2d weight [Cout, Cin, 3, 3]
        "b1": nrm((out_ch,)),
        "bn1_g": 1.0 + nrm((out_ch,)),
        "bn1_b": nrm((out_ch,)),
        "bn1_m": nrm((out_ch,)),
        "bn1_v": 0.5 + jnp.abs(nrm((out_ch,))),
        "w2": nrm((out_ch, out_ch, 3, 3)),
        "b2": nrm((out_ch,)),
        "bn2_g": 1.0 + nrm((out_ch,)),
        "bn2_b": nrm((out_ch,)),
        "bn2_m": nrm((out_ch,)),
        "bn2_v": 0.5 + jnp.abs(nrm((out_ch,))),
    }


if __name__ == "__main__":
    in_ch, out_ch = 4, 8
    N, H, W = 2, 16, 16

    key = jax.random.PRNGKey(0)
    kx, kp = jax.random.split(key)
    x = jax.random.normal(kx, (N, in_ch, H, W), jnp.float32)
    params = make_params(kp, in_ch, out_ch)

    out = jax.jit(in_conv_forward)(x, params)
    out = jax.block_until_ready(out)
    assert out.shape == (N, out_ch, H, W), out.shape
    assert bool(jnp.all(jnp.isfinite(out)))
    print("KERNEL_OK")
</pallas_src>

<mosaic_0001>
module attributes {stable_mosaic.version = 11 : i64} {
  func.func @_double_conv_kernel(%arg0: i32, %arg1: memref<1x18x18x4xf32, #tpu.memory_space<vmem>>, %arg2: memref<36x8xbf16, #tpu.memory_space<vmem>>, %arg3: memref<1x8xf32, #tpu.memory_space<vmem>>, %arg4: memref<1x8xf32, #tpu.memory_space<vmem>>, %arg5: memref<72x8xbf16, #tpu.memory_space<vmem>>, %arg6: memref<1x8xf32, #tpu.memory_space<vmem>>, %arg7: memref<1x8xf32, #tpu.memory_space<vmem>>, %arg8: memref<1x16x16x8xf32, #tpu.memory_space<vmem>>, %arg9: memref<18x18x8xf32, #tpu.memory_space<vmem>>) attributes {dimension_semantics = [#tpu.dimension_semantics<parallel>], iteration_bounds = array<i64: 2>, scalar_prefetch = 0 : i64, scratch_operands = 1 : i64, tpu.core_type = #tpu.core_type<tc>, window_params = [{transform_indices = @transform_0, window_bounds = array<i64: 1, 18, 18, 4>}, {pipeline_mode = #tpu.pipeline_mode<synchronous>, transform_indices = @transform_1, window_bounds = array<i64: 36, 8>}, {pipeline_mode = #tpu.pipeline_mode<synchronous>, transform_indices = @transform_2, window_bounds = array<i64: 1, 8>}, {pipeline_mode = #tpu.pipeline_mode<synchronous>, transform_indices = @transform_3, window_bounds = array<i64: 1, 8>}, {pipeline_mode = #tpu.pipeline_mode<synchronous>, transform_indices = @transform_4, window_bounds = array<i64: 72, 8>}, {pipeline_mode = #tpu.pipeline_mode<synchronous>, transform_indices = @transform_5, window_bounds = array<i64: 1, 8>}, {pipeline_mode = #tpu.pipeline_mode<synchronous>, transform_indices = @transform_6, window_bounds = array<i64: 1, 8>}, {transform_indices = @transform_7, window_bounds = array<i64: 1, 16, 16, 8>}]} {
    %c0 = arith.constant 0 : index
    %c0_0 = arith.constant 0 : index
    %c0_1 = arith.constant 0 : index
    %c0_2 = arith.constant 0 : index
    %0 = vector.load %arg1[%c0, %c0_0, %c0_1, %c0_2] : memref<1x18x18x4xf32, #tpu.memory_space<vmem>>, vector<1x16x16x4xf32>
    %1 = vector.shape_cast %0 : vector<1x16x16x4xf32> to vector<16x16x4xf32>
    %c0_3 = arith.constant 0 : index
    %c0_4 = arith.constant 0 : index
    %c1 = arith.constant 1 : index
    %c0_5 = arith.constant 0 : index
    %2 = vector.load %arg1[%c0_3, %c0_4, %c1, %c0_5] : memref<1x18x18x4xf32, #tpu.memory_space<vmem>>, vector<1x16x16x4xf32>
    %3 = vector.shape_cast %2 : vector<1x16x16x4xf32> to vector<16x16x4xf32>
    %c0_6 = arith.constant 0 : index
    %c0_7 = arith.constant 0 : index
    %c2 = arith.constant 2 : index
    %c0_8 = arith.constant 0 : index
    %4 = vector.load %arg1[%c0_6, %c0_7, %c2, %c0_8] : memref<1x18x18x4xf32, #tpu.memory_space<vmem>>, vector<1x16x16x4xf32>
    %5 = vector.shape_cast %4 : vector<1x16x16x4xf32> to vector<16x16x4xf32>
    %c0_9 = arith.constant 0 : index
    %c1_10 = arith.constant 1 : index
    %c0_11 = arith.constant 0 : index
    %c0_12 = arith.constant 0 : index
    %6 = vector.load %arg1[%c0_9, %c1_10, %c0_11, %c0_12] : memref<1x18x18x4xf32, #tpu.memory_space<vmem>>, vector<1x16x16x4xf32>
    %7 = vector.shape_cast %6 : vector<1x16x16x4xf32> to vector<16x16x4xf32>
    %c0_13 = arith.constant 0 : index
    %c1_14 = arith.constant 1 : index
    %c1_15 = arith.constant 1 : index
    %c0_16 = arith.constant 0 : index
    %8 = vector.load %arg1[%c0_13, %c1_14, %c1_15, %c0_16] : memref<1x18x18x4xf32, #tpu.memory_space<vmem>>, vector<1x16x16x4xf32>
    %9 = vector.shape_cast %8 : vector<1x16x16x4xf32> to vector<16x16x4xf32>
    %c0_17 = arith.constant 0 : index
    %c1_18 = arith.constant 1 : index
    %c2_19 = arith.constant 2 : index
    %c0_20 = arith.constant 0 : index
    %10 = vector.load %arg1[%c0_17, %c1_18, %c2_19, %c0_20] : memref<1x18x18x4xf32, #tpu.memory_space<vmem>>, vector<1x16x16x4xf32>
    %11 = vector.shape_cast %10 : vector<1x16x16x4xf32> to vector<16x16x4xf32>
    %c0_21 = arith.constant 0 : index
    %c2_22 = arith.constant 2 : index
    %c0_23 = arith.constant 0 : index
    %c0_24 = arith.constant 0 : index
    %12 = vector.load %arg1[%c0_21, %c2_22, %c0_23, %c0_24] : memref<1x18x18x4xf32, #tpu.memory_space<vmem>>, vector<1x16x16x4xf32>
    %13 = vector.shape_cast %12 : vector<1x16x16x4xf32> to vector<16x16x4xf32>
    %c0_25 = arith.constant 0 : index
    %c2_26 = arith.constant 2 : index
    %c1_27 = arith.constant 1 : index
    %c0_28 = arith.constant 0 : index
    %14 = vector.load %arg1[%c0_25, %c2_26, %c1_27, %c0_28] : memref<1x18x18x4xf32, #tpu.memory_space<vmem>>, vector<1x16x16x4xf32>
    %15 = vector.shape_cast %14 : vector<1x16x16x4xf32> to vector<16x16x4xf32>
    %c0_29 = arith.constant 0 : index
    %c2_30 = arith.constant 2 : index
    %c2_31 = arith.constant 2 : index
    %c0_32 = arith.constant 0 : index
    %16 = vector.load %arg1[%c0_29, %c2_30, %c2_31, %c0_32] : memref<1x18x18x4xf32, #tpu.memory_space<vmem>>, vector<1x16x16x4xf32>
    %17 = vector.shape_cast %16 : vector<1x16x16x4xf32> to vector<16x16x4xf32>
    %18 = tpu.concatenate %1, %3, %5, %7, %9, %11, %13, %15, %17 in 2 : vector<16x16x4xf32>, vector<16x16x4xf32>, vector<16x16x4xf32>, vector<16x16x4xf32>, vector<16x16x4xf32>, vector<16x16x4xf32>, vector<16x16x4xf32>, vector<16x16x4xf32>, vector<16x16x4xf32> -> vector<16x16x36xf32>
    %19 = vector.shape_cast %18 : vector<16x16x36xf32> to vector<256x36xf32>
    %20 = arith.truncf %19 : vector<256x36xf32> to vector<256x36xbf16>
    %c0_33 = arith.constant 0 : index
    %c0_34 = arith.constant 0 : index
    %21 = vector.load %arg2[%c0_33, %c0_34] : memref<36x8xbf16, #tpu.memory_space<vmem>>, vector<36x8xbf16>
    %cst = arith.constant dense<0.000000e+00> : vector<256x8xf32>
    %22 = tpu.matmul %20, %21, %cst {dimension_numbers = #tpu.dot_dimension_numbers<[1], [0], [0], [1], [0, 0, 1, 1], [], []>} : vector<256x36xbf16>, vector<36x8xbf16>, vector<256x8xf32> -> vector<256x8xf32>
    %c0_35 = arith.constant 0 : index
    %c0_36 = arith.constant 0 : index
    %23 = vector.load %arg3[%c0_35, %c0_36] : memref<1x8xf32, #tpu.memory_space<vmem>>, vector<1x8xf32>
    %24 = vector.broadcast %23 : vector<1x8xf32> to vector<256x8xf32>
    %25 = arith.mulf %22, %24 : vector<256x8xf32>
    %c0_37 = arith.constant 0 : index
    %c0_38 = arith.constant 0 : index
    %26 = vector.load %arg4[%c0_37, %c0_38] : memref<1x8xf32, #tpu.memory_space<vmem>>, vector<1x8xf32>
    %27 = vector.broadcast %26 : vector<1x8xf32> to vector<256x8xf32>
    %28 = arith.addf %25, %27 : vector<256x8xf32>
    %cst_39 = arith.constant 0.000000e+00 : f32
    %29 = vector.broadcast %cst_39 : f32 to vector<256x8xf32>
    %30 = arith.maximumf %28, %29 : vector<256x8xf32>
    %cst_40 = arith.constant 0.000000e+00 : f32
    %31 = vector.broadcast %cst_40 : f32 to vector<18x18x8xf32>
    %c0_41 = arith.constant 0 : index
    %c0_42 = arith.constant 0 : index
    %c0_43 = arith.constant 0 : index
    %32 = vector.load %arg9[%c0_41, %c0_42, %c0_43] : memref<18x18x8xf32, #tpu.memory_space<vmem>>, vector<18x18x8xf32>
    tpu.vector_store %arg9[%c0_41, %c0_42, %c0_43], %31 {strides = array<i32>} : memref<18x18x8xf32, #tpu.memory_space<vmem>>, vector<18x18x8xf32>,
    %33 = vector.shape_cast %30 : vector<256x8xf32> to vector<16x16x8xf32>
    %c1_44 = arith.constant 1 : index
    %c1_45 = arith.constant 1 : index
    %c0_46 = arith.constant 0 : index
    %34 = vector.load %arg9[%c1_44, %c1_45, %c0_46] : memref<18x18x8xf32, #tpu.memory_space<vmem>>, vector<16x16x8xf32>
    tpu.vector_store %arg9[%c1_44, %c1_45, %c0_46], %33 {strides = array<i32>} : memref<18x18x8xf32, #tpu.memory_space<vmem>>, vector<16x16x8xf32>,
    %c0_47 = arith.constant 0 : index
    %c0_48 = arith.constant 0 : index
    %c0_49 = arith.constant 0 : index
    %35 = vector.load %arg9[%c0_47, %c0_48, %c0_49] : memref<18x18x8xf32, #tpu.memory_space<vmem>>, vector<16x16x8xf32>
    %c0_50 = arith.constant 0 : index
    %c1_51 = arith.constant 1 : index
    %c0_52 = arith.constant 0 : index
    %36 = vector.load %arg9[%c0_50, %c1_51, %c0_52] : memref<18x18x8xf32, #tpu.memory_space<vmem>>, vector<16x16x8xf32>
    %c0_53 = arith.constant 0 : index
    %c2_54 = arith.constant 2 : index
    %c0_55 = arith.constant 0 : index
    %37 = vector.load %arg9[%c0_53, %c2_54, %c0_55] : memref<18x18x8xf32, #tpu.memory_space<vmem>>, vector<16x16x8xf32>
    %c1_56 = arith.constant 1 : index
    %c0_57 = arith.constant 0 : index
    %c0_58 = arith.constant 0 : index
    %38 = vector.load %arg9[%c1_56, %c0_57, %c0_58] : memref<18x18x8xf32, #tpu.memory_space<vmem>>, vector<16x16x8xf32>
    %c1_59 = arith.constant 1 : index
    %c1_60 = arith.constant 1 : index
    %c0_61 = arith.constant 0 : index
    %39 = vector.load %arg9[%c1_59, %c1_60, %c0_61] : memref<18x18x8xf32, #tpu.memory_space<vmem>>, vector<16x16x8xf32>
    %c1_62 = arith.constant 1 : index
    %c2_63 = arith.constant 2 : index
    %c0_64 = arith.constant 0 : index
    %40 = vector.load %arg9[%c1_62, %c2_63, %c0_64] : memref<18x18x8xf32, #tpu.memory_space<vmem>>, vector<16x16x8xf32>
    %c2_65 = arith.constant 2 : index
    %c0_66 = arith.constant 0 : index
    %c0_67 = arith.constant 0 : index
    %41 = vector.load %arg9[%c2_65, %c0_66, %c0_67] : memref<18x18x8xf32, #tpu.memory_space<vmem>>, vector<16x16x8xf32>
    %c2_68 = arith.constant 2 : index
    %c1_69 = arith.constant 1 : index
    %c0_70 = arith.constant 0 : index
    %42 = vector.load %arg9[%c2_68, %c1_69, %c0_70] : memref<18x18x8xf32, #tpu.memory_space<vmem>>, vector<16x16x8xf32>
    %c2_71 = arith.constant 2 : index
    %c2_72 = arith.constant 2 : index
    %c0_73 = arith.constant 0 : index
    %43 = vector.load %arg9[%c2_71, %c2_72, %c0_73] : memref<18x18x8xf32, #tpu.memory_space<vmem>>, vector<16x16x8xf32>
    %44 = tpu.concatenate %35, %36, %37, %38, %39, %40, %41, %42, %43 in 2 : vector<16x16x8xf32>, vector<16x16x8xf32>, vector<16x16x8xf32>, vector<16x16x8xf32>, vector<16x16x8xf32>, vector<16x16x8xf32>, vector<16x16x8xf32>, vector<16x16x8xf32>, vector<16x16x8xf32> -> vector<16x16x72xf32>
    %45 = vector.shape_cast %44 : vector<16x16x72xf32> to vector<256x72xf32>
    %46 = arith.truncf %45 : vector<256x72xf32> to vector<256x72xbf16>
    %c0_74 = arith.constant 0 : index
    %c0_75 = arith.constant 0 : index
    %47 = vector.load %arg5[%c0_74, %c0_75] : memref<72x8xbf16, #tpu.memory_space<vmem>>, vector<72x8xbf16>
    %cst_76 = arith.constant dense<0.000000e+00> : vector<256x8xf32>
    %48 = tpu.matmul %46, %47, %cst_76 {dimension_numbers = #tpu.dot_dimension_numbers<[1], [0], [0], [1], [0, 0, 1, 1], [], []>} : vector<256x72xbf16>, vector<72x8xbf16>, vector<256x8xf32> -> vector<256x8xf32>
    %c0_77 = arith.constant 0 : index
    %c0_78 = arith.constant 0 : index
    %49 = vector.load %arg6[%c0_77, %c0_78] : memref<1x8xf32, #tpu.memory_space<vmem>>, vector<1x8xf32>
    %50 = vector.broadcast %49 : vector<1x8xf32> to vector<256x8xf32>
    %51 = arith.mulf %48, %50 : vector<256x8xf32>
    %c0_79 = arith.constant 0 : index
    %c0_80 = arith.constant 0 : index
    %52 = vector.load %arg7[%c0_79, %c0_80] : memref<1x8xf32, #tpu.memory_space<vmem>>, vector<1x8xf32>
    %53 = vector.broadcast %52 : vector<1x8xf32> to vector<256x8xf32>
    %54 = arith.addf %51, %53 : vector<256x8xf32>
    %cst_81 = arith.constant 0.000000e+00 : f32
    %55 = vector.broadcast %cst_81 : f32 to vector<256x8xf32>
    %56 = arith.maximumf %54, %55 : vector<256x8xf32>
    %57 = vector.shape_cast %56 : vector<256x8xf32> to vector<16x16x8xf32>
    %c0_82 = arith.constant 0 : index
    %c0_83 = arith.constant 0 : index
    %c0_84 = arith.constant 0 : index
    %c0_85 = arith.constant 0 : index
    %58 = vector.load %arg8[%c0_82, %c0_83, %c0_84, %c0_85] : memref<1x16x16x8xf32, #tpu.memory_space<vmem>>, vector<1x16x16x8xf32>
    %59 = vector.shape_cast %58 : vector<1x16x16x8xf32> to vector<16x16x8xf32>
    %60 = vector.shape_cast %57 : vector<16x16x8xf32> to vector<1x16x16x8xf32>
    tpu.vector_store %arg8[%c0_82, %c0_83, %c0_84, %c0_85], %60 {strides = array<i32>} : memref<1x16x16x8xf32, #tpu.memory_space<vmem>>, vector<1x16x16x8xf32>,
    return
  }
  func.func @transform_0(%arg0: i32) -> (i32, i32, i32, i32) {
    %c0_i32 = arith.constant 0 : i32
    %c0_i32_0 = arith.constant 0 : i32
    %c0_i32_1 = arith.constant 0 : i32
    %c0_i32_2 = arith.constant 0 : i32
    return %arg0, %c0_i32, %c0_i32_0, %c0_i32_1 : i32, i32, i32, i32
  }
  func.func @transform_1(%arg0: i32) -> (i32, i32) {
    %c0_i32 = arith.constant 0 : i32
    %c0_i32_0 = arith.constant 0 : i32
    %c0_i32_1 = arith.constant 0 : i32
    return %c0_i32, %c0_i32_0 : i32, i32
  }
  func.func @transform_2(%arg0: i32) -> (i32, i32) {
    %c0_i32 = arith.constant 0 : i32
    %c0_i32_0 = arith.constant 0 : i32
    %c0_i32_1 = arith.constant 0 : i32
    return %c0_i32, %c0_i32_0 : i32, i32
  }
  func.func @transform_3(%arg0: i32) -> (i32, i32) {
    %c0_i32 = arith.constant 0 : i32
    %c0_i32_0 = arith.constant 0 : i32
    %c0_i32_1 = arith.constant 0 : i32
    return %c0_i32, %c0_i32_0 : i32, i32
  }
  func.func @transform_4(%arg0: i32) -> (i32, i32) {
    %c0_i32 = arith.constant 0 : i32
    %c0_i32_0 = arith.constant 0 : i32
    %c0_i32_1 = arith.constant 0 : i32
    return %c0_i32, %c0_i32_0 : i32, i32
  }
  func.func @transform_5(%arg0: i32) -> (i32, i32) {
    %c0_i32 = arith.constant 0 : i32
    %c0_i32_0 = arith.constant 0 : i32
    %c0_i32_1 = arith.constant 0 : i32
    return %c0_i32, %c0_i32_0 : i32, i32
  }
  func.func @transform_6(%arg0: i32) -> (i32, i32) {
    %c0_i32 = arith.constant 0 : i32
    %c0_i32_0 = arith.constant 0 : i32
    %c0_i32_1 = arith.constant 0 : i32
    return %c0_i32, %c0_i32_0 : i32, i32
  }
  func.func @transform_7(%arg0: i32) -> (i32, i32, i32, i32) {
    %c0_i32 = arith.constant 0 : i32
    %c0_i32_0 = arith.constant 0 : i32
    %c0_i32_1 = arith.constant 0 : i32
    %c0_i32_2 = arith.constant 0 : i32
    return %arg0, %c0_i32, %c0_i32_0, %c0_i32_1 : i32, i32, i32, i32
  }
}

</mosaic_0001>

<llo_original>
// kernel: in_conv_forward.1
$region0: #{in_conv_forward.1}
  #allocation0 [shape = 'u32[]', space=smem, size = 0x4, offset = 0x4, fixed_abs, tag = 'smem constant byte address 0x4 - core index']
  #allocation1 [shape = 'u32[144,128]{1,0:T(1,128)}', space=vmem, size = 0x12000, scoped, tag = 'internal scratch']
  #allocation2 [shape = 'f32[18,18,8]{2,1,0:T(8,128)}', space=vmem, size = 0x36000, scoped, tag = 'scratch operand']
  %s0 = inlined_call_operand.vmem [shape: f32[2,18,18,4], index: 0, kind: input, shape index: {}]
  %s1 = inlined_call_operand.vmem [shape: bf16[36,8], index: 1, kind: input, shape index: {}]
  %s2 = inlined_call_operand.vmem [shape: f32[1,8], index: 2, kind: input, shape index: {}]
  %s3 = inlined_call_operand.vmem [shape: f32[1,8], index: 3, kind: input, shape index: {}]
  %s4 = inlined_call_operand.vmem [shape: bf16[72,8], index: 4, kind: input, shape index: {}]
  %s5 = inlined_call_operand.vmem [shape: f32[1,8], index: 5, kind: input, shape index: {}]
  %s6 = inlined_call_operand.vmem [shape: f32[1,8], index: 6, kind: input, shape index: {}]
  %s7 = inlined_call_operand.vmem [shape: f32[2,16,16,8], index: 7, kind: output, shape index: {}]
  %s8 = sld [smem:[#allocation0]]
  $region61: #{in_conv_forward.1} parent=0
    _
  %s10 = ssub.s32 1, %s8
  %s11 = scalar_select 0, %s10, %s8
  loop: start=0, step=1, limit=4
  $region2: #{in_conv_forward.1} parent=0 // loop_pre_header
    _
  $region3: #{in_conv_forward.1} parent=0 // loop_header
    %s13 = sphi 0, %s17
    %p14 = scmp.ge.s32.totalorder %s13, 4
    %s23 = sphi 0, %s25
    %s26 = sphi 0, %s23
    %s27 = sphi 0, %s26
    %s43 = sphi 0, %s27
    %s47 = sphi 0, %s47
    %s49 = sphi 0, %s47
    %s50 = sphi 0, %s49
    %s64 = sphi 0, %s50
    %s68 = sphi 0, %s68
    %s70 = sphi 0, %s68
    %s71 = sphi 0, %s70
    %s85 = sphi 0, %s71
    %s89 = sphi 0, %s89
    %s91 = sphi 0, %s89
    %s92 = sphi 0, %s91
    %s106 = sphi 0, %s92
    %s110 = sphi 0, %s110
    %s112 = sphi 0, %s110
    %s113 = sphi 0, %s112
    %s127 = sphi 0, %s113
    %s131 = sphi 0, %s131
    %s133 = sphi 0, %s131
    %s134 = sphi 0, %s133
    %s148 = sphi 0, %s134
    %s152 = sphi 0, %s152
    %s154 = sphi 0, %s152
    %s155 = sphi 0, %s154
    %s169 = sphi 0, %s155
    %s175 = sphi 0, %s177
    %s178 = sphi 0, %s175
    %s179 = sphi 0, %s178
    %s195 = sphi 0, %s179
  $region4: #{in_conv_forward.1} parent=0 // loop_header_branch
    %16 = sbr.rel (%p14) target = $region8
  $region5: #{in_conv_forward.1} parent=0 // loop_body
    %s18 = ssub.s32 %s13, 1
    %s19 = ssub.s32 %s13, 2
    %s20 = sadd.s32 %s13, 1
    %s21 = ssub.s32 %s13, %s20
    %p22 = scmp.eq.s32.totalorder %s21, 0
    %s24 = sadd.s32 %s23, 1
    %s25 = scalar_select %p22, %s23, %s24
    %p28 = pneg %p22
    %p29 = scmp.eq.s32.totalorder %s13, 1
    %p30 = por %p28, %p29
    %p31 = scmp.ne.s32.totalorder %s23, %s26
    %p32 = scmp.eq.s32.totalorder %s13, 0
    %p33 = por %p31, %p32
    %p34 = scmp.ne.s32.totalorder %s23, %s26
    %p35 = scmp.eq.s32.totalorder %s18, 1
    %p36 = por %p34, %p35
    %p37 = scmp.ne.s32.totalorder %s26, %s27
    %p38 = scmp.eq.s32.totalorder %s18, 0
    %p39 = por %p37, %p38
    %p40 = scmp.ne.s32.totalorder %s26, %s27
    %p41 = scmp.eq.s32.totalorder %s19, 1
    %p42 = por %p40, %p41
    %p44 = scmp.ne.s32.totalorder %s27, %s43
    %p45 = scmp.eq.s32.totalorder %s19, 0
    %p46 = por %p44, %p45
    %s48 = sadd.s32 %s47, 1
    %p51 = scmp.eq.s32.totalorder %s13, 1
    %p52 = scmp.ne.s32.totalorder %s47, %s49
    %p53 = scmp.eq.s32.totalorder %s13, 0
    %p54 = por %p52, %p53
    %p55 = scmp.ne.s32.totalorder %s47, %s49
    %p56 = scmp.eq.s32.totalorder %s18, 1
    %p57 = por %p55, %p56
    %p58 = scmp.ne.s32.totalorder %s49, %s50
    %p59 = scmp.eq.s32.totalorder %s18, 0
    %p60 = por %p58, %p59
    %p61 = scmp.ne.s32.totalorder %s49, %s50
    %p62 = scmp.eq.s32.totalorder %s19, 1
    %p63 = por %p61, %p62
    %p65 = scmp.ne.s32.totalorder %s50, %s64
    %p66 = scmp.eq.s32.totalorder %s19, 0
    %p67 = por %p65, %p66
    %s69 = sadd.s32 %s68, 1
    %p72 = scmp.eq.s32.totalorder %s13, 1
    %p73 = scmp.ne.s32.totalorder %s68, %s70
    %p74 = scmp.eq.s32.totalorder %s13, 0
    %p75 = por %p73, %p74
    %p76 = scmp.ne.s32.totalorder %s68, %s70
    %p77 = scmp.eq.s32.totalorder %s18, 1
    %p78 = por %p76, %p77
    %p79 = scmp.ne.s32.totalorder %s70, %s71
    %p80 = scmp.eq.s32.totalorder %s18, 0
    %p81 = por %p79, %p80
    %p82 = scmp.ne.s32.totalorder %s70, %s71
    %p83 = scmp.eq.s32.totalorder %s19, 1
    %p84 = por %p82, %p83
    %p86 = scmp.ne.s32.totalorder %s71, %s85
    %p87 = scmp.eq.s32.totalorder %s19, 0
    %p88 = por %p86, %p87
    %s90 = sadd.s32 %s89, 1
    %p93 = scmp.eq.s32.totalorder %s13, 1
    %p94 = scmp.ne.s32.totalorder %s89, %s91
    %p95 = scmp.eq.s32.totalorder %s13, 0
    %p96 = por %p94, %p95
    %p97 = scmp.ne.s32.totalorder %s89, %s91
    %p98 = scmp.eq.s32.totalorder %s18, 1
    %p99 = por %p97, %p98
    %p100 = scmp.ne.s32.totalorder %s91, %s92
    %p101 = scmp.eq.s32.totalorder %s18, 0
    %p102 = por %p100, %p101
    %p103 = scmp.ne.s32.totalorder %s91, %s92
    %p104 = scmp.eq.s32.totalorder %s19, 1
    %p105 = por %p103, %p104
    %p107 = scmp.ne.s32.totalorder %s92, %s106
    %p108 = scmp.eq.s32.totalorder %s19, 0
    %p109 = por %p107, %p108
    %s111 = sadd.s32 %s110, 1
    %p114 = scmp.eq.s32.totalorder %s13, 1
    %p115 = scmp.ne.s32.totalorder %s110, %s112
    %p116 = scmp.eq.s32.totalorder %s13, 0
    %p117 = por %p115, %p116
    %p118 = scmp.ne.s32.totalorder %s110, %s112
    %p119 = scmp.eq.s32.totalorder %s18, 1
    %p120 = por %p118, %p119
    %p121 = scmp.ne.s32.totalorder %s112, %s113
    %p122 = scmp.eq.s32.totalorder %s18, 0
    %p123 = por %p121, %p122
    %p124 = scmp.ne.s32.totalorder %s112, %s113
    %p125 = scmp.eq.s32.totalorder %s19, 1
    %p126 = por %p124, %p125
    %p128 = scmp.ne.s32.totalorder %s113, %s127
    %p129 = scmp.eq.s32.totalorder %s19, 0
    %p130 = por %p128, %p129
    %s132 = sadd.s32 %s131, 1
    %p135 = scmp.eq.s32.totalorder %s13, 1
    %p136 = scmp.ne.s32.totalorder %s131, %s133
    %p137 = scmp.eq.s32.totalorder %s13, 0
    %p138 = por %p136, %p137
    %p139 = scmp.ne.s32.totalorder %s131, %s133
    %p140 = scmp.eq.s32.totalorder %s18, 1
    %p141 = por %p139, %p140
    %p142 = scmp.ne.s32.totalorder %s133, %s134
    %p143 = scmp.eq.s32.totalorder %s18, 0
    %p144 = por %p142, %p143
    %p145 = scmp.ne.s32.totalorder %s133, %s134
    %p146 = scmp.eq.s32.totalorder %s19, 1
    %p147 = por %p145, %p146
    %p149 = scmp.ne.s32.totalorder %s134, %s148
    %p150 = scmp.eq.s32.totalorder %s19, 0
    %p151 = por %p149, %p150
    %s153 = sadd.s32 %s152, 1
    %p156 = scmp.eq.s32.totalorder %s13, 1
    %p157 = scmp.ne.s32.totalorder %s152, %s154
    %p158 = scmp.eq.s32.totalorder %s13, 0
    %p159 = por %p157, %p158
    %p160 = scmp.ne.s32.totalorder %s152, %s154
    %p161 = scmp.eq.s32.totalorder %s18, 1
    %p162 = por %p160, %p161
    %p163 = scmp.ne.s32.totalorder %s154, %s155
    %p164 = scmp.eq.s32.totalorder %s18, 0
    %p165 = por %p163, %p164
    %p166 = scmp.ne.s32.totalorder %s154, %s155
    %p167 = scmp.eq.s32.totalorder %s19, 1
    %p168 = por %p166, %p167
    %p170 = scmp.ne.s32.totalorder %s155, %s169
    %p171 = scmp.eq.s32.totalorder %s19, 0
    %p172 = por %p170, %p171
    %s173 = ssub.s32 %s13, %s20
    %p174 = scmp.eq.s32.totalorder %s173, 0
    %s176 = sadd.s32 %s175, 1
    %s177 = scalar_select %p174, %s175, %s176
    %p180 = pneg %p174
    %p181 = scmp.eq.s32.totalorder %s13, 1
    %p182 = por %p180, %p181
    %p183 = scmp.ne.s32.totalorder %s175, %s178
    %p184 = scmp.eq.s32.totalorder %s13, 0
    %p185 = por %p183, %p184
    %p186 = scmp.ne.s32.totalorder %s175, %s178
    %p187 = scmp.eq.s32.totalorder %s18, 1
    %p188 = por %p186, %p187
    %p189 = scmp.ne.s32.totalorder %s178, %s179
    %p190 = scmp.eq.s32.totalorder %s18, 0
    %p191 = por %p189, %p190
    %p192 = scmp.ne.s32.totalorder %s178, %s179
    %p193 = scmp.eq.s32.totalorder %s19, 1
    %p194 = por %p192, %p193
    %p196 = scmp.ne.s32.totalorder %s179, %s195
    %p197 = scmp.eq.s32.totalorder %s19, 0
    %p198 = por %p196, %p197
    %p199 = scmp.le.s32.totalorder 1, %s13
    %p200 = scmp.lt.s32.totalorder %s13, 3
    %p201 = pnand %p199, %p200
    %p202 = pneg %p201
    // Predicated region
    $region9: #{in_conv_forward.1} parent=5 // pred_check
      _
    $region10: #{in_conv_forward.1} parent=5 // pred_check_branch
      %204 = sbr.rel (%p201) target = $region12
    $region11: #{in_conv_forward.1} parent=5 // pred_region
      %s205 = ssub.s32 %s13, 1
      // Predicated region
      $region13: #{in_conv_forward.1} parent=11 // pred_check
        %p206 = pneg %p60
      $region14: #{in_conv_forward.1} parent=11 // pred_check_branch
        %208 = sbr.rel (%p206) target = $region16
      $region15: #{in_conv_forward.1} parent=11 // pred_region
        _
      $region16: #{in_conv_forward.1} parent=11 // pred_fallthru
        _
      // Predicated region
      $region17: #{in_conv_forward.1} parent=11 // pred_check
        %p209 = pneg %p81
      $region18: #{in_conv_forward.1} parent=11 // pred_check_branch
        %211 = sbr.rel (%p209) target = $region20
      $region19: #{in_conv_forward.1} parent=11 // pred_region
        _
      $region20: #{in_conv_forward.1} parent=11 // pred_fallthru
        _
      // Predicated region
      $region21: #{in_conv_forward.1} parent=11 // pred_check
        %p212 = pneg %p102
      $region22: #{in_conv_forward.1} parent=11 // pred_check_branch
        %214 = sbr.rel (%p212) target = $region24
      $region23: #{in_conv_forward.1} parent=11 // pred_region
        _
      $region24: #{in_conv_forward.1} parent=11 // pred_fallthru
        _
      // Predicated region
      $region25: #{in_conv_forward.1} parent=11 // pred_check
        %p215 = pneg %p123
      $region26: #{in_conv_forward.1} parent=11 // pred_check_branch
        %217 = sbr.rel (%p215) target = $region28
      $region27: #{in_conv_forward.1} parent=11 // pred_region
        _
      $region28: #{in_conv_forward.1} parent=11 // pred_fallthru
        _
      // Predicated region
      $region29: #{in_conv_forward.1} parent=11 // pred_check
        %p218 = pneg %p144
      $region30: #{in_conv_forward.1} parent=11 // pred_check_branch
        %220 = sbr.rel (%p218) target = $region32
      $region31: #{in_conv_forward.1} parent=11 // pred_region
        _
      $region32: #{in_conv_forward.1} parent=11 // pred_fallthru
        _
      // Predicated region
      $region33: #{in_conv_forward.1} parent=11 // pred_check
        %p221 = pneg %p165
      $region34: #{in_conv_forward.1} parent=11 // pred_check_branch
        %223 = sbr.rel (%p221) target = $region36
      $region35: #{in_conv_forward.1} parent=11 // pred_region
        _
      $region36: #{in_conv_forward.1} parent=11 // pred_fallthru
        _
    $region12: #{in_conv_forward.1} parent=5 // pred_fallthru
      _
    %p224 = scmp.lt.s32.totalorder %s13, 2
    // Predicated region
    $region37: #{in_conv_forward.1} parent=5 // pred_check
      %p225 = pneg %p224
    $region38: #{in_conv_forward.1} parent=5 // pred_check_branch
      %227 = sbr.rel (%p225) target = $region40
    $region39: #{in_conv_forward.1} parent=5 // pred_region
      // Predicated region
      $region41: #{in_conv_forward.1} parent=39 // pred_check
        %p228 = pneg %p33
      $region42: #{in_conv_forward.1} parent=39 // pred_check_branch
        %230 = sbr.rel (%p228) target = $region44
      $region43: #{in_conv_forward.1} parent=39 // pred_region
        %p231 = scmp.lt.s32.totalorder %s13, 1
        %s232 = scalar_select %p231, %s13, 1
        %s233 = smul.addr %s232, 54
        %s234 = smul.addr %s233, 8
        %s235 = scalar_lea.vmem %s0, %s234
      $region44: #{in_conv_forward.1} parent=39 // pred_fallthru
        _
    $region40: #{in_conv_forward.1} parent=5 // pred_fallthru
      _
    %p236 = scmp.le.s32.totalorder 1, %s13
    %p237 = scmp.lt.s32.totalorder %s13, 3
    %p238 = pnand %p236, %p237
    %p239 = pneg %p238
    // Predicated region
    $region45: #{in_conv_forward.1} parent=5 // pred_check
      _
    $region46: #{in_conv_forward.1} parent=5 // pred_check_branch
      %241 = sbr.rel (%p238) target = $region48
    $region47: #{in_conv_forward.1} parent=5 // pred_region
      %s242 = ssub.s32 %s13, 1
      %p243 = scmp.lt.s32.totalorder %s18, 1
      %s244 = scalar_select %p243, %s18, 1
      %s245 = smul.addr %s244, 54
      %s246 = smul.addr %s245, 8
      %s247 = scalar_lea.vmem %s0, %s246
      %p248 = pneg %p39
      %p249 = pneg %p36
      %p250 = pneg %p60
      %p251 = pneg %p57
      %p252 = pneg %p81
      %p253 = pneg %p78
      %p254 = pneg %p102
      %p255 = pneg %p99
      %p256 = pneg %p123
      %p257 = pneg %p120
      %p258 = pneg %p144
      %p259 = pneg %p141
      %p260 = pneg %p165
      %p261 = pneg %p162
      %p262 = pneg %p191
      %p263 = pneg %p188
      %p264 = scmp.lt.s32.totalorder %s18, 1
      %s265 = scalar_select %p264, %s18, 1
      %s266 = smul.addr %s265, 32
      %s267 = smul.addr %s266, 8
      %s268 = scalar_lea.vmem %s7, %s267
      %p269 = scmp.lt.s32.totalorder %s18, 1
      %s270 = scalar_select %p269, %s18, 1
      %s271 = smul.addr %s270, 54
      %s272 = smul.addr %s271, 8
      %s273 = scalar_lea.vmem %s0, %s272
      %p274 = scmp.lt.s32.totalorder %s18, 1
      %s275 = scalar_select %p274, %s18, 1
      %s276 = smul.addr %s275, 32
      %s277 = smul.addr %s276, 8
      %s278 = scalar_lea.vmem %s7, %s277
      %v280 = vld [vmem:[%s273] sm:$0xff]
      %v281 = vld [vmem:[%s273 + $0x8] sm:$0xff]
      %v282 = vld [vmem:[%s273 + $0x18] sm:$0xff]
      %v283 = vld [vmem:[%s273 + $0x20] sm:$0xff]
      %v284 = vld [vmem:[%s273 + $0x30] sm:$0xff]
      %v285 = vld [vmem:[%s273 + $0x38] sm:$0xff]
      %v286 = vld [vmem:[%s273 + $0x48] sm:$0xff]
      %v287 = vld [vmem:[%s273 + $0x50] sm:$0xff]
      %v288 = vld [vmem:[%s273 + $0x60] sm:$0xff]
      %v289 = vld [vmem:[%s273 + $0x68] sm:$0xff]
      %v290 = vld [vmem:[%s273 + $0x78] sm:$0xff]
      %v291 = vld [vmem:[%s273 + $0x80] sm:$0xff]
      %v292 = vld [vmem:[%s273 + $0x90] sm:$0xff]
      %v293 = vld [vmem:[%s273 + $0x98] sm:$0xff]
      %v294 = vld [vmem:[%s273 + $0xa8] sm:$0xff]
      %v295 = vld [vmem:[%s273 + $0xb0] sm:$0xff]
      %v296 = vld [vmem:[%s273 + $0xc0] sm:$0xff]
      %v297 = vld [vmem:[%s273 + $0xc8] sm:$0xff]
      %v298 = vld [vmem:[%s273 + $0xd8] sm:$0xff]
      %v299 = vld [vmem:[%s273 + $0xe0] sm:$0xff]
      %v300 = vld [vmem:[%s273 + $0xf0] sm:$0xff]
      %v301 = vld [vmem:[%s273 + $0xf8] sm:$0xff]
      %v302 = vld [vmem:[%s273 + $0x108] sm:$0xff]
      %v303 = vld [vmem:[%s273 + $0x110] sm:$0xff]
      %v304 = vld [vmem:[%s273 + $0x120] sm:$0xff]
      %v305 = vld [vmem:[%s273 + $0x128] sm:$0xff]
      %v306 = vld [vmem:[%s273 + $0x138] sm:$0xff]
      %v307 = vld [vmem:[%s273 + $0x140] sm:$0xff]
      %v308 = vld [vmem:[%s273 + $0x150] sm:$0xff]
      %v309 = vld [vmem:[%s273 + $0x158] sm:$0xff]
      %v310 = vld [vmem:[%s273 + $0x168] sm:$0xff]
      %v311 = vld [vmem:[%s273 + $0x170] sm:$0xff]
      %v312 = vld [vmem:[%s273 + $0x1] sm:$0xff]
      %v313 = vld [vmem:[%s273 + $0x9] sm:$0xff]
      %v314 = vld [vmem:[%s273 + $0x19] sm:$0xff]
      %v315 = vld [vmem:[%s273 + $0x21] sm:$0xff]
      %v316 = vld [vmem:[%s273 + $0x31] sm:$0xff]
      %v317 = vld [vmem:[%s273 + $0x39] sm:$0xff]
      %v318 = vld [vmem:[%s273 + $0x49] sm:$0xff]
      %v319 = vld [vmem:[%s273 + $0x51] sm:$0xff]
      %v320 = vld [vmem:[%s273 + $0x61] sm:$0xff]
      %v321 = vld [vmem:[%s273 + $0x69] sm:$0xff]
      %v322 = vld [vmem:[%s273 + $0x79] sm:$0xff]
      %v323 = vld [vmem:[%s273 + $0x81] sm:$0xff]
      %v324 = vld [vmem:[%s273 + $0x91] sm:$0xff]
      %v325 = vld [vmem:[%s273 + $0x99] sm:$0xff]
      %v326 = vld [vmem:[%s273 + $0xa9] sm:$0xff]
      %v327 = vld [vmem:[%s273 + $0xb1] sm:$0xff]
      %v328 = vld [vmem:[%s273 + $0xc1] sm:$0xff]
      %v329 = vld [vmem:[%s273 + $0xc9] sm:$0xff]
      %v330 = vld [vmem:[%s273 + $0xd9] sm:$0xff]
      %v331 = vld [vmem:[%s273 + $0xe1] sm:$0xff]
      %v332 = vld [vmem:[%s273 + $0xf1] sm:$0xff]
      %v333 = vld [vmem:[%s273 + $0xf9] sm:$0xff]
      %v334 = vld [vmem:[%s273 + $0x109] sm:$0xff]
      %v335 = vld [vmem:[%s273 + $0x111] sm:$0xff]
      %v336 = vld [vmem:[%s273 + $0x121] sm:$0xff]
      %v337 = vld [vmem:[%s273 + $0x129] sm:$0xff]
      %v338 = vld [vmem:[%s273 + $0x139] sm:$0xff]
      %v339 = vld [vmem:[%s273 + $0x141] sm:$0xff]
      %v340 = vld [vmem:[%s273 + $0x151] sm:$0xff]
      %v341 = vld [vmem:[%s273 + $0x159] sm:$0xff]
      %v342 = vld [vmem:[%s273 + $0x169] sm:$0xff]
      %v343 = vld [vmem:[%s273 + $0x171] sm:$0xff]
      %v344 = vld [vmem:[%s273 + $0x2] sm:$0xff]
      %v345 = vld [vmem:[%s273 + $0xa] sm:$0xff]
      %v346 = vld [vmem:[%s273 + $0x1a] sm:$0xff]
      %v347 = vld [vmem:[%s273 + $0x22] sm:$0xff]
      %v348 = vld [vmem:[%s273 + $0x32] sm:$0xff]
      %v349 = vld [vmem:[%s273 + $0x3a] sm:$0xff]
      %v350 = vld [vmem:[%s273 + $0x4a] sm:$0xff]
      %v351 = vld [vmem:[%s273 + $0x52] sm:$0xff]
      %v352 = vld [vmem:[%s273 + $0x62] sm:$0xff]
      %v353 = vld [vmem:[%s273 + $0x6a] sm:$0xff]
      %v354 = vld [vmem:[%s273 + $0x7a] sm:$0xff]
      %v355 = vld [vmem:[%s273 + $0x82] sm:$0xff]
      %v356 = vld [vmem:[%s273 + $0x92] sm:$0xff]
      %v357 = vld [vmem:[%s273 + $0x9a] sm:$0xff]
      %v358 = vld [vmem:[%s273 + $0xaa] sm:$0xff]
      %v359 = vld [vmem:[%s273 + $0xb2] sm:$0xff]
      %v360 = vld [vmem:[%s273 + $0xc2] sm:$0xff]
      %v361 = vld [vmem:[%s273 + $0xca] sm:$0xff]
      %v362 = vld [vmem:[%s273 + $0xda] sm:$0xff]
      %v363 = vld [vmem:[%s273 + $0xe2] sm:$0xff]
      %v364 = vld [vmem:[%s273 + $0xf2] sm:$0xff]
      %v365 = vld [vmem:[%s273 + $0xfa] sm:$0xff]
      %v366 = vld [vmem:[%s273 + $0x10a] sm:$0xff]
      %v367 = vld [vmem:[%s273 + $0x112] sm:$0xff]
      %v368 = vld [vmem:[%s273 + $0x122] sm:$0xff]
      %v369 = vld [vmem:[%s273 + $0x12a] sm:$0xff]
      %v370 = vld [vmem:[%s273 + $0x13a] sm:$0xff]
      %v371 = vld [vmem:[%s273 + $0x142] sm:$0xff]
      %v372 = vld [vmem:[%s273 + $0x152] sm:$0xff]
      %v373 = vld [vmem:[%s273 + $0x15a] sm:$0xff]
      %v374 = vld [vmem:[%s273 + $0x16a] sm:$0xff]
      %v375 = vld [vmem:[%s273 + $0x172] sm:$0xff]
      %s376 = scalar_lea.vmem %s273, 24
      %v377 = vld [vmem:[%s376] sm:$0xff]
      %v378 = vld [vmem:[%s376 + $0x8] sm:$0xff]
      %v379 = vld [vmem:[%s376 + $0x18] sm:$0xff]
      %v380 = vld [vmem:[%s376 + $0x20] sm:$0xff]
      %v381 = vld [vmem:[%s376 + $0x30] sm:$0xff]
      %v382 = vld [vmem:[%s376 + $0x38] sm:$0xff]
      %v383 = vld [vmem:[%s376 + $0x48] sm:$0xff]
      %v384 = vld [vmem:[%s376 + $0x50] sm:$0xff]
      %v385 = vld [vmem:[%s376 + $0x60] sm:$0xff]
      %v386 = vld [vmem:[%s376 + $0x68] sm:$0xff]
      %v387 = vld [vmem:[%s376 + $0x78] sm:$0xff]
      %v388 = vld [vmem:[%s376 + $0x80] sm:$0xff]
      %v389 = vld [vmem:[%s376 + $0x90] sm:$0xff]
      %v390 = vld [vmem:[%s376 + $0x98] sm:$0xff]
      %v391 = vld [vmem:[%s376 + $0xa8] sm:$0xff]
      %v392 = vld [vmem:[%s376 + $0xb0] sm:$0xff]
      %v393 = vld [vmem:[%s376 + $0xc0] sm:$0xff]
      %v394 = vld [vmem:[%s376 + $0xc8] sm:$0xff]
      %v395 = vld [vmem:[%s376 + $0xd8] sm:$0xff]
      %v396 = vld [vmem:[%s376 + $0xe0] sm:$0xff]
      %v397 = vld [vmem:[%s376 + $0xf0] sm:$0xff]
      %v398 = vld [vmem:[%s376 + $0xf8] sm:$0xff]
      %v399 = vld [vmem:[%s376 + $0x108] sm:$0xff]
      %v400 = vld [vmem:[%s376 + $0x110] sm:$0xff]
      %v401 = vld [vmem:[%s376 + $0x120] sm:$0xff]
      %v402 = vld [vmem:[%s376 + $0x128] sm:$0xff]
      %v403 = vld [vmem:[%s376 + $0x138] sm:$0xff]
      %v404 = vld [vmem:[%s376 + $0x140] sm:$0xff]
      %v405 = vld [vmem:[%s376 + $0x150] sm:$0xff]
      %v406 = vld [vmem:[%s376 + $0x158] sm:$0xff]
      %v407 = vld [vmem:[%s376 + $0x168] sm:$0xff]
      %v408 = vld [vmem:[%s376 + $0x170] sm:$0xff]
      %v409 = vld [vmem:[%s376 + $0x1] sm:$0xff]
      %v410 = vld [vmem:[%s376 + $0x9] sm:$0xff]
      %v411 = vld [vmem:[%s376 + $0x19] sm:$0xff]
      %v412 = vld [vmem:[%s376 + $0x21] sm:$0xff]
      %v413 = vld [vmem:[%s376 + $0x31] sm:$0xff]
      %v414 = vld [vmem:[%s376 + $0x39] sm:$0xff]
      %v415 = vld [vmem:[%s376 + $0x49] sm:$0xff]
      %v416 = vld [vmem:[%s376 + $0x51] sm:$0xff]
      %v417 = vld [vmem:[%s376 + $0x61] sm:$0xff]
      %v418 = vld [vmem:[%s376 + $0x69] sm:$0xff]
      %v419 = vld [vmem:[%s376 + $0x79] sm:$0xff]
      %v420 = vld [vmem:[%s376 + $0x81] sm:$0xff]
      %v421 = vld [vmem:[%s376 + $0x91] sm:$0xff]
      %v422 = vld [vmem:[%s376 + $0x99] sm:$0xff]
      %v423 = vld [vmem:[%s376 + $0xa9] sm:$0xff]
      %v424 = vld [vmem:[%s376 + $0xb1] sm:$0xff]
      %v425 = vld [vmem:[%s376 + $0xc1] sm:$0xff]
      %v426 = vld [vmem:[%s376 + $0xc9] sm:$0xff]
      %v427 = vld [vmem:[%s376 + $0xd9] sm:$0xff]
      %v428 = vld [vmem:[%s376 + $0xe1] sm:$0xff]
      %v429 = vld [vmem:[%s376 + $0xf1] sm:$0xff]
      %v430 = vld [vmem:[%s376 + $0xf9] sm:$0xff]
      %v431 = vld [vmem:[%s376 + $0x109] sm:$0xff]
      %v432 = vld [vmem:[%s376 + $0x111] sm:$0xff]
      %v433 = vld [vmem:[%s376 + $0x121] sm:$0xff]
      %v434 = vld [vmem:[%s376 + $0x129] sm:$0xff]
      %v435 = vld [vmem:[%s376 + $0x139] sm:$0xff]
      %v436 = vld [vmem:[%s376 + $0x141] sm:$0xff]
      %v437 = vld [vmem:[%s376 + $0x151] sm:$0xff]
      %v438 = vld [vmem:[%s376 + $0x159] sm:$0xff]
      %v439 = vld [vmem:[%s376 + $0x169] sm:$0xff]
      %v440 = vld [vmem:[%s376 + $0x171] sm:$0xff]
      %v441 = vld [vmem:[%s376 + $0x2] sm:$0xff]
      %v442 = vld [vmem:[%s376 + $0xa] sm:$0xff]
      %v443 = vld [vmem:[%s376 + $0x1a] sm:$0xff]
      %v444 = vld [vmem:[%s376 + $0x22] sm:$0xff]
      %v445 = vld [vmem:[%s376 + $0x32] sm:$0xff]
      %v446 = vld [vmem:[%s376 + $0x3a] sm:$0xff]
      %v447 = vld [vmem:[%s376 + $0x4a] sm:$0xff]
      %v448 = vld [vmem:[%s376 + $0x52] sm:$0xff]
      %v449 = vld [vmem:[%s376 + $0x62] sm:$0xff]
      %v450 = vld [vmem:[%s376 + $0x6a] sm:$0xff]
      %v451 = vld [vmem:[%s376 + $0x7a] sm:$0xff]
      %v452 = vld [vmem:[%s376 + $0x82] sm:$0xff]
      %v453 = vld [vmem:[%s376 + $0x92] sm:$0xff]
      %v454 = vld [vmem:[%s376 + $0x9a] sm:$0xff]
      %v455 = vld [vmem:[%s376 + $0xaa] sm:$0xff]
      %v456 = vld [vmem:[%s376 + $0xb2] sm:$0xff]
      %v457 = vld [vmem:[%s376 + $0xc2] sm:$0xff]
      %v458 = vld [vmem:[%s376 + $0xca] sm:$0xff]
      %v459 = vld [vmem:[%s376 + $0xda] sm:$0xff]
      %v460 = vld [vmem:[%s376 + $0xe2] sm:$0xff]
      %v461 = vld [vmem:[%s376 + $0xf2] sm:$0xff]
      %v462 = vld [vmem:[%s376 + $0xfa] sm:$0xff]
      %v463 = vld [vmem:[%s376 + $0x10a] sm:$0xff]
      %v464 = vld [vmem:[%s376 + $0x112] sm:$0xff]
      %v465 = vld [vmem:[%s376 + $0x122] sm:$0xff]
      %v466 = vld [vmem:[%s376 + $0x12a] sm:$0xff]
      %v467 = vld [vmem:[%s376 + $0x13a] sm:$0xff]
      %v468 = vld [vmem:[%s376 + $0x142] sm:$0xff]
      %v469 = vld [vmem:[%s376 + $0x152] sm:$0xff]
      %v470 = vld [vmem:[%s376 + $0x15a] sm:$0xff]
      %v471 = vld [vmem:[%s376 + $0x16a] sm:$0xff]
      %v472 = vld [vmem:[%s376 + $0x172] sm:$0xff]
      %s473 = scalar_lea.vmem %s273, 48
      %v474 = vld [vmem:[%s473] sm:$0xff]
      %v475 = vld [vmem:[%s473 + $0x8] sm:$0xff]
      %v476 = vld [vmem:[%s473 + $0x18] sm:$0xff]
      %v477 = vld [vmem:[%s473 + $0x20] sm:$0xff]
      %v478 = vld [vmem:[%s473 + $0x30] sm:$0xff]
      %v479 = vld [vmem:[%s473 + $0x38] sm:$0xff]
      %v480 = vld [vmem:[%s473 + $0x48] sm:$0xff]
      %v481 = vld [vmem:[%s473 + $0x50] sm:$0xff]
      %v482 = vld [vmem:[%s473 + $0x60] sm:$0xff]
      %v483 = vld [vmem:[%s473 + $0x68] sm:$0xff]
      %v484 = vld [vmem:[%s473 + $0x78] sm:$0xff]
      %v485 = vld [vmem:[%s473 + $0x80] sm:$0xff]
      %v486 = vld [vmem:[%s473 + $0x90] sm:$0xff]
      %v487 = vld [vmem:[%s473 + $0x98] sm:$0xff]
      %v488 = vld [vmem:[%s473 + $0xa8] sm:$0xff]
      %v489 = vld [vmem:[%s473 + $0xb0] sm:$0xff]
      %v490 = vld [vmem:[%s473 + $0xc0] sm:$0xff]
      %v491 = vld [vmem:[%s473 + $0xc8] sm:$0xff]
      %v492 = vld [vmem:[%s473 + $0xd8] sm:$0xff]
      %v493 = vld [vmem:[%s473 + $0xe0] sm:$0xff]
      %v494 = vld [vmem:[%s473 + $0xf0] sm:$0xff]
      %v495 = vld [vmem:[%s473 + $0xf8] sm:$0xff]
      %v496 = vld [vmem:[%s473 + $0x108] sm:$0xff]
      %v497 = vld [vmem:[%s473 + $0x110] sm:$0xff]
      %v498 = vld [vmem:[%s473 + $0x120] sm:$0xff]
      %v499 = vld [vmem:[%s473 + $0x128] sm:$0xff]
      %v500 = vld [vmem:[%s473 + $0x138] sm:$0xff]
      %v501 = vld [vmem:[%s473 + $0x140] sm:$0xff]
      %v502 = vld [vmem:[%s473 + $0x150] sm:$0xff]
      %v503 = vld [vmem:[%s473 + $0x158] sm:$0xff]
      %v504 = vld [vmem:[%s473 + $0x168] sm:$0xff]
      %v505 = vld [vmem:[%s473 + $0x170] sm:$0xff]
      %v506 = vld [vmem:[%s473 + $0x1] sm:$0xff]
      %v507 = vld [vmem:[%s473 + $0x9] sm:$0xff]
      %v508 = vld [vmem:[%s473 + $0x19] sm:$0xff]
      %v509 = vld [vmem:[%s473 + $0x21] sm:$0xff]
      %v510 = vld [vmem:[%s473 + $0x31] sm:$0xff]
      %v511 = vld [vmem:[%s473 + $0x39] sm:$0xff]
      %v512 = vld [vmem:[%s473 + $0x49] sm:$0xff]
      %v513 = vld [vmem:[%s473 + $0x51] sm:$0xff]
      %v514 = vld [vmem:[%s473 + $0x61] sm:$0xff]
      %v515 = vld [vmem:[%s473 + $0x69] sm:$0xff]
      %v516 = vld [vmem:[%s473 + $0x79] sm:$0xff]
      %v517 = vld [vmem:[%s473 + $0x81] sm:$0xff]
      %v518 = vld [vmem:[%s473 + $0x91] sm:$0xff]
      %v519 = vld [vmem:[%s473 + $0x99] sm:$0xff]
      %v520 = vld [vmem:[%s473 + $0xa9] sm:$0xff]
      %v521 = vld [vmem:[%s473 + $0xb1] sm:$0xff]
      %v522 = vld [vmem:[%s473 + $0xc1] sm:$0xff]
      %v523 = vld [vmem:[%s473 + $0xc9] sm:$0xff]
      %v524 = vld [vmem:[%s473 + $0xd9] sm:$0xff]
      %v525 = vld [vmem:[%s473 + $0xe1] sm:$0xff]
      %v526 = vld [vmem:[%s473 + $0xf1] sm:$0xff]
      %v527 = vld [vmem:[%s473 + $0xf9] sm:$0xff]
      %v528 = vld [vmem:[%s473 + $0x109] sm:$0xff]
      %v529 = vld [vmem:[%s473 + $0x111] sm:$0xff]
      %v530 = vld [vmem:[%s473 + $0x121] sm:$0xff]
      %v531 = vld [vmem:[%s473 + $0x129] sm:$0xff]
      %v532 = vld [vmem:[%s473 + $0x139] sm:$0xff]
      %v533 = vld [vmem:[%s473 + $0x141] sm:$0xff]
      %v534 = vld [vmem:[%s473 + $0x151] sm:$0xff]
      %v535 = vld [vmem:[%s473 + $0x159] sm:$0xff]
      %v536 = vld [vmem:[%s473 + $0x169] sm:$0xff]
      %v537 = vld [vmem:[%s473 + $0x171] sm:$0xff]
      %v538 = vld [vmem:[%s473 + $0x2] sm:$0xff]
      %v539 = vld [vmem:[%s473 + $0xa] sm:$0xff]
      %v540 = vld [vmem:[%s473 + $0x1a] sm:$0xff]
      %v541 = vld [vmem:[%s473 + $0x22] sm:$0xff]
      %v542 = vld [vmem:[%s473 + $0x32] sm:$0xff]
      %v543 = vld [vmem:[%s473 + $0x3a] sm:$0xff]
      %v544 = vld [vmem:[%s473 + $0x4a] sm:$0xff]
      %v545 = vld [vmem:[%s473 + $0x52] sm:$0xff]
      %v546 = vld [vmem:[%s473 + $0x62] sm:$0xff]
      %v547 = vld [vmem:[%s473 + $0x6a] sm:$0xff]
      %v548 = vld [vmem:[%s473 + $0x7a] sm:$0xff]
      %v549 = vld [vmem:[%s473 + $0x82] sm:$0xff]
      %v550 = vld [vmem:[%s473 + $0x92] sm:$0xff]
      %v551 = vld [vmem:[%s473 + $0x9a] sm:$0xff]
      %v552 = vld [vmem:[%s473 + $0xaa] sm:$0xff]
      %v553 = vld [vmem:[%s473 + $0xb2] sm:$0xff]
      %v554 = vld [vmem:[%s473 + $0xc2] sm:$0xff]
      %v555 = vld [vmem:[%s473 + $0xca] sm:$0xff]
      %v556 = vld [vmem:[%s473 + $0xda] sm:$0xff]
      %v557 = vld [vmem:[%s473 + $0xe2] sm:$0xff]
      %v558 = vld [vmem:[%s473 + $0xf2] sm:$0xff]
      %v559 = vld [vmem:[%s473 + $0xfa] sm:$0xff]
      %v560 = vld [vmem:[%s473 + $0x10a] sm:$0xff]
      %v561 = vld [vmem:[%s473 + $0x112] sm:$0xff]
      %v562 = vld [vmem:[%s473 + $0x122] sm:$0xff]
      %v563 = vld [vmem:[%s473 + $0x12a] sm:$0xff]
      %v564 = vld [vmem:[%s473 + $0x13a] sm:$0xff]
      %v565 = vld [vmem:[%s473 + $0x142] sm:$0xff]
      %v566 = vld [vmem:[%s473 + $0x152] sm:$0xff]
      %v567 = vld [vmem:[%s473 + $0x15a] sm:$0xff]
      %v568 = vld [vmem:[%s473 + $0x16a] sm:$0xff]
      %v569 = vld [vmem:[%s473 + $0x172] sm:$0xff]
      %602 = vrot.lane.b32.xlu0 %v312, 4
      %v603 = vpop.permute.xlu0 %602
      %604 = vrot.lane.b32.xlu0 %v313, 4
      %v605 = vpop.permute.xlu0 %604
      %606 = vrot.lane.b32.xlu0 %v314, 4
      %v607 = vpop.permute.xlu0 %606
      %608 = vrot.lane.b32.xlu0 %v315, 4
      %v609 = vpop.permute.xlu0 %608
      %610 = vrot.lane.b32.xlu0 %v316, 4
      %v611 = vpop.permute.xlu0 %610
      %612 = vrot.lane.b32.xlu0 %v317, 4
      %v613 = vpop.permute.xlu0 %612
      %614 = vrot.lane.b32.xlu0 %v318, 4
      %v615 = vpop.permute.xlu0 %614
      %616 = vrot.lane.b32.xlu0 %v319, 4
      %v617 = vpop.permute.xlu0 %616
      %618 = vrot.lane.b32.xlu0 %v320, 4
      %v619 = vpop.permute.xlu0 %618
      %620 = vrot.lane.b32.xlu0 %v321, 4
      %v621 = vpop.permute.xlu0 %620
      %622 = vrot.lane.b32.xlu0 %v322, 4
      %v623 = vpop.permute.xlu0 %622
      %624 = vrot.lane.b32.xlu0 %v323, 4
      %v625 = vpop.permute.xlu0 %624
      %626 = vrot.lane.b32.xlu0 %v324, 4
      %v627 = vpop.permute.xlu0 %626
      %628 = vrot.lane.b32.xlu0 %v325, 4
      %v629 = vpop.permute.xlu0 %628
      %630 = vrot.lane.b32.xlu0 %v326, 4
      %v631 = vpop.permute.xlu0 %630
      %632 = vrot.lane.b32.xlu0 %v327, 4
      %v633 = vpop.permute.xlu0 %632
      %634 = vrot.lane.b32.xlu0 %v328, 4
      %v635 = vpop.permute.xlu0 %634
      %636 = vrot.lane.b32.xlu0 %v329, 4
      %v637 = vpop.permute.xlu0 %636
      %638 = vrot.lane.b32.xlu0 %v330, 4
      %v639 = vpop.permute.xlu0 %638
      %640 = vrot.lane.b32.xlu0 %v331, 4
      %v641 = vpop.permute.xlu0 %640
      %642 = vrot.lane.b32.xlu0 %v332, 4
      %v643 = vpop.permute.xlu0 %642
      %644 = vrot.lane.b32.xlu0 %v333, 4
      %v645 = vpop.permute.xlu0 %644
      %646 = vrot.lane.b32.xlu0 %v334, 4
      %v647 = vpop.permute.xlu0 %646
      %648 = vrot.lane.b32.xlu0 %v335, 4
      %v649 = vpop.permute.xlu0 %648
      %650 = vrot.lane.b32.xlu0 %v336, 4
      %v651 = vpop.permute.xlu0 %650
      %652 = vrot.lane.b32.xlu0 %v337, 4
      %v653 = vpop.permute.xlu0 %652
      %654 = vrot.lane.b32.xlu0 %v338, 4
      %v655 = vpop.permute.xlu0 %654
      %656 = vrot.lane.b32.xlu0 %v339, 4
      %v657 = vpop.permute.xlu0 %656
      %658 = vrot.lane.b32.xlu0 %v340, 4
      %v659 = vpop.permute.xlu0 %658
      %660 = vrot.lane.b32.xlu0 %v341, 4
      %v661 = vpop.permute.xlu0 %660
      %662 = vrot.lane.b32.xlu0 %v342, 4
      %v663 = vpop.permute.xlu0 %662
      %664 = vrot.lane.b32.xlu0 %v343, 4
      %v665 = vpop.permute.xlu0 %664
      %730 = vrot.lane.b32.xlu0 %v344, 8
      %v731 = vpop.permute.xlu0 %730
      %732 = vrot.lane.b32.xlu0 %v345, 8
      %v733 = vpop.permute.xlu0 %732
      %734 = vrot.lane.b32.xlu0 %v346, 8
      %v735 = vpop.permute.xlu0 %734
      %736 = vrot.lane.b32.xlu0 %v347, 8
      %v737 = vpop.permute.xlu0 %736
      %738 = vrot.lane.b32.xlu0 %v348, 8
      %v739 = vpop.permute.xlu0 %738
      %740 = vrot.lane.b32.xlu0 %v349, 8
      %v741 = vpop.permute.xlu0 %740
      %742 = vrot.lane.b32.xlu0 %v350, 8
      %v743 = vpop.permute.xlu0 %742
      %744 = vrot.lane.b32.xlu0 %v351, 8
      %v745 = vpop.permute.xlu0 %744
      %746 = vrot.lane.b32.xlu0 %v352, 8
      %v747 = vpop.permute.xlu0 %746
      %748 = vrot.lane.b32.xlu0 %v353, 8
      %v749 = vpop.permute.xlu0 %748
      %750 = vrot.lane.b32.xlu0 %v354, 8
      %v751 = vpop.permute.xlu0 %750
      %752 = vrot.lane.b32.xlu0 %v355, 8
      %v753 = vpop.permute.xlu0 %752
      %754 = vrot.lane.b32.xlu0 %v356, 8
      %v755 = vpop.permute.xlu0 %754
      %756 = vrot.lane.b32.xlu0 %v357, 8
      %v757 = vpop.permute.xlu0 %756
      %758 = vrot.lane.b32.xlu0 %v358, 8
      %v759 = vpop.permute.xlu0 %758
      %760 = vrot.lane.b32.xlu0 %v359, 8
      %v761 = vpop.permute.xlu0 %760
      %762 = vrot.lane.b32.xlu0 %v360, 8
      %v763 = vpop.permute.xlu0 %762
      %764 = vrot.lane.b32.xlu0 %v361, 8
      %v765 = vpop.permute.xlu0 %764
      %766 = vrot.lane.b32.xlu0 %v362, 8
      %v767 = vpop.permute.xlu0 %766
      %768 = vrot.lane.b32.xlu0 %v363, 8
      %v769 = vpop.permute.xlu0 %768
      %770 = vrot.lane.b32.xlu0 %v364, 8
      %v771 = vpop.permute.xlu0 %770
      %772 = vrot.lane.b32.xlu0 %v365, 8
      %v773 = vpop.permute.xlu0 %772
      %774 = vrot.lane.b32.xlu0 %v366, 8
      %v775 = vpop.permute.xlu0 %774
      %776 = vrot.lane.b32.xlu0 %v367, 8
      %v777 = vpop.permute.xlu0 %776
      %778 = vrot.lane.b32.xlu0 %v368, 8
      %v779 = vpop.permute.xlu0 %778
      %780 = vrot.lane.b32.xlu0 %v369, 8
      %v781 = vpop.permute.xlu0 %780
      %782 = vrot.lane.b32.xlu0 %v370, 8
      %v783 = vpop.permute.xlu0 %782
      %784 = vrot.lane.b32.xlu0 %v371, 8
      %v785 = vpop.permute.xlu0 %784
      %786 = vrot.lane.b32.xlu0 %v372, 8
      %v787 = vpop.permute.xlu0 %786
      %788 = vrot.lane.b32.xlu0 %v373, 8
      %v789 = vpop.permute.xlu0 %788
      %790 = vrot.lane.b32.xlu0 %v374, 8
      %v791 = vpop.permute.xlu0 %790
      %792 = vrot.lane.b32.xlu0 %v375, 8
      %v793 = vpop.permute.xlu0 %792
      %858 = vrot.lane.b32.xlu0 %v377, 12
      %v859 = vpop.permute.xlu0 %858
      %860 = vrot.lane.b32.xlu0 %v378, 12
      %v861 = vpop.permute.xlu0 %860
      %862 = vrot.lane.b32.xlu0 %v379, 12
      %v863 = vpop.permute.xlu0 %862
      %864 = vrot.lane.b32.xlu0 %v380, 12
      %v865 = vpop.permute.xlu0 %864
      %866 = vrot.lane.b32.xlu0 %v381, 12
      %v867 = vpop.permute.xlu0 %866
      %868 = vrot.lane.b32.xlu0 %v382, 12
      %v869 = vpop.permute.xlu0 %868
      %870 = vrot.lane.b32.xlu0 %v383, 12
      %v871 = vpop.permute.xlu0 %870
      %872 = vrot.lane.b32.xlu0 %v384, 12
      %v873 = vpop.permute.xlu0 %872
      %874 = vrot.lane.b32.xlu0 %v385, 12
      %v875 = vpop.permute.xlu0 %874
      %876 = vrot.lane.b32.xlu0 %v386, 12
      %v877 = vpop.permute.xlu0 %876
      %878 = vrot.lane.b32.xlu0 %v387, 12
      %v879 = vpop.permute.xlu0 %878
      %880 = vrot.lane.b32.xlu0 %v388, 12
      %v881 = vpop.permute.xlu0 %880
      %882 = vrot.lane.b32.xlu0 %v389, 12
      %v883 = vpop.permute.xlu0 %882
      %884 = vrot.lane.b32.xlu0 %v390, 12
      %v885 = vpop.permute.xlu0 %884
      %886 = vrot.lane.b32.xlu0 %v391, 12
      %v887 = vpop.permute.xlu0 %886
      %888 = vrot.lane.b32.xlu0 %v392, 12
      %v889 = vpop.permute.xlu0 %888
      %890 = vrot.lane.b32.xlu0 %v393, 12
      %v891 = vpop.permute.xlu0 %890
      %892 = vrot.lane.b32.xlu0 %v394, 12
      %v893 = vpop.permute.xlu0 %892
      %894 = vrot.lane.b32.xlu0 %v395, 12
      %v895 = vpop.permute.xlu0 %894
      %896 = vrot.lane.b32.xlu0 %v396, 12
      %v897 = vpop.permute.xlu0 %896
      %898 = vrot.lane.b32.xlu0 %v397, 12
      %v899 = vpop.permute.xlu0 %898
      %900 = vrot.lane.b32.xlu0 %v398, 12
      %v901 = vpop.permute.xlu0 %900
      %902 = vrot.lane.b32.xlu0 %v399, 12
      %v903 = vpop.permute.xlu0 %902
      %904 = vrot.lane.b32.xlu0 %v400, 12
      %v905 = vpop.permute.xlu0 %904
      %906 = vrot.lane.b32.xlu0 %v401, 12
      %v907 = vpop.permute.xlu0 %906
      %908 = vrot.lane.b32.xlu0 %v402, 12
      %v909 = vpop.permute.xlu0 %908
      %910 = vrot.lane.b32.xlu0 %v403, 12
      %v911 = vpop.permute.xlu0 %910
      %912 = vrot.lane.b32.xlu0 %v404, 12
      %v913 = vpop.permute.xlu0 %912
      %914 = vrot.lane.b32.xlu0 %v405, 12
      %v915 = vpop.permute.xlu0 %914
      %916 = vrot.lane.b32.xlu0 %v406, 12
      %v917 = vpop.permute.xlu0 %916
      %918 = vrot.lane.b32.xlu0 %v407, 12
      %v919 = vpop.permute.xlu0 %918
      %920 = vrot.lane.b32.xlu0 %v408, 12
      %v921 = vpop.permute.xlu0 %920
      %986 = vrot.lane.b32.xlu0 %v409, 16
      %v987 = vpop.permute.xlu0 %986
      %988 = vrot.lane.b32.xlu0 %v410, 16
      %v989 = vpop.permute.xlu0 %988
      %990 = vrot.lane.b32.xlu0 %v411, 16
      %v991 = vpop.permute.xlu0 %990
      %992 = vrot.lane.b32.xlu0 %v412, 16
      %v993 = vpop.permute.xlu0 %992
      %994 = vrot.lane.b32.xlu0 %v413, 16
      %v995 = vpop.permute.xlu0 %994
      %996 = vrot.lane.b32.xlu0 %v414, 16
      %v997 = vpop.permute.xlu0 %996
      %998 = vrot.lane.b32.xlu0 %v415, 16
      %v999 = vpop.permute.xlu0 %998
      %1000 = vrot.lane.b32.xlu0 %v416, 16
      %v1001 = vpop.permute.xlu0 %1000
      %1002 = vrot.lane.b32.xlu0 %v417, 16
      %v1003 = vpop.permute.xlu0 %1002
      %1004 = vrot.lane.b32.xlu0 %v418, 16
      %v1005 = vpop.permute.xlu0 %1004
      %1006 = vrot.lane.b32.xlu0 %v419, 16
      %v1007 = vpop.permute.xlu0 %1006
      %1008 = vrot.lane.b32.xlu0 %v420, 16
      %v1009 = vpop.permute.xlu0 %1008
      %1010 = vrot.lane.b32.xlu0 %v421, 16
      %v1011 = vpop.permute.xlu0 %1010
      %1012 = vrot.lane.b32.xlu0 %v422, 16
      %v1013 = vpop.permute.xlu0 %1012
      %1014 = vrot.lane.b32.xlu0 %v423, 16
      %v1015 = vpop.permute.xlu0 %1014
      %1016 = vrot.lane.b32.xlu0 %v424, 16
      %v1017 = vpop.permute.xlu0 %1016
      %1018 = vrot.lane.b32.xlu0 %v425, 16
      %v1019 = vpop.permute.xlu0 %1018
      %1020 = vrot.lane.b32.xlu0 %v426, 16
      %v1021 = vpop.permute.xlu0 %1020
      %1022 = vrot.lane.b32.xlu0 %v427, 16
      %v1023 = vpop.permute.xlu0 %1022
      %1024 = vrot.lane.b32.xlu0 %v428, 16
      %v1025 = vpop.permute.xlu0 %1024
      %1026 = vrot.lane.b32.xlu0 %v429, 16
      %v1027 = vpop.permute.xlu0 %1026
      %1028 = vrot.lane.b32.xlu0 %v430, 16
      %v1029 = vpop.permute.xlu0 %1028
      %1030 = vrot.lane.b32.xlu0 %v431, 16
      %v1031 = vpop.permute.xlu0 %1030
      %1032 = vrot.lane.b32.xlu0 %v432, 16
      %v1033 = vpop.permute.xlu0 %1032
      %1034 = vrot.lane.b32.xlu0 %v433, 16
      %v1035 = vpop.permute.xlu0 %1034
      %1036 = vrot.lane.b32.xlu0 %v434, 16
      %v1037 = vpop.permute.xlu0 %1036
      %1038 = vrot.lane.b32.xlu0 %v435, 16
      %v1039 = vpop.permute.xlu0 %1038
      %1040 = vrot.lane.b32.xlu0 %v436, 16
      %v1041 = vpop.permute.xlu0 %1040
      %1042 = vrot.lane.b32.xlu0 %v437, 16
      %v1043 = vpop.permute.xlu0 %1042
      %1044 = vrot.lane.b32.xlu0 %v438, 16
      %v1045 = vpop.permute.xlu0 %1044
      %1046 = vrot.lane.b32.xlu0 %v439, 16
      %v1047 = vpop.permute.xlu0 %1046
      %1048 = vrot.lane.b32.xlu0 %v440, 16
      %v1049 = vpop.permute.xlu0 %1048
      %1114 = vrot.lane.b32.xlu0 %v441, 20
      %v1115 = vpop.permute.xlu0 %1114
      %1116 = vrot.lane.b32.xlu0 %v442, 20
      %v1117 = vpop.permute.xlu0 %1116
      %1118 = vrot.lane.b32.xlu0 %v443, 20
      %v1119 = vpop.permute.xlu0 %1118
      %1120 = vrot.lane.b32.xlu0 %v444, 20
      %v1121 = vpop.permute.xlu0 %1120
      %1122 = vrot.lane.b32.xlu0 %v445, 20
      %v1123 = vpop.permute.xlu0 %1122
      %1124 = vrot.lane.b32.xlu0 %v446, 20
      %v1125 = vpop.permute.xlu0 %1124
      %1126 = vrot.lane.b32.xlu0 %v447, 20
      %v1127 = vpop.permute.xlu0 %1126
      %1128 = vrot.lane.b32.xlu0 %v448, 20
      %v1129 = vpop.permute.xlu0 %1128
      %1130 = vrot.lane.b32.xlu0 %v449, 20
      %v1131 = vpop.permute.xlu0 %1130
      %1132 = vrot.lane.b32.xlu0 %v450, 20
      %v1133 = vpop.permute.xlu0 %1132
      %1134 = vrot.lane.b32.xlu0 %v451, 20
      %v1135 = vpop.permute.xlu0 %1134
      %1136 = vrot.lane.b32.xlu0 %v452, 20
      %v1137 = vpop.permute.xlu0 %1136
      %1138 = vrot.lane.b32.xlu0 %v453, 20
      %v1139 = vpop.permute.xlu0 %1138
      %1140 = vrot.lane.b32.xlu0 %v454, 20
      %v1141 = vpop.permute.xlu0 %1140
      %1142 = vrot.lane.b32.xlu0 %v455, 20
      %v1143 = vpop.permute.xlu0 %1142
      %1144 = vrot.lane.b32.xlu0 %v456, 20
      %v1145 = vpop.permute.xlu0 %1144
      %1146 = vrot.lane.b32.xlu0 %v457, 20
      %v1147 = vpop.permute.xlu0 %1146
      %1148 = vrot.lane.b32.xlu0 %v458, 20
      %v1149 = vpop.permute.xlu0 %1148
      %1150 = vrot.lane.b32.xlu0 %v459, 20
      %v1151 = vpop.permute.xlu0 %1150
      %1152 = vrot.lane.b32.xlu0 %v460, 20
      %v1153 = vpop.permute.xlu0 %1152
      %1154 = vrot.lane.b32.xlu0 %v461, 20
      %v1155 = vpop.permute.xlu0 %1154
      %1156 = vrot.lane.b32.xlu0 %v462, 20
      %v1157 = vpop.permute.xlu0 %1156
      %1158 = vrot.lane.b32.xlu0 %v463, 20
      %v1159 = vpop.permute.xlu0 %1158
      %1160 = vrot.lane.b32.xlu0 %v464, 20
      %v1161 = vpop.permute.xlu0 %1160
      %1162 = vrot.lane.b32.xlu0 %v465, 20
      %v1163 = vpop.permute.xlu0 %1162
      %1164 = vrot.lane.b32.xlu0 %v466, 20
      %v1165 = vpop.permute.xlu0 %1164
      %1166 = vrot.lane.b32.xlu0 %v467, 20
      %v1167 = vpop.permute.xlu0 %1166
      %1168 = vrot.lane.b32.xlu0 %v468, 20
      %v1169 = vpop.permute.xlu0 %1168
      %1170 = vrot.lane.b32.xlu0 %v469, 20
      %v1171 = vpop.permute.xlu0 %1170
      %1172 = vrot.lane.b32.xlu0 %v470, 20
      %v1173 = vpop.permute.xlu0 %1172
      %1174 = vrot.lane.b32.xlu0 %v471, 20
      %v1175 = vpop.permute.xlu0 %1174
      %1176 = vrot.lane.b32.xlu0 %v472, 20
      %v1177 = vpop.permute.xlu0 %1176
      %1242 = vrot.lane.b32.xlu0 %v474, 24
      %v1243 = vpop.permute.xlu0 %1242
      %1244 = vrot.lane.b32.xlu0 %v475, 24
      %v1245 = vpop.permute.xlu0 %1244
      %1246 = vrot.lane.b32.xlu0 %v476, 24
      %v1247 = vpop.permute.xlu0 %1246
      %1248 = vrot.lane.b32.xlu0 %v477, 24
      %v1249 = vpop.permute.xlu0 %1248
      %1250 = vrot.lane.b32.xlu0 %v478, 24
      %v1251 = vpop.permute.xlu0 %1250
      %1252 = vrot.lane.b32.xlu0 %v479, 24
      %v1253 = vpop.permute.xlu0 %1252
      %1254 = vrot.lane.b32.xlu0 %v480, 24
      %v1255 = vpop.permute.xlu0 %1254
      %1256 = vrot.lane.b32.xlu0 %v481, 24
      %v1257 = vpop.permute.xlu0 %1256
      %1258 = vrot.lane.b32.xlu0 %v482, 24
      %v1259 = vpop.permute.xlu0 %1258
      %1260 = vrot.lane.b32.xlu0 %v483, 24
      %v1261 = vpop.permute.xlu0 %1260
      %1262 = vrot.lane.b32.xlu0 %v484, 24
      %v1263 = vpop.permute.xlu0 %1262
      %1264 = vrot.lane.b32.xlu0 %v485, 24
      %v1265 = vpop.permute.xlu0 %1264
      %1266 = vrot.lane.b32.xlu0 %v486, 24
      %v1267 = vpop.permute.xlu0 %1266
      %1268 = vrot.lane.b32.xlu0 %v487, 24
      %v1269 = vpop.permute.xlu0 %1268
      %1270 = vrot.lane.b32.xlu0 %v488, 24
      %v1271 = vpop.permute.xlu0 %1270
      %1272 = vrot.lane.b32.xlu0 %v489, 24
      %v1273 = vpop.permute.xlu0 %1272
      %1274 = vrot.lane.b32.xlu0 %v490, 24
      %v1275 = vpop.permute.xlu0 %1274
      %1276 = vrot.lane.b32.xlu0 %v491, 24
      %v1277 = vpop.permute.xlu0 %1276
      %1278 = vrot.lane.b32.xlu0 %v492, 24
      %v1279 = vpop.permute.xlu0 %1278
      %1280 = vrot.lane.b32.xlu0 %v493, 24
      %v1281 = vpop.permute.xlu0 %1280
      %1282 = vrot.lane.b32.xlu0 %v494, 24
      %v1283 = vpop.permute.xlu0 %1282
      %1284 = vrot.lane.b32.xlu0 %v495, 24
      %v1285 = vpop.permute.xlu0 %1284
      %1286 = vrot.lane.b32.xlu0 %v496, 24
      %v1287 = vpop.permute.xlu0 %1286
      %1288 = vrot.lane.b32.xlu0 %v497, 24
      %v1289 = vpop.permute.xlu0 %1288
      %1290 = vrot.lane.b32.xlu0 %v498, 24
      %v1291 = vpop.permute.xlu0 %1290
      %1292 = vrot.lane.b32.xlu0 %v499, 24
      %v1293 = vpop.permute.xlu0 %1292
      %1294 = vrot.lane.b32.xlu0 %v500, 24
      %v1295 = vpop.permute.xlu0 %1294
      %1296 = vrot.lane.b32.xlu0 %v501, 24
      %v1297 = vpop.permute.xlu0 %1296
      %1298 = vrot.lane.b32.xlu0 %v502, 24
      %v1299 = vpop.permute.xlu0 %1298
      %1300 = vrot.lane.b32.xlu0 %v503, 24
      %v1301 = vpop.permute.xlu0 %1300
      %1302 = vrot.lane.b32.xlu0 %v504, 24
      %v1303 = vpop.permute.xlu0 %1302
      %1304 = vrot.lane.b32.xlu0 %v505, 24
      %v1305 = vpop.permute.xlu0 %1304
      %1370 = vrot.lane.b32.xlu0 %v506, 28
      %v1371 = vpop.permute.xlu0 %1370
      %1372 = vrot.lane.b32.xlu0 %v507, 28
      %v1373 = vpop.permute.xlu0 %1372
      %1374 = vrot.lane.b32.xlu0 %v508, 28
      %v1375 = vpop.permute.xlu0 %1374
      %1376 = vrot.lane.b32.xlu0 %v509, 28
      %v1377 = vpop.permute.xlu0 %1376
      %1378 = vrot.lane.b32.xlu0 %v510, 28
      %v1379 = vpop.permute.xlu0 %1378
      %1380 = vrot.lane.b32.xlu0 %v511, 28
      %v1381 = vpop.permute.xlu0 %1380
      %1382 = vrot.lane.b32.xlu0 %v512, 28
      %v1383 = vpop.permute.xlu0 %1382
      %1384 = vrot.lane.b32.xlu0 %v513, 28
      %v1385 = vpop.permute.xlu0 %1384
      %1386 = vrot.lane.b32.xlu0 %v514, 28
      %v1387 = vpop.permute.xlu0 %1386
      %1388 = vrot.lane.b32.xlu0 %v515, 28
      %v1389 = vpop.permute.xlu0 %1388
      %1390 = vrot.lane.b32.xlu0 %v516, 28
      %v1391 = vpop.permute.xlu0 %1390
      %1392 = vrot.lane.b32.xlu0 %v517, 28
      %v1393 = vpop.permute.xlu0 %1392
      %1394 = vrot.lane.b32.xlu0 %v518, 28
      %v1395 = vpop.permute.xlu0 %1394
      %1396 = vrot.lane.b32.xlu0 %v519, 28
      %v1397 = vpop.permute.xlu0 %1396
      %1398 = vrot.lane.b32.xlu0 %v520, 28
      %v1399 = vpop.permute.xlu0 %1398
      %1400 = vrot.lane.b32.xlu0 %v521, 28
      %v1401 = vpop.permute.xlu0 %1400
      %1402 = vrot.lane.b32.xlu0 %v522, 28
      %v1403 = vpop.permute.xlu0 %1402
      %1404 = vrot.lane.b32.xlu0 %v523, 28
      %v1405 = vpop.permute.xlu0 %1404
      %1406 = vrot.lane.b32.xlu0 %v524, 28
      %v1407 = vpop.permute.xlu0 %1406
      %1408 = vrot.lane.b32.xlu0 %v525, 28
      %v1409 = vpop.permute.xlu0 %1408
      %1410 = vrot.lane.b32.xlu0 %v526, 28
      %v1411 = vpop.permute.xlu0 %1410
      %1412 = vrot.lane.b32.xlu0 %v527, 28
      %v1413 = vpop.permute.xlu0 %1412
      %1414 = vrot.lane.b32.xlu0 %v528, 28
      %v1415 = vpop.permute.xlu0 %1414
      %1416 = vrot.lane.b32.xlu0 %v529, 28
      %v1417 = vpop.permute.xlu0 %1416
      %1418 = vrot.lane.b32.xlu0 %v530, 28
      %v1419 = vpop.permute.xlu0 %1418
      %1420 = vrot.lane.b32.xlu0 %v531, 28
      %v1421 = vpop.permute.xlu0 %1420
      %1422 = vrot.lane.b32.xlu0 %v532, 28
      %v1423 = vpop.permute.xlu0 %1422
      %1424 = vrot.lane.b32.xlu0 %v533, 28
      %v1425 = vpop.permute.xlu0 %1424
      %1426 = vrot.lane.b32.xlu0 %v534, 28
      %v1427 = vpop.permute.xlu0 %1426
      %1428 = vrot.lane.b32.xlu0 %v535, 28
      %v1429 = vpop.permute.xlu0 %1428
      %1430 = vrot.lane.b32.xlu0 %v536, 28
      %v1431 = vpop.permute.xlu0 %1430
      %1432 = vrot.lane.b32.xlu0 %v537, 28
      %v1433 = vpop.permute.xlu0 %1432
      %1498 = vrot.lane.b32.xlu0 %v538, 32
      %v1499 = vpop.permute.xlu0 %1498
      %1500 = vrot.lane.b32.xlu0 %v539, 32
      %v1501 = vpop.permute.xlu0 %1500
      %1502 = vrot.lane.b32.xlu0 %v540, 32
      %v1503 = vpop.permute.xlu0 %1502
      %1504 = vrot.lane.b32.xlu0 %v541, 32
      %v1505 = vpop.permute.xlu0 %1504
      %1506 = vrot.lane.b32.xlu0 %v542, 32
      %v1507 = vpop.permute.xlu0 %1506
      %1508 = vrot.lane.b32.xlu0 %v543, 32
      %v1509 = vpop.permute.xlu0 %1508
      %1510 = vrot.lane.b32.xlu0 %v544, 32
      %v1511 = vpop.permute.xlu0 %1510
      %1512 = vrot.lane.b32.xlu0 %v545, 32
      %v1513 = vpop.permute.xlu0 %1512
      %1514 = vrot.lane.b32.xlu0 %v546, 32
      %v1515 = vpop.permute.xlu0 %1514
      %1516 = vrot.lane.b32.xlu0 %v547, 32
      %v1517 = vpop.permute.xlu0 %1516
      %1518 = vrot.lane.b32.xlu0 %v548, 32
      %v1519 = vpop.permute.xlu0 %1518
      %1520 = vrot.lane.b32.xlu0 %v549, 32
      %v1521 = vpop.permute.xlu0 %1520
      %1522 = vrot.lane.b32.xlu0 %v550, 32
      %v1523 = vpop.permute.xlu0 %1522
      %1524 = vrot.lane.b32.xlu0 %v551, 32
      %v1525 = vpop.permute.xlu0 %1524
      %1526 = vrot.lane.b32.xlu0 %v552, 32
      %v1527 = vpop.permute.xlu0 %1526
      %1528 = vrot.lane.b32.xlu0 %v553, 32
      %v1529 = vpop.permute.xlu0 %1528
      %1530 = vrot.lane.b32.xlu0 %v554, 32
      %v1531 = vpop.permute.xlu0 %1530
      %1532 = vrot.lane.b32.xlu0 %v555, 32
      %v1533 = vpop.permute.xlu0 %1532
      %1534 = vrot.lane.b32.xlu0 %v556, 32
      %v1535 = vpop.permute.xlu0 %1534
      %1536 = vrot.lane.b32.xlu0 %v557, 32
      %v1537 = vpop.permute.xlu0 %1536
      %1538 = vrot.lane.b32.xlu0 %v558, 32
      %v1539 = vpop.permute.xlu0 %1538
      %1540 = vrot.lane.b32.xlu0 %v559, 32
      %v1541 = vpop.permute.xlu0 %1540
      %1542 = vrot.lane.b32.xlu0 %v560, 32
      %v1543 = vpop.permute.xlu0 %1542
      %1544 = vrot.lane.b32.xlu0 %v561, 32
      %v1545 = vpop.permute.xlu0 %1544
      %1546 = vrot.lane.b32.xlu0 %v562, 32
      %v1547 = vpop.permute.xlu0 %1546
      %1548 = vrot.lane.b32.xlu0 %v563, 32
      %v1549 = vpop.permute.xlu0 %1548
      %1550 = vrot.lane.b32.xlu0 %v564, 32
      %v1551 = vpop.permute.xlu0 %1550
      %1552 = vrot.lane.b32.xlu0 %v565, 32
      %v1553 = vpop.permute.xlu0 %1552
      %1554 = vrot.lane.b32.xlu0 %v566, 32
      %v1555 = vpop.permute.xlu0 %1554
      %1556 = vrot.lane.b32.xlu0 %v567, 32
      %v1557 = vpop.permute.xlu0 %1556
      %1558 = vrot.lane.b32.xlu0 %v568, 32
      %v1559 = vpop.permute.xlu0 %1558
      %1560 = vrot.lane.b32.xlu0 %v569, 32
      %v1561 = vpop.permute.xlu0 %1560
      %vm1594 = vcmask 31744
      %v1595 = vsel %vm1594, %v280, %v603
      %v1596 = vsel %vm1594, %v281, %v605
      %v1597 = vsel %vm1594, %v282, %v607
      %v1598 = vsel %vm1594, %v283, %v609
      %v1599 = vsel %vm1594, %v284, %v611
      %v1600 = vsel %vm1594, %v285, %v613
      %v1601 = vsel %vm1594, %v286, %v615
      %v1602 = vsel %vm1594, %v287, %v617
      %v1603 = vsel %vm1594, %v288, %v619
      %v1604 = vsel %vm1594, %v289, %v621
      %v1605 = vsel %vm1594, %v290, %v623
      %v1606 = vsel %vm1594, %v291, %v625
      %v1607 = vsel %vm1594, %v292, %v627
      %v1608 = vsel %vm1594, %v293, %v629
      %v1609 = vsel %vm1594, %v294, %v631
      %v1610 = vsel %vm1594, %v295, %v633
      %v1611 = vsel %vm1594, %v296, %v635
      %v1612 = vsel %vm1594, %v297, %v637
      %v1613 = vsel %vm1594, %v298, %v639
      %v1614 = vsel %vm1594, %v299, %v641
      %v1615 = vsel %vm1594, %v300, %v643
      %v1616 = vsel %vm1594, %v301, %v645
      %v1617 = vsel %vm1594, %v302, %v647
      %v1618 = vsel %vm1594, %v303, %v649
      %v1619 = vsel %vm1594, %v304, %v651
      %v1620 = vsel %vm1594, %v305, %v653
      %v1621 = vsel %vm1594, %v306, %v655
      %v1622 = vsel %vm1594, %v307, %v657
      %v1623 = vsel %vm1594, %v308, %v659
      %v1624 = vsel %vm1594, %v309, %v661
      %v1625 = vsel %vm1594, %v310, %v663
      %v1626 = vsel %vm1594, %v311, %v665
      %vm1627 = vcmask 64512
      %v1628 = vsel %vm1627, %v1595, %v731
      %v1629 = vsel %vm1627, %v1596, %v733
      %v1630 = vsel %vm1627, %v1597, %v735
      %v1631 = vsel %vm1627, %v1598, %v737
      %v1632 = vsel %vm1627, %v1599, %v739
      %v1633 = vsel %vm1627, %v1600, %v741
      %v1634 = vsel %vm1627, %v1601, %v743
      %v1635 = vsel %vm1627, %v1602, %v745
      %v1636 = vsel %vm1627, %v1603, %v747
      %v1637 = vsel %vm1627, %v1604, %v749
      %v1638 = vsel %vm1627, %v1605, %v751
      %v1639 = vsel %vm1627, %v1606, %v753
      %v1640 = vsel %vm1627, %v1607, %v755
      %v1641 = vsel %vm1627, %v1608, %v757
      %v1642 = vsel %vm1627, %v1609, %v759
      %v1643 = vsel %vm1627, %v1610, %v761
      %v1644 = vsel %vm1627, %v1611, %v763
      %v1645 = vsel %vm1627, %v1612, %v765
      %v1646 = vsel %vm1627, %v1613, %v767
      %v1647 = vsel %vm1627, %v1614, %v769
      %v1648 = vsel %vm1627, %v1615, %v771
      %v1649 = vsel %vm1627, %v1616, %v773
      %v1650 = vsel %vm1627, %v1617, %v775
      %v1651 = vsel %vm1627, %v1618, %v777
      %v1652 = vsel %vm1627, %v1619, %v779
      %v1653 = vsel %vm1627, %v1620, %v781
      %v1654 = vsel %vm1627, %v1621, %v783
      %v1655 = vsel %vm1627, %v1622, %v785
      %v1656 = vsel %vm1627, %v1623, %v787
      %v1657 = vsel %vm1627, %v1624, %v789
      %v1658 = vsel %vm1627, %v1625, %v791
      %v1659 = vsel %vm1627, %v1626, %v793
      %vm1660 = vcmask 97280
      %v1661 = vsel %vm1660, %v1628, %v859
      %v1662 = vsel %vm1660, %v1629, %v861
      %v1663 = vsel %vm1660, %v1630, %v863
      %v1664 = vsel %vm1660, %v1631, %v865
      %v1665 = vsel %vm1660, %v1632, %v867
      %v1666 = vsel %vm1660, %v1633, %v869
      %v1667 = vsel %vm1660, %v1634, %v871
      %v1668 = vsel %vm1660, %v1635, %v873
      %v1669 = vsel %vm1660, %v1636, %v875
      %v1670 = vsel %vm1660, %v1637, %v877
      %v1671 = vsel %vm1660, %v1638, %v879
      %v1672 = vsel %vm1660, %v1639, %v881
      %v1673 = vsel %vm1660, %v1640, %v883
      %v1674 = vsel %vm1660, %v1641, %v885
      %v1675 = vsel %vm1660, %v1642, %v887
      %v1676 = vsel %vm1660, %v1643, %v889
      %v1677 = vsel %vm1660, %v1644, %v891
      %v1678 = vsel %vm1660, %v1645, %v893
      %v1679 = vsel %vm1660, %v1646, %v895
      %v1680 = vsel %vm1660, %v1647, %v897
      %v1681 = vsel %vm1660, %v1648, %v899
      %v1682 = vsel %vm1660, %v1649, %v901
      %v1683 = vsel %vm1660, %v1650, %v903
      %v1684 = vsel %vm1660, %v1651, %v905
      %v1685 = vsel %vm1660, %v1652, %v907
      %v1686 = vsel %vm1660, %v1653, %v909
      %v1687 = vsel %vm1660, %v1654, %v911
      %v1688 = vsel %vm1660, %v1655, %v913
      %v1689 = vsel %vm1660, %v1656, %v915
      %v1690 = vsel %vm1660, %v1657, %v917
      %v1691 = vsel %vm1660, %v1658, %v919
      %v1692 = vsel %vm1660, %v1659, %v921
      %vm1693 = vcmask 130048
      %v1694 = vsel %vm1693, %v1661, %v987
      %v1695 = vsel %vm1693, %v1662, %v989
      %v1696 = vsel %vm1693, %v1663, %v991
      %v1697 = vsel %vm1693, %v1664, %v993
      %v1698 = vsel %vm1693, %v1665, %v995
      %v1699 = vsel %vm1693, %v1666, %v997
      %v1700 = vsel %vm1693, %v1667, %v999
      %v1701 = vsel %vm1693, %v1668, %v1001
      %v1702 = vsel %vm1693, %v1669, %v1003
      %v1703 = vsel %vm1693, %v1670, %v1005
      %v1704 = vsel %vm1693, %v1671, %v1007
      %v1705 = vsel %vm1693, %v1672, %v1009
      %v1706 = vsel %vm1693, %v1673, %v1011
      %v1707 = vsel %vm1693, %v1674, %v1013
      %v1708 = vsel %vm1693, %v1675, %v1015
      %v1709 = vsel %vm1693, %v1676, %v1017
      %v1710 = vsel %vm1693, %v1677, %v1019
      %v1711 = vsel %vm1693, %v1678, %v1021
      %v1712 = vsel %vm1693, %v1679, %v1023
      %v1713 = vsel %vm1693, %v1680, %v1025
      %v1714 = vsel %vm1693, %v1681, %v1027
      %v1715 = vsel %vm1693, %v1682, %v1029
      %v1716 = vsel %vm1693, %v1683, %v1031
      %v1717 = vsel %vm1693, %v1684, %v1033
      %v1718 = vsel %vm1693, %v1685, %v1035
      %v1719 = vsel %vm1693, %v1686, %v1037
      %v1720 = vsel %vm1693, %v1687, %v1039
      %v1721 = vsel %vm1693, %v1688, %v1041
      %v1722 = vsel %vm1693, %v1689, %v1043
      %v1723 = vsel %vm1693, %v1690, %v1045
      %v1724 = vsel %vm1693, %v1691, %v1047
      %v1725 = vsel %vm1693, %v1692, %v1049
      %vm1726 = vcmask 162816
      %v1727 = vsel %vm1726, %v1694, %v1115
      %v1728 = vsel %vm1726, %v1695, %v1117
      %v1729 = vsel %vm1726, %v1696, %v1119
      %v1730 = vsel %vm1726, %v1697, %v1121
      %v1731 = vsel %vm1726, %v1698, %v1123
      %v1732 = vsel %vm1726, %v1699, %v1125
      %v1733 = vsel %vm1726, %v1700, %v1127
      %v1734 = vsel %vm1726, %v1701, %v1129
      %v1735 = vsel %vm1726, %v1702, %v1131
      %v1736 = vsel %vm1726, %v1703, %v1133
      %v1737 = vsel %vm1726, %v1704, %v1135
      %v1738 = vsel %vm1726, %v1705, %v1137
      %v1739 = vsel %vm1726, %v1706, %v1139
      %v1740 = vsel %vm1726, %v1707, %v1141
      %v1741 = vsel %vm1726, %v1708, %v1143
      %v1742 = vsel %vm1726, %v1709, %v1145
      %v1743 = vsel %vm1726, %v1710, %v1147
      %v1744 = vsel %vm1726, %v1711, %v1149
      %v1745 = vsel %vm1726, %v1712, %v1151
      %v1746 = vsel %vm1726, %v1713, %v1153
      %v1747 = vsel %vm1726, %v1714, %v1155
      %v1748 = vsel %vm1726, %v1715, %v1157
      %v1749 = vsel %vm1726, %v1716, %v1159
      %v1750 = vsel %vm1726, %v1717, %v1161
      %v1751 = vsel %vm1726, %v1718, %v1163
      %v1752 = vsel %vm1726, %v1719, %v1165
      %v1753 = vsel %vm1726, %v1720, %v1167
      %v1754 = vsel %vm1726, %v1721, %v1169
      %v1755 = vsel %vm1726, %v1722, %v1171
      %v1756 = vsel %vm1726, %v1723, %v1173
      %v1757 = vsel %vm1726, %v1724, %v1175
      %v1758 = vsel %vm1726, %v1725, %v1177
      %vm1759 = vcmask 195584
      %v1760 = vsel %vm1759, %v1727, %v1243
      %v1761 = vsel %vm1759, %v1728, %v1245
      %v1762 = vsel %vm1759, %v1729, %v1247
      %v1763 = vsel %vm1759, %v1730, %v1249
      %v1764 = vsel %vm1759, %v1731, %v1251
      %v1765 = vsel %vm1759, %v1732, %v1253
      %v1766 = vsel %vm1759, %v1733, %v1255
      %v1767 = vsel %vm1759, %v1734, %v1257
      %v1768 = vsel %vm1759, %v1735, %v1259
      %v1769 = vsel %vm1759, %v1736, %v1261
      %v1770 = vsel %vm1759, %v1737, %v1263
      %v1771 = vsel %vm1759, %v1738, %v1265
      %v1772 = vsel %vm1759, %v1739, %v1267
      %v1773 = vsel %vm1759, %v1740, %v1269
      %v1774 = vsel %vm1759, %v1741, %v1271
      %v1775 = vsel %vm1759, %v1742, %v1273
      %v1776 = vsel %vm1759, %v1743, %v1275
      %v1777 = vsel %vm1759, %v1744, %v1277
      %v1778 = vsel %vm1759, %v1745, %v1279
      %v1779 = vsel %vm1759, %v1746, %v1281
      %v1780 = vsel %vm1759, %v1747, %v1283
      %v1781 = vsel %vm1759, %v1748, %v1285
      %v1782 = vsel %vm1759, %v1749, %v1287
      %v1783 = vsel %vm1759, %v1750, %v1289
      %v1784 = vsel %vm1759, %v1751, %v1291
      %v1785 = vsel %vm1759, %v1752, %v1293
      %v1786 = vsel %vm1759, %v1753, %v1295
      %v1787 = vsel %vm1759, %v1754, %v1297
      %v1788 = vsel %vm1759, %v1755, %v1299
      %v1789 = vsel %vm1759, %v1756, %v1301
      %v1790 = vsel %vm1759, %v1757, %v1303
      %v1791 = vsel %vm1759, %v1758, %v1305
      %vm1792 = vcmask 228352
      %v1793 = vsel %vm1792, %v1760, %v1371
      %v1794 = vsel %vm1792, %v1761, %v1373
      %v1795 = vsel %vm1792, %v1762, %v1375
      %v1796 = vsel %vm1792, %v1763, %v1377
      %v1797 = vsel %vm1792, %v1764, %v1379
      %v1798 = vsel %vm1792, %v1765, %v1381
      %v1799 = vsel %vm1792, %v1766, %v1383
      %v1800 = vsel %vm1792, %v1767, %v1385
      %v1801 = vsel %vm1792, %v1768, %v1387
      %v1802 = vsel %vm1792, %v1769, %v1389
      %v1803 = vsel %vm1792, %v1770, %v1391
      %v1804 = vsel %vm1792, %v1771, %v1393
      %v1805 = vsel %vm1792, %v1772, %v1395
      %v1806 = vsel %vm1792, %v1773, %v1397
      %v1807 = vsel %vm1792, %v1774, %v1399
      %v1808 = vsel %vm1792, %v1775, %v1401
      %v1809 = vsel %vm1792, %v1776, %v1403
      %v1810 = vsel %vm1792, %v1777, %v1405
      %v1811 = vsel %vm1792, %v1778, %v1407
      %v1812 = vsel %vm1792, %v1779, %v1409
      %v1813 = vsel %vm1792, %v1780, %v1411
      %v1814 = vsel %vm1792, %v1781, %v1413
      %v1815 = vsel %vm1792, %v1782, %v1415
      %v1816 = vsel %vm1792, %v1783, %v1417
      %v1817 = vsel %vm1792, %v1784, %v1419
      %v1818 = vsel %vm1792, %v1785, %v1421
      %v1819 = vsel %vm1792, %v1786, %v1423
      %v1820 = vsel %vm1792, %v1787, %v1425
      %v1821 = vsel %vm1792, %v1788, %v1427
      %v1822 = vsel %vm1792, %v1789, %v1429
      %v1823 = vsel %vm1792, %v1790, %v1431
      %v1824 = vsel %vm1792, %v1791, %v1433
      %vm1825 = vcmask 261120
      %v1826 = vsel %vm1825, %v1793, %v1499
      %v1827 = vsel %vm1825, %v1794, %v1501
      %v1828 = vsel %vm1825, %v1795, %v1503
      %v1829 = vsel %vm1825, %v1796, %v1505
      %v1830 = vsel %vm1825, %v1797, %v1507
      %v1831 = vsel %vm1825, %v1798, %v1509
      %v1832 = vsel %vm1825, %v1799, %v1511
      %v1833 = vsel %vm1825, %v1800, %v1513
      %v1834 = vsel %vm1825, %v1801, %v1515
      %v1835 = vsel %vm1825, %v1802, %v1517
      %v1836 = vsel %vm1825, %v1803, %v1519
      %v1837 = vsel %vm1825, %v1804, %v1521
      %v1838 = vsel %vm1825, %v1805, %v1523
      %v1839 = vsel %vm1825, %v1806, %v1525
      %v1840 = vsel %vm1825, %v1807, %v1527
      %v1841 = vsel %vm1825, %v1808, %v1529
      %v1842 = vsel %vm1825, %v1809, %v1531
      %v1843 = vsel %vm1825, %v1810, %v1533
      %v1844 = vsel %vm1825, %v1811, %v1535
      %v1845 = vsel %vm1825, %v1812, %v1537
      %v1846 = vsel %vm1825, %v1813, %v1539
      %v1847 = vsel %vm1825, %v1814, %v1541
      %v1848 = vsel %vm1825, %v1815, %v1543
      %v1849 = vsel %vm1825, %v1816, %v1545
      %v1850 = vsel %vm1825, %v1817, %v1547
      %v1851 = vsel %vm1825, %v1818, %v1549
      %v1852 = vsel %vm1825, %v1819, %v1551
      %v1853 = vsel %vm1825, %v1820, %v1553
      %v1854 = vsel %vm1825, %v1821, %v1555
      %v1855 = vsel %vm1825, %v1822, %v1557
      %v1856 = vsel %vm1825, %v1823, %v1559
      %v1857 = vsel %vm1825, %v1824, %v1561
      %v1858 = vpack.c.bf16 %v1827, %v1826
      %v1859 = vpack.c.bf16 %v1829, %v1828
      %v1860 = vpack.c.bf16 %v1831, %v1830
      %v1861 = vpack.c.bf16 %v1833, %v1832
      %v1862 = vpack.c.bf16 %v1835, %v1834
      %v1863 = vpack.c.bf16 %v1837, %v1836
      %v1864 = vpack.c.bf16 %v1839, %v1838
      %v1865 = vpack.c.bf16 %v1841, %v1840
      %v1866 = vpack.c.bf16 %v1843, %v1842
      %v1867 = vpack.c.bf16 %v1845, %v1844
      %v1868 = vpack.c.bf16 %v1847, %v1846
      %v1869 = vpack.c.bf16 %v1849, %v1848
      %v1870 = vpack.c.bf16 %v1851, %v1850
      %v1871 = vpack.c.bf16 %v1853, %v1852
      %v1872 = vpack.c.bf16 %v1855, %v1854
      %v1873 = vpack.c.bf16 %v1857, %v1856
      %v1874 = vld [vmem:[%s1] sm:$0xf]
      %v1875 = vld [vmem:[%s1 + $0x4] sm:$0xf]
      %v1876 = vld [vmem:[%s1 + $0x8] sm:$0xf]
      %v1877 = vld [vmem:[%s1 + $0xc] sm:$0xf]
      %v1878 = vld [vmem:[%s1 + $0x10] sm:$0x3]
      %v1884 = vunpack.c.l.b16 %v1874
      %v1885 = vunpack.c.l.b16 %v1875
      %v1886 = vunpack.c.l.b16 %v1876
      %v1887 = vunpack.c.l.b16 %v1877
      %v1888 = vunpack.c.l.b16 %v1878
      %v1889 = vpack.c.b16 %v1885, %v1884
      %v1890 = vpack.c.b16 %v1887, %v1886
      %v1891 = vpack.c.b16 %v1888, %v1888
      %vm1894 = vcmask 293888
      %v1896 = vsel %vm1894, %v1858, 0
      %v1899 = vsel %vm1894, %v1859, 0
      %v1902 = vsel %vm1894, %v1860, 0
      %v1905 = vsel %vm1894, %v1861, 0
      %v1908 = vsel %vm1894, %v1862, 0
      %v1911 = vsel %vm1894, %v1863, 0
      %v1914 = vsel %vm1894, %v1864, 0
      %v1917 = vsel %vm1894, %v1865, 0
      %v1920 = vsel %vm1894, %v1866, 0
      %v1923 = vsel %vm1894, %v1867, 0
      %v1926 = vsel %vm1894, %v1868, 0
      %v1929 = vsel %vm1894, %v1869, 0
      %v1932 = vsel %vm1894, %v1870, 0
      %v1935 = vsel %vm1894, %v1871, 0
      %v1938 = vsel %vm1894, %v1872, 0
      %v1941 = vsel %vm1894, %v1873, 0
      %vm1943 = vcmask 1041408
      %v1945 = vsel %vm1943, %v1891, 0
      %1947 = vmatprep.subr.bf16.mxu0 0
      %1948 = vmatpush1.bf16.msra.mxu0 %v1889
      %1949 = vmatprep.subr.bf16.mxu0 0
      %1950 = vmatpush1.bf16.msra.mxu0 %v1890
      %1951 = vmatprep.subr.bf16.mxu0 0
      %1952 = vmatpush1.bf16.msra.mxu0 %v1945
      %1953 = vmatprep.subr.bf16.mxu0 0
      %1954 = vmatpush1.bf16.msra.mxu0 0
      %1955 = vmatprep.subr.bf16.mxu0 0
      %1956 = vmatpush1.bf16.msra.mxu0 0
      %1957 = vmatprep.subr.bf16.mxu0 0
      %1958 = vmatpush1.bf16.msra.mxu0 0
      %1959 = vmatprep.subr.bf16.mxu0 0
      %1960 = vmatpush1.bf16.msra.mxu0 0
      %1961 = vmatprep.subr.bf16.mxu0 0
      %1962 = vmatpush1.bf16.msra.mxu0 0
      %1963 = vmatprep.subr.bf16.mxu0 0
      %1964 = vmatpush1.bf16.msra.mxu0 0
      %1965 = vmatprep.subr.bf16.mxu0 0
      %1966 = vmatpush1.bf16.msra.mxu0 0
      %1967 = vmatprep.subr.bf16.mxu0 0
      %1968 = vmatpush1.bf16.msra.mxu0 0
      %1969 = vmatprep.subr.bf16.mxu0 0
      %1970 = vmatpush1.bf16.msra.mxu0 0
      %1971 = vmatprep.subr.bf16.mxu0 0
      %1972 = vmatpush1.bf16.msra.mxu0 0
      %1973 = vmatprep.subr.bf16.mxu0 0
      %1974 = vmatpush1.bf16.msra.mxu0 0
      %1975 = vmatprep.subr.bf16.mxu0 0
      %1976 = vmatpush1.bf16.msra.mxu0 0
      %1977 = vmatprep.subr.bf16.mxu0 0
      %1978 = vmatpush1.bf16.msra.mxu0 0
      %1979 = vmatprep.mubr.bf16.mxu0 0
      %1980 = vmatmul.mubr.bf16.gmra.mrb[0].mxu0 %v1896
      %v1981 = vpop.f32.mrb[0].mxu0
      %v1982 = vadd.f32 0.0, %v1981
      %v1983 = vpop.f32.mrb[0].mxu0
      %v1984 = vpop.f32.mrb[0].mxu0
      %v1985 = vadd.f32 0.0, %v1984
      %v1986 = vpop.f32.mrb[0].mxu0
      %1987 = vmatprep.mubr.bf16.mxu0 0
      %1988 = vmatmul.mubr.bf16.gmra.mrb[0].mxu0 %v1899
      %v1989 = vpop.f32.mrb[0].mxu0
      %v1990 = vadd.f32 0.0, %v1989
      %v1991 = vpop.f32.mrb[0].mxu0
      %v1992 = vpop.f32.mrb[0].mxu0
      %v1993 = vadd.f32 0.0, %v1992
      %v1994 = vpop.f32.mrb[0].mxu0
      %1995 = vmatprep.mubr.bf16.mxu0 0
      %1996 = vmatmul.mubr.bf16.gmra.mrb[0].mxu0 %v1902
      %v1997 = vpop.f32.mrb[0].mxu0
      %v1998 = vadd.f32 0.0, %v1997
      %v1999 = vpop.f32.mrb[0].mxu0
      %v2000 = vpop.f32.mrb[0].mxu0
      %v2001 = vadd.f32 0.0, %v2000
      %v2002 = vpop.f32.mrb[0].mxu0
      %2003 = vmatprep.mubr.bf16.mxu0 0
      %2004 = vmatmul.mubr.bf16.gmra.mrb[0].mxu0 %v1905
      %v2005 = vpop.f32.mrb[0].mxu0
      %v2006 = vadd.f32 0.0, %v2005
      %v2007 = vpop.f32.mrb[0].mxu0
      %v2008 = vpop.f32.mrb[0].mxu0
      %v2009 = vadd.f32 0.0, %v2008
      %v2010 = vpop.f32.mrb[0].mxu0
      %2011 = vmatprep.mubr.bf16.mxu0 0
      %2012 = vmatmul.mubr.bf16.gmra.mrb[0].mxu0 %v1908
      %v2013 = vpop.f32.mrb[0].mxu0
      %v2014 = vadd.f32 0.0, %v2013
      %v2015 = vpop.f32.mrb[0].mxu0
      %v2016 = vpop.f32.mrb[0].mxu0
      %v2017 = vadd.f32 0.0, %v2016
      %v2018 = vpop.f32.mrb[0].mxu0
      %2019 = vmatprep.mubr.bf16.mxu0 0
      %2020 = vmatmul.mubr.bf16.gmra.mrb[0].mxu0 %v1911
      %v2021 = vpop.f32.mrb[0].mxu0
      %v2022 = vadd.f32 0.0, %v2021
      %v2023 = vpop.f32.mrb[0].mxu0
      %v2024 = vpop.f32.mrb[0].mxu0
      %v2025 = vadd.f32 0.0, %v2024
      %v2026 = vpop.f32.mrb[0].mxu0
      %2027 = vmatprep.mubr.bf16.mxu0 0
      %2028 = vmatmul.mubr.bf16.gmra.mrb[0].mxu0 %v1914
      %v2029 = vpop.f32.mrb[0].mxu0
      %v2030 = vadd.f32 0.0, %v2029
      %v2031 = vpop.f32.mrb[0].mxu0
      %v2032 = vpop.f32.mrb[0].mxu0
      %v2033 = vadd.f32 0.0, %v2032
      %v2034 = vpop.f32.mrb[0].mxu0
      %2035 = vmatprep.mubr.bf16.mxu0 0
      %2036 = vmatmul.mubr.bf16.gmra.mrb[0].mxu0 %v1917
      %v2037 = vpop.f32.mrb[0].mxu0
      %v2038 = vadd.f32 0.0, %v2037
      %v2039 = vpop.f32.mrb[0].mxu0
      %v2040 = vpop.f32.mrb[0].mxu0
      %v2041 = vadd.f32 0.0, %v2040
      %v2042 = vpop.f32.mrb[0].mxu0
      %2043 = vmatprep.mubr.bf16.mxu0 0
      %2044 = vmatmul.mubr.bf16.gmra.mrb[0].mxu0 %v1920
      %v2045 = vpop.f32.mrb[0].mxu0
      %v2046 = vadd.f32 0.0, %v2045
      %v2047 = vpop.f32.mrb[0].mxu0
      %v2048 = vpop.f32.mrb[0].mxu0
      %v2049 = vadd.f32 0.0, %v2048
      %v2050 = vpop.f32.mrb[0].mxu0
      %2051 = vmatprep.mubr.bf16.mxu0 0
      %2052 = vmatmul.mubr.bf16.gmra.mrb[0].mxu0 %v1923
      %v2053 = vpop.f32.mrb[0].mxu0
      %v2054 = vadd.f32 0.0, %v2053
      %v2055 = vpop.f32.mrb[0].mxu0
      %v2056 = vpop.f32.mrb[0].mxu0
      %v2057 = vadd.f32 0.0, %v2056
      %v2058 = vpop.f32.mrb[0].mxu0
      %2059 = vmatprep.mubr.bf16.mxu0 0
      %2060 = vmatmul.mubr.bf16.gmra.mrb[0].mxu0 %v1926
      %v2061 = vpop.f32.mrb[0].mxu0
      %v2062 = vadd.f32 0.0, %v2061
      %v2063 = vpop.f32.mrb[0].mxu0
      %v2064 = vpop.f32.mrb[0].mxu0
      %v2065 = vadd.f32 0.0, %v2064
      %v2066 = vpop.f32.mrb[0].mxu0
      %2067 = vmatprep.mubr.bf16.mxu0 0
      %2068 = vmatmul.mubr.bf16.gmra.mrb[0].mxu0 %v1929
      %v2069 = vpop.f32.mrb[0].mxu0
      %v2070 = vadd.f32 0.0, %v2069
      %v2071 = vpop.f32.mrb[0].mxu0
      %v2072 = vpop.f32.mrb[0].mxu0
      %v2073 = vadd.f32 0.0, %v2072
      %v2074 = vpop.f32.mrb[0].mxu0
      %2075 = vmatprep.mubr.bf16.mxu0 0
      %2076 = vmatmul.mubr.bf16.gmra.mrb[0].mxu0 %v1932
      %v2077 = vpop.f32.mrb[0].mxu0
      %v2078 = vadd.f32 0.0, %v2077
      %v2079 = vpop.f32.mrb[0].mxu0
      %v2080 = vpop.f32.mrb[0].mxu0
      %v2081 = vadd.f32 0.0, %v2080
      %v2082 = vpop.f32.mrb[0].mxu0
      %2083 = vmatprep.mubr.bf16.mxu0 0
      %2084 = vmatmul.mubr.bf16.gmra.mrb[0].mxu0 %v1935
      %v2085 = vpop.f32.mrb[0].mxu0
      %v2086 = vadd.f32 0.0, %v2085
      %v2087 = vpop.f32.mrb[0].mxu0
      %v2088 = vpop.f32.mrb[0].mxu0
      %v2089 = vadd.f32 0.0, %v2088
      %v2090 = vpop.f32.mrb[0].mxu0
      %2091 = vmatprep.mubr.bf16.mxu0 0
      %2092 = vmatmul.mubr.bf16.gmra.mrb[0].mxu0 %v1938
      %v2093 = vpop.f32.mrb[0].mxu0
      %v2094 = vadd.f32 0.0, %v2093
      %v2095 = vpop.f32.mrb[0].mxu0
      %v2096 = vpop.f32.mrb[0].mxu0
      %v2097 = vadd.f32 0.0, %v2096
      %v2098 = vpop.f32.mrb[0].mxu0
      %2099 = vmatprep.mubr.bf16.mxu0 0
      %2100 = vmatmul.mubr.bf16.gmra.mrb[0].mxu0 %v1941
      %v2101 = vpop.f32.mrb[0].mxu0
      %v2102 = vadd.f32 0.0, %v2101
      %v2103 = vpop.f32.mrb[0].mxu0
      %v2104 = vpop.f32.mrb[0].mxu0
      %v2105 = vadd.f32 0.0, %v2104
      %v2106 = vpop.f32.mrb[0].mxu0
      %2107 = vdwg.mxu0
      %v2108 = vld [vmem:[%s2] sm:$0x1]
      %v2110 = vlaneseq
      %v2111 = vshrl.u32 %v2110, 7
      %v2112 = vsub.s32 0, %v2111
      %v2113 = vrot.slane %v2108, %v2112
      %v2115 = vmul.f32 %v1982, %v2113
      %v2116 = vmul.f32 %v1985, %v2113
      %v2117 = vmul.f32 %v1990, %v2113
      %v2118 = vmul.f32 %v1993, %v2113
      %v2119 = vmul.f32 %v1998, %v2113
      %v2120 = vmul.f32 %v2001, %v2113
      %v2121 = vmul.f32 %v2006, %v2113
      %v2122 = vmul.f32 %v2009, %v2113
      %v2123 = vmul.f32 %v2014, %v2113
      %v2124 = vmul.f32 %v2017, %v2113
      %v2125 = vmul.f32 %v2022, %v2113
      %v2126 = vmul.f32 %v2025, %v2113
      %v2127 = vmul.f32 %v2030, %v2113
      %v2128 = vmul.f32 %v2033, %v2113
      %v2129 = vmul.f32 %v2038, %v2113
      %v2130 = vmul.f32 %v2041, %v2113
      %v2131 = vmul.f32 %v2046, %v2113
      %v2132 = vmul.f32 %v2049, %v2113
      %v2133 = vmul.f32 %v2054, %v2113
      %v2134 = vmul.f32 %v2057, %v2113
      %v2135 = vmul.f32 %v2062, %v2113
      %v2136 = vmul.f32 %v2065, %v2113
      %v2137 = vmul.f32 %v2070, %v2113
      %v2138 = vmul.f32 %v2073, %v2113
      %v2139 = vmul.f32 %v2078, %v2113
      %v2140 = vmul.f32 %v2081, %v2113
      %v2141 = vmul.f32 %v2086, %v2113
      %v2142 = vmul.f32 %v2089, %v2113
      %v2143 = vmul.f32 %v2094, %v2113
      %v2144 = vmul.f32 %v2097, %v2113
      %v2145 = vmul.f32 %v2102, %v2113
      %v2146 = vmul.f32 %v2105, %v2113
      %v2147 = vld [vmem:[%s3] sm:$0x1]
      %v2149 = vlaneseq
      %v2150 = vshrl.u32 %v2149, 7
      %v2151 = vsub.s32 0, %v2150
      %v2152 = vrot.slane %v2147, %v2151
      %v2154 = vadd.f32 %v2115, %v2152
      %v2155 = vadd.f32 %v2116, %v2152
      %v2156 = vadd.f32 %v2117, %v2152
      %v2157 = vadd.f32 %v2118, %v2152
      %v2158 = vadd.f32 %v2119, %v2152
      %v2159 = vadd.f32 %v2120, %v2152
      %v2160 = vadd.f32 %v2121, %v2152
      %v2161 = vadd.f32 %v2122, %v2152
      %v2162 = vadd.f32 %v2123, %v2152
      %v2163 = vadd.f32 %v2124, %v2152
      %v2164 = vadd.f32 %v2125, %v2152
      %v2165 = vadd.f32 %v2126, %v2152
      %v2166 = vadd.f32 %v2127, %v2152
      %v2167 = vadd.f32 %v2128, %v2152
      %v2168 = vadd.f32 %v2129, %v2152
      %v2169 = vadd.f32 %v2130, %v2152
      %v2170 = vadd.f32 %v2131, %v2152
      %v2171 = vadd.f32 %v2132, %v2152
      %v2172 = vadd.f32 %v2133, %v2152
      %v2173 = vadd.f32 %v2134, %v2152
      %v2174 = vadd.f32 %v2135, %v2152
      %v2175 = vadd.f32 %v2136, %v2152
      %v2176 = vadd.f32 %v2137, %v2152
      %v2177 = vadd.f32 %v2138, %v2152
      %v2178 = vadd.f32 %v2139, %v2152
      %v2179 = vadd.f32 %v2140, %v2152
      %v2180 = vadd.f32 %v2141, %v2152
      %v2181 = vadd.f32 %v2142, %v2152
      %v2182 = vadd.f32 %v2143, %v2152
      %v2183 = vadd.f32 %v2144, %v2152
      %v2184 = vadd.f32 %v2145, %v2152
      %v2185 = vadd.f32 %v2146, %v2152
      %v2186 = vmax.f32 %v2154, 0.0
      %v2187 = vmax.f32 %v2155, 0.0
      %v2188 = vmax.f32 %v2156, 0.0
      %v2189 = vmax.f32 %v2157, 0.0
      %v2190 = vmax.f32 %v2158, 0.0
      %v2191 = vmax.f32 %v2159, 0.0
      %v2192 = vmax.f32 %v2160, 0.0
      %v2193 = vmax.f32 %v2161, 0.0
      %v2194 = vmax.f32 %v2162, 0.0
      %v2195 = vmax.f32 %v2163, 0.0
      %v2196 = vmax.f32 %v2164, 0.0
      %v2197 = vmax.f32 %v2165, 0.0
      %v2198 = vmax.f32 %v2166, 0.0
      %v2199 = vmax.f32 %v2167, 0.0
      %v2200 = vmax.f32 %v2168, 0.0
      %v2201 = vmax.f32 %v2169, 0.0
      %v2202 = vmax.f32 %v2170, 0.0
      %v2203 = vmax.f32 %v2171, 0.0
      %v2204 = vmax.f32 %v2172, 0.0
      %v2205 = vmax.f32 %v2173, 0.0
      %v2206 = vmax.f32 %v2174, 0.0
      %v2207 = vmax.f32 %v2175, 0.0
      %v2208 = vmax.f32 %v2176, 0.0
      %v2209 = vmax.f32 %v2177, 0.0
      %v2210 = vmax.f32 %v2178, 0.0
      %v2211 = vmax.f32 %v2179, 0.0
      %v2212 = vmax.f32 %v2180, 0.0
      %v2213 = vmax.f32 %v2181, 0.0
      %v2214 = vmax.f32 %v2182, 0.0
      %v2215 = vmax.f32 %v2183, 0.0
      %v2216 = vmax.f32 %v2184, 0.0
      %v2217 = vmax.f32 %v2185, 0.0
      %2218 = vst.msk [vmem:[#allocation2] sm:$0xff] %vm1627, 0.0
      %2219 = vst.msk [vmem:[#allocation2 + $0x8] sm:$0xff] %vm1627, 0.0
      %vm2220 = vcmask 58368
      %2221 = vst.msk [vmem:[#allocation2 + $0x10] sm:$0x3] %vm2220, 0.0
      %2222 = vst.msk [vmem:[#allocation2 + $0x18] sm:$0xff] %vm1627, 0.0
      %2223 = vst.msk [vmem:[#allocation2 + $0x20] sm:$0xff] %vm1627, 0.0
      %2224 = vst.msk [vmem:[#allocation2 + $0x28] sm:$0x3] %vm2220, 0.0
      %2225 = vst.msk [vmem:[#allocation2 + $0x30] sm:$0xff] %vm1627, 0.0
      %2226 = vst.msk [vmem:[#allocation2 + $0x38] sm:$0xff] %vm1627, 0.0
      %2227 = vst.msk [vmem:[#allocation2 + $0x40] sm:$0x3] %vm2220, 0.0
      %2228 = vst.msk [vmem:[#allocation2 + $0x48] sm:$0xff] %vm1627, 0.0
      %2229 = vst.msk [vmem:[#allocation2 + $0x50] sm:$0xff] %vm1627, 0.0
      %2230 = vst.msk [vmem:[#allocation2 + $0x58] sm:$0x3] %vm2220, 0.0
      %2231 = vst.msk [vmem:[#allocation2 + $0x60] sm:$0xff] %vm1627, 0.0
      %2232 = vst.msk [vmem:[#allocation2 + $0x68] sm:$0xff] %vm1627, 0.0
      %2233 = vst.msk [vmem:[#allocation2 + $0x70] sm:$0x3] %vm2220, 0.0
      %2234 = vst.msk [vmem:[#allocation2 + $0x78] sm:$0xff] %vm1627, 0.0
      %2235 = vst.msk [vmem:[#allocation2 + $0x80] sm:$0xff] %vm1627, 0.0
      %2236 = vst.msk [vmem:[#allocation2 + $0x88] sm:$0x3] %vm2220, 0.0
      %2237 = vst.msk [vmem:[#allocation2 + $0x90] sm:$0xff] %vm1627, 0.0
      %2238 = vst.msk [vmem:[#allocation2 + $0x98] sm:$0xff] %vm1627, 0.0
      %2239 = vst.msk [vmem:[#allocation2 + $0xa0] sm:$0x3] %vm2220, 0.0
      %2240 = vst.msk [vmem:[#allocation2 + $0xa8] sm:$0xff] %vm1627, 0.0
      %2241 = vst.msk [vmem:[#allocation2 + $0xb0] sm:$0xff] %vm1627, 0.0
      %2242 = vst.msk [vmem:[#allocation2 + $0xb8] sm:$0x3] %vm2220, 0.0
      %2243 = vst.msk [vmem:[#allocation2 + $0xc0] sm:$0xff] %vm1627, 0.0
      %2244 = vst.msk [vmem:[#allocation2 + $0xc8] sm:$0xff] %vm1627, 0.0
      %2245 = vst.msk [vmem:[#allocation2 + $0xd0] sm:$0x3] %vm2220, 0.0
      %2246 = vst.msk [vmem:[#allocation2 + $0xd8] sm:$0xff] %vm1627, 0.0
      %2247 = vst.msk [vmem:[#allocation2 + $0xe0] sm:$0xff] %vm1627, 0.0
      %2248 = vst.msk [vmem:[#allocation2 + $0xe8] sm:$0x3] %vm2220, 0.0
      %2249 = vst.msk [vmem:[#allocation2 + $0xf0] sm:$0xff] %vm1627, 0.0
      %2250 = vst.msk [vmem:[#allocation2 + $0xf8] sm:$0xff] %vm1627, 0.0
      %2251 = vst.msk [vmem:[#allocation2 + $0x100] sm:$0x3] %vm2220, 0.0
      %2252 = vst.msk [vmem:[#allocation2 + $0x108] sm:$0xff] %vm1627, 0.0
      %2253 = vst.msk [vmem:[#allocation2 + $0x110] sm:$0xff] %vm1627, 0.0
      %2254 = vst.msk [vmem:[#allocation2 + $0x118] sm:$0x3] %vm2220, 0.0
      %2255 = vst.msk [vmem:[#allocation2 + $0x120] sm:$0xff] %vm1627, 0.0
      %2256 = vst.msk [vmem:[#allocation2 + $0x128] sm:$0xff] %vm1627, 0.0
      %2257 = vst.msk [vmem:[#allocation2 + $0x130] sm:$0x3] %vm2220, 0.0
      %2258 = vst.msk [vmem:[#allocation2 + $0x138] sm:$0xff] %vm1627, 0.0
      %2259 = vst.msk [vmem:[#allocation2 + $0x140] sm:$0xff] %vm1627, 0.0
      %2260 = vst.msk [vmem:[#allocation2 + $0x148] sm:$0x3] %vm2220, 0.0
      %2261 = vst.msk [vmem:[#allocation2 + $0x150] sm:$0xff] %vm1627, 0.0
      %2262 = vst.msk [vmem:[#allocation2 + $0x158] sm:$0xff] %vm1627, 0.0
      %2263 = vst.msk [vmem:[#allocation2 + $0x160] sm:$0x3] %vm2220, 0.0
      %2264 = vst.msk [vmem:[#allocation2 + $0x168] sm:$0xff] %vm1627, 0.0
      %2265 = vst.msk [vmem:[#allocation2 + $0x170] sm:$0xff] %vm1627, 0.0
      %2266 = vst.msk [vmem:[#allocation2 + $0x178] sm:$0x3] %vm2220, 0.0
      %2267 = vst.msk [vmem:[#allocation2 + $0x180] sm:$0xff] %vm1627, 0.0
      %2268 = vst.msk [vmem:[#allocation2 + $0x188] sm:$0xff] %vm1627, 0.0
      %2269 = vst.msk [vmem:[#allocation2 + $0x190] sm:$0x3] %vm2220, 0.0
      %2270 = vst.msk [vmem:[#allocation2 + $0x198] sm:$0xff] %vm1627, 0.0
      %2271 = vst.msk [vmem:[#allocation2 + $0x1a0] sm:$0xff] %vm1627, 0.0
      %2272 = vst.msk [vmem:[#allocation2 + $0x1a8] sm:$0x3] %vm2220, 0.0
      %s2273 = scalar_lea.vmem [#allocation2], 24
      %2274 = vst.msk [vmem:[%s2273 + $0x1] sm:$0xff] %vm1627, %v2186
      %2275 = vst.msk [vmem:[%s2273 + $0x9] sm:$0xff] %vm1627, %v2187
      %2276 = vst.msk [vmem:[%s2273 + $0x19] sm:$0xff] %vm1627, %v2188
      %2277 = vst.msk [vmem:[%s2273 + $0x21] sm:$0xff] %vm1627, %v2189
      %2278 = vst.msk [vmem:[%s2273 + $0x31] sm:$0xff] %vm1627, %v2190
      %2279 = vst.msk [vmem:[%s2273 + $0x39] sm:$0xff] %vm1627, %v2191
      %2280 = vst.msk [vmem:[%s2273 + $0x49] sm:$0xff] %vm1627, %v2192
      %2281 = vst.msk [vmem:[%s2273 + $0x51] sm:$0xff] %vm1627, %v2193
      %2282 = vst.msk [vmem:[%s2273 + $0x61] sm:$0xff] %vm1627, %v2194
      %2283 = vst.msk [vmem:[%s2273 + $0x69] sm:$0xff] %vm1627, %v2195
      %2284 = vst.msk [vmem:[%s2273 + $0x79] sm:$0xff] %vm1627, %v2196
      %2285 = vst.msk [vmem:[%s2273 + $0x81] sm:$0xff] %vm1627, %v2197
      %2286 = vst.msk [vmem:[%s2273 + $0x91] sm:$0xff] %vm1627, %v2198
      %2287 = vst.msk [vmem:[%s2273 + $0x99] sm:$0xff] %vm1627, %v2199
      %2288 = vst.msk [vmem:[%s2273 + $0xa9] sm:$0xff] %vm1627, %v2200
      %2289 = vst.msk [vmem:[%s2273 + $0xb1] sm:$0xff] %vm1627, %v2201
      %2290 = vst.msk [vmem:[%s2273 + $0xc1] sm:$0xff] %vm1627, %v2202
      %2291 = vst.msk [vmem:[%s2273 + $0xc9] sm:$0xff] %vm1627, %v2203
      %2292 = vst.msk [vmem:[%s2273 + $0xd9] sm:$0xff] %vm1627, %v2204
      %2293 = vst.msk [vmem:[%s2273 + $0xe1] sm:$0xff] %vm1627, %v2205
      %2294 = vst.msk [vmem:[%s2273 + $0xf1] sm:$0xff] %vm1627, %v2206
      %2295 = vst.msk [vmem:[%s2273 + $0xf9] sm:$0xff] %vm1627, %v2207
      %2296 = vst.msk [vmem:[%s2273 + $0x109] sm:$0xff] %vm1627, %v2208
      %2297 = vst.msk [vmem:[%s2273 + $0x111] sm:$0xff] %vm1627, %v2209
      %2298 = vst.msk [vmem:[%s2273 + $0x121] sm:$0xff] %vm1627, %v2210
      %2299 = vst.msk [vmem:[%s2273 + $0x129] sm:$0xff] %vm1627, %v2211
      %2300 = vst.msk [vmem:[%s2273 + $0x139] sm:$0xff] %vm1627, %v2212
      %2301 = vst.msk [vmem:[%s2273 + $0x141] sm:$0xff] %vm1627, %v2213
      %2302 = vst.msk [vmem:[%s2273 + $0x151] sm:$0xff] %vm1627, %v2214
      %2303 = vst.msk [vmem:[%s2273 + $0x159] sm:$0xff] %vm1627, %v2215
      %2304 = vst.msk [vmem:[%s2273 + $0x169] sm:$0xff] %vm1627, %v2216
      %2305 = vst.msk [vmem:[%s2273 + $0x171] sm:$0xff] %vm1627, %v2217
      %v2306 = vld [vmem:[#allocation2] sm:$0xff]
      %v2307 = vld [vmem:[#allocation2 + $0x8] sm:$0xff]
      %v2308 = vld [vmem:[#allocation2 + $0x18] sm:$0xff]
      %v2309 = vld [vmem:[#allocation2 + $0x20] sm:$0xff]
      %v2310 = vld [vmem:[#allocation2 + $0x30] sm:$0xff]
      %v2311 = vld [vmem:[#allocation2 + $0x38] sm:$0xff]
      %v2312 = vld [vmem:[#allocation2 + $0x48] sm:$0xff]
      %v2313 = vld [vmem:[#allocation2 + $0x50] sm:$0xff]
      %v2314 = vld [vmem:[#allocation2 + $0x60] sm:$0xff]
      %v2315 = vld [vmem:[#allocation2 + $0x68] sm:$0xff]
      %v2316 = vld [vmem:[#allocation2 + $0x78] sm:$0xff]
      %v2317 = vld [vmem:[#allocation2 + $0x80] sm:$0xff]
      %v2318 = vld [vmem:[#allocation2 + $0x90] sm:$0xff]
      %v2319 = vld [vmem:[#allocation2 + $0x98] sm:$0xff]
      %v2320 = vld [vmem:[#allocation2 + $0xa8] sm:$0xff]
      %v2321 = vld [vmem:[#allocation2 + $0xb0] sm:$0xff]
      %v2322 = vld [vmem:[#allocation2 + $0xc0] sm:$0xff]
      %v2323 = vld [vmem:[#allocation2 + $0xc8] sm:$0xff]
      %v2324 = vld [vmem:[#allocation2 + $0xd8] sm:$0xff]
      %v2325 = vld [vmem:[#allocation2 + $0xe0] sm:$0xff]
      %v2326 = vld [vmem:[#allocation2 + $0xf0] sm:$0xff]
      %v2327 = vld [vmem:[#allocation2 + $0xf8] sm:$0xff]
      %v2328 = vld [vmem:[#allocation2 + $0x108] sm:$0xff]
      %v2329 = vld [vmem:[#allocation2 + $0x110] sm:$0xff]
      %v2330 = vld [vmem:[#allocation2 + $0x120] sm:$0xff]
      %v2331 = vld [vmem:[#allocation2 + $0x128] sm:$0xff]
      %v2332 = vld [vmem:[#allocation2 + $0x138] sm:$0xff]
      %v2333 = vld [vmem:[#allocation2 + $0x140] sm:$0xff]
      %v2334 = vld [vmem:[#allocation2 + $0x150] sm:$0xff]
      %v2335 = vld [vmem:[#allocation2 + $0x158] sm:$0xff]
      %v2336 = vld [vmem:[#allocation2 + $0x168] sm:$0xff]
      %v2337 = vld [vmem:[#allocation2 + $0x170] sm:$0xff]
      %v2338 = vld [vmem:[#allocation2 + $0x1] sm:$0xff]
      %v2339 = vld [vmem:[#allocation2 + $0x9] sm:$0xff]
      %v2340 = vld [vmem:[#allocation2 + $0x19] sm:$0xff]
      %v2341 = vld [vmem:[#allocation2 + $0x21] sm:$0xff]
      %v2342 = vld [vmem:[#allocation2 + $0x31] sm:$0xff]
      %v2343 = vld [vmem:[#allocation2 + $0x39] sm:$0xff]
      %v2344 = vld [vmem:[#allocation2 + $0x49] sm:$0xff]
      %v2345 = vld [vmem:[#allocation2 + $0x51] sm:$0xff]
      %v2346 = vld [vmem:[#allocation2 + $0x61] sm:$0xff]
      %v2347 = vld [vmem:[#allocation2 + $0x69] sm:$0xff]
      %v2348 = vld [vmem:[#allocation2 + $0x79] sm:$0xff]
      %v2349 = vld [vmem:[#allocation2 + $0x81] sm:$0xff]
      %v2350 = vld [vmem:[#allocation2 + $0x91] sm:$0xff]
      %v2351 = vld [vmem:[#allocation2 + $0x99] sm:$0xff]
      %v2352 = vld [vmem:[#allocation2 + $0xa9] sm:$0xff]
      %v2353 = vld [vmem:[#allocation2 + $0xb1] sm:$0xff]
      %v2354 = vld [vmem:[#allocation2 + $0xc1] sm:$0xff]
      %v2355 = vld [vmem:[#allocation2 + $0xc9] sm:$0xff]
      %v2356 = vld [vmem:[#allocation2 + $0xd9] sm:$0xff]
      %v2357 = vld [vmem:[#allocation2 + $0xe1] sm:$0xff]
      %v2358 = vld [vmem:[#allocation2 + $0xf1] sm:$0xff]
      %v2359 = vld [vmem:[#allocation2 + $0xf9] sm:$0xff]
      %v2360 = vld [vmem:[#allocation2 + $0x109] sm:$0xff]
      %v2361 = vld [vmem:[#allocation2 + $0x111] sm:$0xff]
      %v2362 = vld [vmem:[#allocation2 + $0x121] sm:$0xff]
      %v2363 = vld [vmem:[#allocation2 + $0x129] sm:$0xff]
      %v2364 = vld [vmem:[#allocation2 + $0x139] sm:$0xff]
      %v2365 = vld [vmem:[#allocation2 + $0x141] sm:$0xff]
      %v2366 = vld [vmem:[#allocation2 + $0x151] sm:$0xff]
      %v2367 = vld [vmem:[#allocation2 + $0x159] sm:$0xff]
      %v2368 = vld [vmem:[#allocation2 + $0x169] sm:$0xff]
      %v2369 = vld [vmem:[#allocation2 + $0x171] sm:$0xff]
      %v2370 = vld [vmem:[#allocation2 + $0x2] sm:$0xff]
      %v2371 = vld [vmem:[#allocation2 + $0xa] sm:$0xff]
      %v2372 = vld [vmem:[#allocation2 + $0x1a] sm:$0xff]
      %v2373 = vld [vmem:[#allocation2 + $0x22] sm:$0xff]
      %v2374 = vld [vmem:[#allocation2 + $0x32] sm:$0xff]
      %v2375 = vld [vmem:[#allocation2 + $0x3a] sm:$0xff]
      %v2376 = vld [vmem:[#allocation2 + $0x4a] sm:$0xff]
      %v2377 = vld [vmem:[#allocation2 + $0x52] sm:$0xff]
      %v2378 = vld [vmem:[#allocation2 + $0x62] sm:$0xff]
      %v2379 = vld [vmem:[#allocation2 + $0x6a] sm:$0xff]
      %v2380 = vld [vmem:[#allocation2 + $0x7a] sm:$0xff]
      %v2381 = vld [vmem:[#allocation2 + $0x82] sm:$0xff]
      %v2382 = vld [vmem:[#allocation2 + $0x92] sm:$0xff]
      %v2383 = vld [vmem:[#allocation2 + $0x9a] sm:$0xff]
      %v2384 = vld [vmem:[#allocation2 + $0xaa] sm:$0xff]
      %v2385 = vld [vmem:[#allocation2 + $0xb2] sm:$0xff]
      %v2386 = vld [vmem:[#allocation2 + $0xc2] sm:$0xff]
      %v2387 = vld [vmem:[#allocation2 + $0xca] sm:$0xff]
      %v2388 = vld [vmem:[#allocation2 + $0xda] sm:$0xff]
      %v2389 = vld [vmem:[#allocation2 + $0xe2] sm:$0xff]
      %v2390 = vld [vmem:[#allocation2 + $0xf2] sm:$0xff]
      %v2391 = vld [vmem:[#allocation2 + $0xfa] sm:$0xff]
      %v2392 = vld [vmem:[#allocation2 + $0x10a] sm:$0xff]
      %v2393 = vld [vmem:[#allocation2 + $0x112] sm:$0xff]
      %v2394 = vld [vmem:[#allocation2 + $0x122] sm:$0xff]
      %v2395 = vld [vmem:[#allocation2 + $0x12a] sm:$0xff]
      %v2396 = vld [vmem:[#allocation2 + $0x13a] sm:$0xff]
      %v2397 = vld [vmem:[#allocation2 + $0x142] sm:$0xff]
      %v2398 = vld [vmem:[#allocation2 + $0x152] sm:$0xff]
      %v2399 = vld [vmem:[#allocation2 + $0x15a] sm:$0xff]
      %v2400 = vld [vmem:[#allocation2 + $0x16a] sm:$0xff]
      %v2401 = vld [vmem:[#allocation2 + $0x172] sm:$0xff]
      %v2402 = vld [vmem:[%s2273] sm:$0xff]
      %v2403 = vld [vmem:[%s2273 + $0x8] sm:$0xff]
      %v2404 = vld [vmem:[%s2273 + $0x18] sm:$0xff]
      %v2405 = vld [vmem:[%s2273 + $0x20] sm:$0xff]
      %v2406 = vld [vmem:[%s2273 + $0x30] sm:$0xff]
      %v2407 = vld [vmem:[%s2273 + $0x38] sm:$0xff]
      %v2408 = vld [vmem:[%s2273 + $0x48] sm:$0xff]
      %v2409 = vld [vmem:[%s2273 + $0x50] sm:$0xff]
      %v2410 = vld [vmem:[%s2273 + $0x60] sm:$0xff]
      %v2411 = vld [vmem:[%s2273 + $0x68] sm:$0xff]
      %v2412 = vld [vmem:[%s2273 + $0x78] sm:$0xff]
      %v2413 = vld [vmem:[%s2273 + $0x80] sm:$0xff]
      %v2414 = vld [vmem:[%s2273 + $0x90] sm:$0xff]
      %v2415 = vld [vmem:[%s2273 + $0x98] sm:$0xff]
      %v2416 = vld [vmem:[%s2273 + $0xa8] sm:$0xff]
      %v2417 = vld [vmem:[%s2273 + $0xb0] sm:$0xff]
      %v2418 = vld [vmem:[%s2273 + $0xc0] sm:$0xff]
      %v2419 = vld [vmem:[%s2273 + $0xc8] sm:$0xff]
      %v2420 = vld [vmem:[%s2273 + $0xd8] sm:$0xff]
      %v2421 = vld [vmem:[%s2273 + $0xe0] sm:$0xff]
      %v2422 = vld [vmem:[%s2273 + $0xf0] sm:$0xff]
      %v2423 = vld [vmem:[%s2273 + $0xf8] sm:$0xff]
      %v2424 = vld [vmem:[%s2273 + $0x108] sm:$0xff]
      %v2425 = vld [vmem:[%s2273 + $0x110] sm:$0xff]
      %v2426 = vld [vmem:[%s2273 + $0x120] sm:$0xff]
      %v2427 = vld [vmem:[%s2273 + $0x128] sm:$0xff]
      %v2428 = vld [vmem:[%s2273 + $0x138] sm:$0xff]
      %v2429 = vld [vmem:[%s2273 + $0x140] sm:$0xff]
      %v2430 = vld [vmem:[%s2273 + $0x150] sm:$0xff]
      %v2431 = vld [vmem:[%s2273 + $0x158] sm:$0xff]
      %v2432 = vld [vmem:[%s2273 + $0x168] sm:$0xff]
      %v2433 = vld [vmem:[%s2273 + $0x170] sm:$0xff]
      %v2434 = vld [vmem:[%s2273 + $0x1] sm:$0xff]
      %v2435 = vld [vmem:[%s2273 + $0x9] sm:$0xff]
      %v2436 = vld [vmem:[%s2273 + $0x19] sm:$0xff]
      %v2437 = vld [vmem:[%s2273 + $0x21] sm:$0xff]
      %v2438 = vld [vmem:[%s2273 + $0x31] sm:$0xff]
      %v2439 = vld [vmem:[%s2273 + $0x39] sm:$0xff]
      %v2440 = vld [vmem:[%s2273 + $0x49] sm:$0xff]
      %v2441 = vld [vmem:[%s2273 + $0x51] sm:$0xff]
      %v2442 = vld [vmem:[%s2273 + $0x61] sm:$0xff]
      %v2443 = vld [vmem:[%s2273 + $0x69] sm:$0xff]
      %v2444 = vld [vmem:[%s2273 + $0x79] sm:$0xff]
      %v2445 = vld [vmem:[%s2273 + $0x81] sm:$0xff]
      %v2446 = vld [vmem:[%s2273 + $0x91] sm:$0xff]
      %v2447 = vld [vmem:[%s2273 + $0x99] sm:$0xff]
      %v2448 = vld [vmem:[%s2273 + $0xa9] sm:$0xff]
      %v2449 = vld [vmem:[%s2273 + $0xb1] sm:$0xff]
      %v2450 = vld [vmem:[%s2273 + $0xc1] sm:$0xff]
      %v2451 = vld [vmem:[%s2273 + $0xc9] sm:$0xff]
      %v2452 = vld [vmem:[%s2273 + $0xd9] sm:$0xff]
      %v2453 = vld [vmem:[%s2273 + $0xe1] sm:$0xff]
      %v2454 = vld [vmem:[%s2273 + $0xf1] sm:$0xff]
      %v2455 = vld [vmem:[%s2273 + $0xf9] sm:$0xff]
      %v2456 = vld [vmem:[%s2273 + $0x109] sm:$0xff]
      %v2457 = vld [vmem:[%s2273 + $0x111] sm:$0xff]
      %v2458 = vld [vmem:[%s2273 + $0x121] sm:$0xff]
      %v2459 = vld [vmem:[%s2273 + $0x129] sm:$0xff]
      %v2460 = vld [vmem:[%s2273 + $0x139] sm:$0xff]
      %v2461 = vld [vmem:[%s2273 + $0x141] sm:$0xff]
      %v2462 = vld [vmem:[%s2273 + $0x151] sm:$0xff]
      %v2463 = vld [vmem:[%s2273 + $0x159] sm:$0xff]
      %v2464 = vld [vmem:[%s2273 + $0x169] sm:$0xff]
      %v2465 = vld [vmem:[%s2273 + $0x171] sm:$0xff]
      %v2466 = vld [vmem:[%s2273 + $0x2] sm:$0xff]
      %v2467 = vld [vmem:[%s2273 + $0xa] sm:$0xff]
      %v2468 = vld [vmem:[%s2273 + $0x1a] sm:$0xff]
      %v2469 = vld [vmem:[%s2273 + $0x22] sm:$0xff]
      %v2470 = vld [vmem:[%s2273 + $0x32] sm:$0xff]
      %v2471 = vld [vmem:[%s2273 + $0x3a] sm:$0xff]
      %v2472 = vld [vmem:[%s2273 + $0x4a] sm:$0xff]
      %v2473 = vld [vmem:[%s2273 + $0x52] sm:$0xff]
      %v2474 = vld [vmem:[%s2273 + $0x62] sm:$0xff]
      %v2475 = vld [vmem:[%s2273 + $0x6a] sm:$0xff]
      %v2476 = vld [vmem:[%s2273 + $0x7a] sm:$0xff]
      %v2477 = vld [vmem:[%s2273 + $0x82] sm:$0xff]
      %v2478 = vld [vmem:[%s2273 + $0x92] sm:$0xff]
      %v2479 = vld [vmem:[%s2273 + $0x9a] sm:$0xff]
      %v2480 = vld [vmem:[%s2273 + $0xaa] sm:$0xff]
      %v2481 = vld [vmem:[%s2273 + $0xb2] sm:$0xff]
      %v2482 = vld [vmem:[%s2273 + $0xc2] sm:$0xff]
      %v2483 = vld [vmem:[%s2273 + $0xca] sm:$0xff]
      %v2484 = vld [vmem:[%s2273 + $0xda] sm:$0xff]
      %v2485 = vld [vmem:[%s2273 + $0xe2] sm:$0xff]
      %v2486 = vld [vmem:[%s2273 + $0xf2] sm:$0xff]
      %v2487 = vld [vmem:[%s2273 + $0xfa] sm:$0xff]
      %v2488 = vld [vmem:[%s2273 + $0x10a] sm:$0xff]
      %v2489 = vld [vmem:[%s2273 + $0x112] sm:$0xff]
      %v2490 = vld [vmem:[%s2273 + $0x122] sm:$0xff]
      %v2491 = vld [vmem:[%s2273 + $0x12a] sm:$0xff]
      %v2492 = vld [vmem:[%s2273 + $0x13a] sm:$0xff]
      %v2493 = vld [vmem:[%s2273 + $0x142] sm:$0xff]
      %v2494 = vld [vmem:[%s2273 + $0x152] sm:$0xff]
      %v2495 = vld [vmem:[%s2273 + $0x15a] sm:$0xff]
      %v2496 = vld [vmem:[%s2273 + $0x16a] sm:$0xff]
      %v2497 = vld [vmem:[%s2273 + $0x172] sm:$0xff]
      %s2498 = scalar_lea.vmem [#allocation2], 48
      %v2499 = vld [vmem:[%s2498] sm:$0xff]
      %v2500 = vld [vmem:[%s2498 + $0x8] sm:$0xff]
      %v2501 = vld [vmem:[%s2498 + $0x18] sm:$0xff]
      %v2502 = vld [vmem:[%s2498 + $0x20] sm:$0xff]
      %v2503 = vld [vmem:[%s2498 + $0x30] sm:$0xff]
      %v2504 = vld [vmem:[%s2498 + $0x38] sm:$0xff]
      %v2505 = vld [vmem:[%s2498 + $0x48] sm:$0xff]
      %v2506 = vld [vmem:[%s2498 + $0x50] sm:$0xff]
      %v2507 = vld [vmem:[%s2498 + $0x60] sm:$0xff]
      %v2508 = vld [vmem:[%s2498 + $0x68] sm:$0xff]
      %v2509 = vld [vmem:[%s2498 + $0x78] sm:$0xff]
      %v2510 = vld [vmem:[%s2498 + $0x80] sm:$0xff]
      %v2511 = vld [vmem:[%s2498 + $0x90] sm:$0xff]
      %v2512 = vld [vmem:[%s2498 + $0x98] sm:$0xff]
      %v2513 = vld [vmem:[%s2498 + $0xa8] sm:$0xff]
      %v2514 = vld [vmem:[%s2498 + $0xb0] sm:$0xff]
      %v2515 = vld [vmem:[%s2498 + $0xc0] sm:$0xff]
      %v2516 = vld [vmem:[%s2498 + $0xc8] sm:$0xff]
      %v2517 = vld [vmem:[%s2498 + $0xd8] sm:$0xff]
      %v2518 = vld [vmem:[%s2498 + $0xe0] sm:$0xff]
      %v2519 = vld [vmem:[%s2498 + $0xf0] sm:$0xff]
      %v2520 = vld [vmem:[%s2498 + $0xf8] sm:$0xff]
      %v2521 = vld [vmem:[%s2498 + $0x108] sm:$0xff]
      %v2522 = vld [vmem:[%s2498 + $0x110] sm:$0xff]
      %v2523 = vld [vmem:[%s2498 + $0x120] sm:$0xff]
      %v2524 = vld [vmem:[%s2498 + $0x128] sm:$0xff]
      %v2525 = vld [vmem:[%s2498 + $0x138] sm:$0xff]
      %v2526 = vld [vmem:[%s2498 + $0x140] sm:$0xff]
      %v2527 = vld [vmem:[%s2498 + $0x150] sm:$0xff]
      %v2528 = vld [vmem:[%s2498 + $0x158] sm:$0xff]
      %v2529 = vld [vmem:[%s2498 + $0x168] sm:$0xff]
      %v2530 = vld [vmem:[%s2498 + $0x170] sm:$0xff]
      %v2531 = vld [vmem:[%s2498 + $0x1] sm:$0xff]
      %v2532 = vld [vmem:[%s2498 + $0x9] sm:$0xff]
      %v2533 = vld [vmem:[%s2498 + $0x19] sm:$0xff]
      %v2534 = vld [vmem:[%s2498 + $0x21] sm:$0xff]
      %v2535 = vld [vmem:[%s2498 + $0x31] sm:$0xff]
      %v2536 = vld [vmem:[%s2498 + $0x39] sm:$0xff]
      %v2537 = vld [vmem:[%s2498 + $0x49] sm:$0xff]
      %v2538 = vld [vmem:[%s2498 + $0x51] sm:$0xff]
      %v2539 = vld [vmem:[%s2498 + $0x61] sm:$0xff]
      %v2540 = vld [vmem:[%s2498 + $0x69] sm:$0xff]
      %v2541 = vld [vmem:[%s2498 + $0x79] sm:$0xff]
      %v2542 = vld [vmem:[%s2498 + $0x81] sm:$0xff]
      %v2543 = vld [vmem:[%s2498 + $0x91] sm:$0xff]
      %v2544 = vld [vmem:[%s2498 + $0x99] sm:$0xff]
      %v2545 = vld [vmem:[%s2498 + $0xa9] sm:$0xff]
      %v2546 = vld [vmem:[%s2498 + $0xb1] sm:$0xff]
      %v2547 = vld [vmem:[%s2498 + $0xc1] sm:$0xff]
      %v2548 = vld [vmem:[%s2498 + $0xc9] sm:$0xff]
      %v2549 = vld [vmem:[%s2498 + $0xd9] sm:$0xff]
      %v2550 = vld [vmem:[%s2498 + $0xe1] sm:$0xff]
      %v2551 = vld [vmem:[%s2498 + $0xf1] sm:$0xff]
      %v2552 = vld [vmem:[%s2498 + $0xf9] sm:$0xff]
      %v2553 = vld [vmem:[%s2498 + $0x109] sm:$0xff]
      %v2554 = vld [vmem:[%s2498 + $0x111] sm:$0xff]
      %v2555 = vld [vmem:[%s2498 + $0x121] sm:$0xff]
      %v2556 = vld [vmem:[%s2498 + $0x129] sm:$0xff]
      %v2557 = vld [vmem:[%s2498 + $0x139] sm:$0xff]
      %v2558 = vld [vmem:[%s2498 + $0x141] sm:$0xff]
      %v2559 = vld [vmem:[%s2498 + $0x151] sm:$0xff]
      %v2560 = vld [vmem:[%s2498 + $0x159] sm:$0xff]
      %v2561 = vld [vmem:[%s2498 + $0x169] sm:$0xff]
      %v2562 = vld [vmem:[%s2498 + $0x171] sm:$0xff]
      %v2563 = vld [vmem:[%s2498 + $0x2] sm:$0xff]
      %v2564 = vld [vmem:[%s2498 + $0xa] sm:$0xff]
      %v2565 = vld [vmem:[%s2498 + $0x1a] sm:$0xff]
      %v2566 = vld [vmem:[%s2498 + $0x22] sm:$0xff]
      %v2567 = vld [vmem:[%s2498 + $0x32] sm:$0xff]
      %v2568 = vld [vmem:[%s2498 + $0x3a] sm:$0xff]
      %v2569 = vld [vmem:[%s2498 + $0x4a] sm:$0xff]
      %v2570 = vld [vmem:[%s2498 + $0x52] sm:$0xff]
      %v2571 = vld [vmem:[%s2498 + $0x62] sm:$0xff]
      %v2572 = vld [vmem:[%s2498 + $0x6a] sm:$0xff]
      %v2573 = vld [vmem:[%s2498 + $0x7a] sm:$0xff]
      %v2574 = vld [vmem:[%s2498 + $0x82] sm:$0xff]
      %v2575 = vld [vmem:[%s2498 + $0x92] sm:$0xff]
      %v2576 = vld [vmem:[%s2498 + $0x9a] sm:$0xff]
      %v2577 = vld [vmem:[%s2498 + $0xaa] sm:$0xff]
      %v2578 = vld [vmem:[%s2498 + $0xb2] sm:$0xff]
      %v2579 = vld [vmem:[%s2498 + $0xc2] sm:$0xff]
      %v2580 = vld [vmem:[%s2498 + $0xca] sm:$0xff]
      %v2581 = vld [vmem:[%s2498 + $0xda] sm:$0xff]
      %v2582 = vld [vmem:[%s2498 + $0xe2] sm:$0xff]
      %v2583 = vld [vmem:[%s2498 + $0xf2] sm:$0xff]
      %v2584 = vld [vmem:[%s2498 + $0xfa] sm:$0xff]
      %v2585 = vld [vmem:[%s2498 + $0x10a] sm:$0xff]
      %v2586 = vld [vmem:[%s2498 + $0x112] sm:$0xff]
      %v2587 = vld [vmem:[%s2498 + $0x122] sm:$0xff]
      %v2588 = vld [vmem:[%s2498 + $0x12a] sm:$0xff]
      %v2589 = vld [vmem:[%s2498 + $0x13a] sm:$0xff]
      %v2590 = vld [vmem:[%s2498 + $0x142] sm:$0xff]
      %v2591 = vld [vmem:[%s2498 + $0x152] sm:$0xff]
      %v2592 = vld [vmem:[%s2498 + $0x15a] sm:$0xff]
      %v2593 = vld [vmem:[%s2498 + $0x16a] sm:$0xff]
      %v2594 = vld [vmem:[%s2498 + $0x172] sm:$0xff]
      %2627 = vrot.lane.b32.xlu0 %v2338, 8
      %v2628 = vpop.permute.xlu0 %2627
      %2629 = vrot.lane.b32.xlu0 %v2339, 8
      %v2630 = vpop.permute.xlu0 %2629
      %2631 = vrot.lane.b32.xlu0 %v2340, 8
      %v2632 = vpop.permute.xlu0 %2631
      %2633 = vrot.lane.b32.xlu0 %v2341, 8
      %v2634 = vpop.permute.xlu0 %2633
      %2635 = vrot.lane.b32.xlu0 %v2342, 8
      %v2636 = vpop.permute.xlu0 %2635
      %2637 = vrot.lane.b32.xlu0 %v2343, 8
      %v2638 = vpop.permute.xlu0 %2637
      %2639 = vrot.lane.b32.xlu0 %v2344, 8
      %v2640 = vpop.permute.xlu0 %2639
      %2641 = vrot.lane.b32.xlu0 %v2345, 8
      %v2642 = vpop.permute.xlu0 %2641
      %2643 = vrot.lane.b32.xlu0 %v2346, 8
      %v2644 = vpop.permute.xlu0 %2643
      %2645 = vrot.lane.b32.xlu0 %v2347, 8
      %v2646 = vpop.permute.xlu0 %2645
      %2647 = vrot.lane.b32.xlu0 %v2348, 8
      %v2648 = vpop.permute.xlu0 %2647
      %2649 = vrot.lane.b32.xlu0 %v2349, 8
      %v2650 = vpop.permute.xlu0 %2649
      %2651 = vrot.lane.b32.xlu0 %v2350, 8
      %v2652 = vpop.permute.xlu0 %2651
      %2653 = vrot.lane.b32.xlu0 %v2351, 8
      %v2654 = vpop.permute.xlu0 %2653
      %2655 = vrot.lane.b32.xlu0 %v2352, 8
      %v2656 = vpop.permute.xlu0 %2655
      %2657 = vrot.lane.b32.xlu0 %v2353, 8
      %v2658 = vpop.permute.xlu0 %2657
      %2659 = vrot.lane.b32.xlu0 %v2354, 8
      %v2660 = vpop.permute.xlu0 %2659
      %2661 = vrot.lane.b32.xlu0 %v2355, 8
      %v2662 = vpop.permute.xlu0 %2661
      %2663 = vrot.lane.b32.xlu0 %v2356, 8
      %v2664 = vpop.permute.xlu0 %2663
      %2665 = vrot.lane.b32.xlu0 %v2357, 8
      %v2666 = vpop.permute.xlu0 %2665
      %2667 = vrot.lane.b32.xlu0 %v2358, 8
      %v2668 = vpop.permute.xlu0 %2667
      %2669 = vrot.lane.b32.xlu0 %v2359, 8
      %v2670 = vpop.permute.xlu0 %2669
      %2671 = vrot.lane.b32.xlu0 %v2360, 8
      %v2672 = vpop.permute.xlu0 %2671
      %2673 = vrot.lane.b32.xlu0 %v2361, 8
      %v2674 = vpop.permute.xlu0 %2673
      %2675 = vrot.lane.b32.xlu0 %v2362, 8
      %v2676 = vpop.permute.xlu0 %2675
      %2677 = vrot.lane.b32.xlu0 %v2363, 8
      %v2678 = vpop.permute.xlu0 %2677
      %2679 = vrot.lane.b32.xlu0 %v2364, 8
      %v2680 = vpop.permute.xlu0 %2679
      %2681 = vrot.lane.b32.xlu0 %v2365, 8
      %v2682 = vpop.permute.xlu0 %2681
      %2683 = vrot.lane.b32.xlu0 %v2366, 8
      %v2684 = vpop.permute.xlu0 %2683
      %2685 = vrot.lane.b32.xlu0 %v2367, 8
      %v2686 = vpop.permute.xlu0 %2685
      %2687 = vrot.lane.b32.xlu0 %v2368, 8
      %v2688 = vpop.permute.xlu0 %2687
      %2689 = vrot.lane.b32.xlu0 %v2369, 8
      %v2690 = vpop.permute.xlu0 %2689
      %2755 = vrot.lane.b32.xlu0 %v2370, 16
      %v2756 = vpop.permute.xlu0 %2755
      %2757 = vrot.lane.b32.xlu0 %v2371, 16
      %v2758 = vpop.permute.xlu0 %2757
      %2759 = vrot.lane.b32.xlu0 %v2372, 16
      %v2760 = vpop.permute.xlu0 %2759
      %2761 = vrot.lane.b32.xlu0 %v2373, 16
      %v2762 = vpop.permute.xlu0 %2761
      %2763 = vrot.lane.b32.xlu0 %v2374, 16
      %v2764 = vpop.permute.xlu0 %2763
      %2765 = vrot.lane.b32.xlu0 %v2375, 16
      %v2766 = vpop.permute.xlu0 %2765
      %2767 = vrot.lane.b32.xlu0 %v2376, 16
      %v2768 = vpop.permute.xlu0 %2767
      %2769 = vrot.lane.b32.xlu0 %v2377, 16
      %v2770 = vpop.permute.xlu0 %2769
      %2771 = vrot.lane.b32.xlu0 %v2378, 16
      %v2772 = vpop.permute.xlu0 %2771
      %2773 = vrot.lane.b32.xlu0 %v2379, 16
      %v2774 = vpop.permute.xlu0 %2773
      %2775 = vrot.lane.b32.xlu0 %v2380, 16
      %v2776 = vpop.permute.xlu0 %2775
      %2777 = vrot.lane.b32.xlu0 %v2381, 16
      %v2778 = vpop.permute.xlu0 %2777
      %2779 = vrot.lane.b32.xlu0 %v2382, 16
      %v2780 = vpop.permute.xlu0 %2779
      %2781 = vrot.lane.b32.xlu0 %v2383, 16
      %v2782 = vpop.permute.xlu0 %2781
      %2783 = vrot.lane.b32.xlu0 %v2384, 16
      %v2784 = vpop.permute.xlu0 %2783
      %2785 = vrot.lane.b32.xlu0 %v2385, 16
      %v2786 = vpop.permute.xlu0 %2785
      %2787 = vrot.lane.b32.xlu0 %v2386, 16
      %v2788 = vpop.permute.xlu0 %2787
      %2789 = vrot.lane.b32.xlu0 %v2387, 16
      %v2790 = vpop.permute.xlu0 %2789
      %2791 = vrot.lane.b32.xlu0 %v2388, 16
      %v2792 = vpop.permute.xlu0 %2791
      %2793 = vrot.lane.b32.xlu0 %v2389, 16
      %v2794 = vpop.permute.xlu0 %2793
      %2795 = vrot.lane.b32.xlu0 %v2390, 16
      %v2796 = vpop.permute.xlu0 %2795
      %2797 = vrot.lane.b32.xlu0 %v2391, 16
      %v2798 = vpop.permute.xlu0 %2797
      %2799 = vrot.lane.b32.xlu0 %v2392, 16
      %v2800 = vpop.permute.xlu0 %2799
      %2801 = vrot.lane.b32.xlu0 %v2393, 16
      %v2802 = vpop.permute.xlu0 %2801
      %2803 = vrot.lane.b32.xlu0 %v2394, 16
      %v2804 = vpop.permute.xlu0 %2803
      %2805 = vrot.lane.b32.xlu0 %v2395, 16
      %v2806 = vpop.permute.xlu0 %2805
      %2807 = vrot.lane.b32.xlu0 %v2396, 16
      %v2808 = vpop.permute.xlu0 %2807
      %2809 = vrot.lane.b32.xlu0 %v2397, 16
      %v2810 = vpop.permute.xlu0 %2809
      %2811 = vrot.lane.b32.xlu0 %v2398, 16
      %v2812 = vpop.permute.xlu0 %2811
      %2813 = vrot.lane.b32.xlu0 %v2399, 16
      %v2814 = vpop.permute.xlu0 %2813
      %2815 = vrot.lane.b32.xlu0 %v2400, 16
      %v2816 = vpop.permute.xlu0 %2815
      %2817 = vrot.lane.b32.xlu0 %v2401, 16
      %v2818 = vpop.permute.xlu0 %2817
      %2883 = vrot.lane.b32.xlu0 %v2402, 24
      %v2884 = vpop.permute.xlu0 %2883
      %2885 = vrot.lane.b32.xlu0 %v2403, 24
      %v2886 = vpop.permute.xlu0 %2885
      %2887 = vrot.lane.b32.xlu0 %v2404, 24
      %v2888 = vpop.permute.xlu0 %2887
      %2889 = vrot.lane.b32.xlu0 %v2405, 24
      %v2890 = vpop.permute.xlu0 %2889
      %2891 = vrot.lane.b32.xlu0 %v2406, 24
      %v2892 = vpop.permute.xlu0 %2891
      %2893 = vrot.lane.b32.xlu0 %v2407, 24
      %v2894 = vpop.permute.xlu0 %2893
      %2895 = vrot.lane.b32.xlu0 %v2408, 24
      %v2896 = vpop.permute.xlu0 %2895
      %2897 = vrot.lane.b32.xlu0 %v2409, 24
      %v2898 = vpop.permute.xlu0 %2897
      %2899 = vrot.lane.b32.xlu0 %v2410, 24
      %v2900 = vpop.permute.xlu0 %2899
      %2901 = vrot.lane.b32.xlu0 %v2411, 24
      %v2902 = vpop.permute.xlu0 %2901
      %2903 = vrot.lane.b32.xlu0 %v2412, 24
      %v2904 = vpop.permute.xlu0 %2903
      %2905 = vrot.lane.b32.xlu0 %v2413, 24
      %v2906 = vpop.permute.xlu0 %2905
      %2907 = vrot.lane.b32.xlu0 %v2414, 24
      %v2908 = vpop.permute.xlu0 %2907
      %2909 = vrot.lane.b32.xlu0 %v2415, 24
      %v2910 = vpop.permute.xlu0 %2909
      %2911 = vrot.lane.b32.xlu0 %v2416, 24
      %v2912 = vpop.permute.xlu0 %2911
      %2913 = vrot.lane.b32.xlu0 %v2417, 24
      %v2914 = vpop.permute.xlu0 %2913
      %2915 = vrot.lane.b32.xlu0 %v2418, 24
      %v2916 = vpop.permute.xlu0 %2915
      %2917 = vrot.lane.b32.xlu0 %v2419, 24
      %v2918 = vpop.permute.xlu0 %2917
      %2919 = vrot.lane.b32.xlu0 %v2420, 24
      %v2920 = vpop.permute.xlu0 %2919
      %2921 = vrot.lane.b32.xlu0 %v2421, 24
      %v2922 = vpop.permute.xlu0 %2921
      %2923 = vrot.lane.b32.xlu0 %v2422, 24
      %v2924 = vpop.permute.xlu0 %2923
      %2925 = vrot.lane.b32.xlu0 %v2423, 24
      %v2926 = vpop.permute.xlu0 %2925
      %2927 = vrot.lane.b32.xlu0 %v2424, 24
      %v2928 = vpop.permute.xlu0 %2927
      %2929 = vrot.lane.b32.xlu0 %v2425, 24
      %v2930 = vpop.permute.xlu0 %2929
      %2931 = vrot.lane.b32.xlu0 %v2426, 24
      %v2932 = vpop.permute.xlu0 %2931
      %2933 = vrot.lane.b32.xlu0 %v2427, 24
      %v2934 = vpop.permute.xlu0 %2933
      %2935 = vrot.lane.b32.xlu0 %v2428, 24
      %v2936 = vpop.permute.xlu0 %2935
      %2937 = vrot.lane.b32.xlu0 %v2429, 24
      %v2938 = vpop.permute.xlu0 %2937
      %2939 = vrot.lane.b32.xlu0 %v2430, 24
      %v2940 = vpop.permute.xlu0 %2939
      %2941 = vrot.lane.b32.xlu0 %v2431, 24
      %v2942 = vpop.permute.xlu0 %2941
      %2943 = vrot.lane.b32.xlu0 %v2432, 24
      %v2944 = vpop.permute.xlu0 %2943
      %2945 = vrot.lane.b32.xlu0 %v2433, 24
      %v2946 = vpop.permute.xlu0 %2945
      %3011 = vrot.lane.b32.xlu0 %v2434, 32
      %v3012 = vpop.permute.xlu0 %3011
      %3013 = vrot.lane.b32.xlu0 %v2435, 32
      %v3014 = vpop.permute.xlu0 %3013
      %3015 = vrot.lane.b32.xlu0 %v2436, 32
      %v3016 = vpop.permute.xlu0 %3015
      %3017 = vrot.lane.b32.xlu0 %v2437, 32
      %v3018 = vpop.permute.xlu0 %3017
      %3019 = vrot.lane.b32.xlu0 %v2438, 32
      %v3020 = vpop.permute.xlu0 %3019
      %3021 = vrot.lane.b32.xlu0 %v2439, 32
      %v3022 = vpop.permute.xlu0 %3021
      %3023 = vrot.lane.b32.xlu0 %v2440, 32
      %v3024 = vpop.permute.xlu0 %3023
      %3025 = vrot.lane.b32.xlu0 %v2441, 32
      %v3026 = vpop.permute.xlu0 %3025
      %3027 = vrot.lane.b32.xlu0 %v2442, 32
      %v3028 = vpop.permute.xlu0 %3027
      %3029 = vrot.lane.b32.xlu0 %v2443, 32
      %v3030 = vpop.permute.xlu0 %3029
      %3031 = vrot.lane.b32.xlu0 %v2444, 32
      %v3032 = vpop.permute.xlu0 %3031
      %3033 = vrot.lane.b32.xlu0 %v2445, 32
      %v3034 = vpop.permute.xlu0 %3033
      %3035 = vrot.lane.b32.xlu0 %v2446, 32
      %v3036 = vpop.permute.xlu0 %3035
      %3037 = vrot.lane.b32.xlu0 %v2447, 32
      %v3038 = vpop.permute.xlu0 %3037
      %3039 = vrot.lane.b32.xlu0 %v2448, 32
      %v3040 = vpop.permute.xlu0 %3039
      %3041 = vrot.lane.b32.xlu0 %v2449, 32
      %v3042 = vpop.permute.xlu0 %3041
      %3043 = vrot.lane.b32.xlu0 %v2450, 32
      %v3044 = vpop.permute.xlu0 %3043
      %3045 = vrot.lane.b32.xlu0 %v2451, 32
      %v3046 = vpop.permute.xlu0 %3045
      %3047 = vrot.lane.b32.xlu0 %v2452, 32
      %v3048 = vpop.permute.xlu0 %3047
      %3049 = vrot.lane.b32.xlu0 %v2453, 32
      %v3050 = vpop.permute.xlu0 %3049
      %3051 = vrot.lane.b32.xlu0 %v2454, 32
      %v3052 = vpop.permute.xlu0 %3051
      %3053 = vrot.lane.b32.xlu0 %v2455, 32
      %v3054 = vpop.permute.xlu0 %3053
      %3055 = vrot.lane.b32.xlu0 %v2456, 32
      %v3056 = vpop.permute.xlu0 %3055
      %3057 = vrot.lane.b32.xlu0 %v2457, 32
      %v3058 = vpop.permute.xlu0 %3057
      %3059 = vrot.lane.b32.xlu0 %v2458, 32
      %v3060 = vpop.permute.xlu0 %3059
      %3061 = vrot.lane.b32.xlu0 %v2459, 32
      %v3062 = vpop.permute.xlu0 %3061
      %3063 = vrot.lane.b32.xlu0 %v2460, 32
      %v3064 = vpop.permute.xlu0 %3063
      %3065 = vrot.lane.b32.xlu0 %v2461, 32
      %v3066 = vpop.permute.xlu0 %3065
      %3067 = vrot.lane.b32.xlu0 %v2462, 32
      %v3068 = vpop.permute.xlu0 %3067
      %3069 = vrot.lane.b32.xlu0 %v2463, 32
      %v3070 = vpop.permute.xlu0 %3069
      %3071 = vrot.lane.b32.xlu0 %v2464, 32
      %v3072 = vpop.permute.xlu0 %3071
      %3073 = vrot.lane.b32.xlu0 %v2465, 32
      %v3074 = vpop.permute.xlu0 %3073
      %3139 = vrot.lane.b32.xlu0 %v2466, 40
      %v3140 = vpop.permute.xlu0 %3139
      %3141 = vrot.lane.b32.xlu0 %v2467, 40
      %v3142 = vpop.permute.xlu0 %3141
      %3143 = vrot.lane.b32.xlu0 %v2468, 40
      %v3144 = vpop.permute.xlu0 %3143
      %3145 = vrot.lane.b32.xlu0 %v2469, 40
      %v3146 = vpop.permute.xlu0 %3145
      %3147 = vrot.lane.b32.xlu0 %v2470, 40
      %v3148 = vpop.permute.xlu0 %3147
      %3149 = vrot.lane.b32.xlu0 %v2471, 40
      %v3150 = vpop.permute.xlu0 %3149
      %3151 = vrot.lane.b32.xlu0 %v2472, 40
      %v3152 = vpop.permute.xlu0 %3151
      %3153 = vrot.lane.b32.xlu0 %v2473, 40
      %v3154 = vpop.permute.xlu0 %3153
      %3155 = vrot.lane.b32.xlu0 %v2474, 40
      %v3156 = vpop.permute.xlu0 %3155
      %3157 = vrot.lane.b32.xlu0 %v2475, 40
      %v3158 = vpop.permute.xlu0 %3157
      %3159 = vrot.lane.b32.xlu0 %v2476, 40
      %v3160 = vpop.permute.xlu0 %3159
      %3161 = vrot.lane.b32.xlu0 %v2477, 40
      %v3162 = vpop.permute.xlu0 %3161
      %3163 = vrot.lane.b32.xlu0 %v2478, 40
      %v3164 = vpop.permute.xlu0 %3163
      %3165 = vrot.lane.b32.xlu0 %v2479, 40
      %v3166 = vpop.permute.xlu0 %3165
      %3167 = vrot.lane.b32.xlu0 %v2480, 40
      %v3168 = vpop.permute.xlu0 %3167
      %3169 = vrot.lane.b32.xlu0 %v2481, 40
      %v3170 = vpop.permute.xlu0 %3169
      %3171 = vrot.lane.b32.xlu0 %v2482, 40
      %v3172 = vpop.permute.xlu0 %3171
      %3173 = vrot.lane.b32.xlu0 %v2483, 40
      %v3174 = vpop.permute.xlu0 %3173
      %3175 = vrot.lane.b32.xlu0 %v2484, 40
      %v3176 = vpop.permute.xlu0 %3175
      %3177 = vrot.lane.b32.xlu0 %v2485, 40
      %v3178 = vpop.permute.xlu0 %3177
      %3179 = vrot.lane.b32.xlu0 %v2486, 40
      %v3180 = vpop.permute.xlu0 %3179
      %3181 = vrot.lane.b32.xlu0 %v2487, 40
      %v3182 = vpop.permute.xlu0 %3181
      %3183 = vrot.lane.b32.xlu0 %v2488, 40
      %v3184 = vpop.permute.xlu0 %3183
      %3185 = vrot.lane.b32.xlu0 %v2489, 40
      %v3186 = vpop.permute.xlu0 %3185
      %3187 = vrot.lane.b32.xlu0 %v2490, 40
      %v3188 = vpop.permute.xlu0 %3187
      %3189 = vrot.lane.b32.xlu0 %v2491, 40
      %v3190 = vpop.permute.xlu0 %3189
      %3191 = vrot.lane.b32.xlu0 %v2492, 40
      %v3192 = vpop.permute.xlu0 %3191
      %3193 = vrot.lane.b32.xlu0 %v2493, 40
      %v3194 = vpop.permute.xlu0 %3193
      %3195 = vrot.lane.b32.xlu0 %v2494, 40
      %v3196 = vpop.permute.xlu0 %3195
      %3197 = vrot.lane.b32.xlu0 %v2495, 40
      %v3198 = vpop.permute.xlu0 %3197
      %3199 = vrot.lane.b32.xlu0 %v2496, 40
      %v3200 = vpop.permute.xlu0 %3199
      %3201 = vrot.lane.b32.xlu0 %v2497, 40
      %v3202 = vpop.permute.xlu0 %3201
      %3267 = vrot.lane.b32.xlu0 %v2499, 48
      %v3268 = vpop.permute.xlu0 %3267
      %3269 = vrot.lane.b32.xlu0 %v2500, 48
      %v3270 = vpop.permute.xlu0 %3269
      %3271 = vrot.lane.b32.xlu0 %v2501, 48
      %v3272 = vpop.permute.xlu0 %3271
      %3273 = vrot.lane.b32.xlu0 %v2502, 48
      %v3274 = vpop.permute.xlu0 %3273
      %3275 = vrot.lane.b32.xlu0 %v2503, 48
      %v3276 = vpop.permute.xlu0 %3275
      %3277 = vrot.lane.b32.xlu0 %v2504, 48
      %v3278 = vpop.permute.xlu0 %3277
      %3279 = vrot.lane.b32.xlu0 %v2505, 48
      %v3280 = vpop.permute.xlu0 %3279
      %3281 = vrot.lane.b32.xlu0 %v2506, 48
      %v3282 = vpop.permute.xlu0 %3281
      %3283 = vrot.lane.b32.xlu0 %v2507, 48
      %v3284 = vpop.permute.xlu0 %3283
      %3285 = vrot.lane.b32.xlu0 %v2508, 48
      %v3286 = vpop.permute.xlu0 %3285
      %3287 = vrot.lane.b32.xlu0 %v2509, 48
      %v3288 = vpop.permute.xlu0 %3287
      %3289 = vrot.lane.b32.xlu0 %v2510, 48
      %v3290 = vpop.permute.xlu0 %3289
      %3291 = vrot.lane.b32.xlu0 %v2511, 48
      %v3292 = vpop.permute.xlu0 %3291
      %3293 = vrot.lane.b32.xlu0 %v2512, 48
      %v3294 = vpop.permute.xlu0 %3293
      %3295 = vrot.lane.b32.xlu0 %v2513, 48
      %v3296 = vpop.permute.xlu0 %3295
      %3297 = vrot.lane.b32.xlu0 %v2514, 48
      %v3298 = vpop.permute.xlu0 %3297
      %3299 = vrot.lane.b32.xlu0 %v2515, 48
      %v3300 = vpop.permute.xlu0 %3299
      %3301 = vrot.lane.b32.xlu0 %v2516, 48
      %v3302 = vpop.permute.xlu0 %3301
      %3303 = vrot.lane.b32.xlu0 %v2517, 48
      %v3304 = vpop.permute.xlu0 %3303
      %3305 = vrot.lane.b32.xlu0 %v2518, 48
      %v3306 = vpop.permute.xlu0 %3305
      %3307 = vrot.lane.b32.xlu0 %v2519, 48
      %v3308 = vpop.permute.xlu0 %3307
      %3309 = vrot.lane.b32.xlu0 %v2520, 48
      %v3310 = vpop.permute.xlu0 %3309
      %3311 = vrot.lane.b32.xlu0 %v2521, 48
      %v3312 = vpop.permute.xlu0 %3311
      %3313 = vrot.lane.b32.xlu0 %v2522, 48
      %v3314 = vpop.permute.xlu0 %3313
      %3315 = vrot.lane.b32.xlu0 %v2523, 48
      %v3316 = vpop.permute.xlu0 %3315
      %3317 = vrot.lane.b32.xlu0 %v2524, 48
      %v3318 = vpop.permute.xlu0 %3317
      %3319 = vrot.lane.b32.xlu0 %v2525, 48
      %v3320 = vpop.permute.xlu0 %3319
      %3321 = vrot.lane.b32.xlu0 %v2526, 48
      %v3322 = vpop.permute.xlu0 %3321
      %3323 = vrot.lane.b32.xlu0 %v2527, 48
      %v3324 = vpop.permute.xlu0 %3323
      %3325 = vrot.lane.b32.xlu0 %v2528, 48
      %v3326 = vpop.permute.xlu0 %3325
      %3327 = vrot.lane.b32.xlu0 %v2529, 48
      %v3328 = vpop.permute.xlu0 %3327
      %3329 = vrot.lane.b32.xlu0 %v2530, 48
      %v3330 = vpop.permute.xlu0 %3329
      %3395 = vrot.lane.b32.xlu0 %v2531, 56
      %v3396 = vpop.permute.xlu0 %3395
      %3397 = vrot.lane.b32.xlu0 %v2532, 56
      %v3398 = vpop.permute.xlu0 %3397
      %3399 = vrot.lane.b32.xlu0 %v2533, 56
      %v3400 = vpop.permute.xlu0 %3399
      %3401 = vrot.lane.b32.xlu0 %v2534, 56
      %v3402 = vpop.permute.xlu0 %3401
      %3403 = vrot.lane.b32.xlu0 %v2535, 56
      %v3404 = vpop.permute.xlu0 %3403
      %3405 = vrot.lane.b32.xlu0 %v2536, 56
      %v3406 = vpop.permute.xlu0 %3405
      %3407 = vrot.lane.b32.xlu0 %v2537, 56
      %v3408 = vpop.permute.xlu0 %3407
      %3409 = vrot.lane.b32.xlu0 %v2538, 56
      %v3410 = vpop.permute.xlu0 %3409
      %3411 = vrot.lane.b32.xlu0 %v2539, 56
      %v3412 = vpop.permute.xlu0 %3411
      %3413 = vrot.lane.b32.xlu0 %v2540, 56
      %v3414 = vpop.permute.xlu0 %3413
      %3415 = vrot.lane.b32.xlu0 %v2541, 56
      %v3416 = vpop.permute.xlu0 %3415
      %3417 = vrot.lane.b32.xlu0 %v2542, 56
      %v3418 = vpop.permute.xlu0 %3417
      %3419 = vrot.lane.b32.xlu0 %v2543, 56
      %v3420 = vpop.permute.xlu0 %3419
      %3421 = vrot.lane.b32.xlu0 %v2544, 56
      %v3422 = vpop.permute.xlu0 %3421
      %3423 = vrot.lane.b32.xlu0 %v2545, 56
      %v3424 = vpop.permute.xlu0 %3423
      %3425 = vrot.lane.b32.xlu0 %v2546, 56
      %v3426 = vpop.permute.xlu0 %3425
      %3427 = vrot.lane.b32.xlu0 %v2547, 56
      %v3428 = vpop.permute.xlu0 %3427
      %3429 = vrot.lane.b32.xlu0 %v2548, 56
      %v3430 = vpop.permute.xlu0 %3429
      %3431 = vrot.lane.b32.xlu0 %v2549, 56
      %v3432 = vpop.permute.xlu0 %3431
      %3433 = vrot.lane.b32.xlu0 %v2550, 56
      %v3434 = vpop.permute.xlu0 %3433
      %3435 = vrot.lane.b32.xlu0 %v2551, 56
      %v3436 = vpop.permute.xlu0 %3435
      %3437 = vrot.lane.b32.xlu0 %v2552, 56
      %v3438 = vpop.permute.xlu0 %3437
      %3439 = vrot.lane.b32.xlu0 %v2553, 56
      %v3440 = vpop.permute.xlu0 %3439
      %3441 = vrot.lane.b32.xlu0 %v2554, 56
      %v3442 = vpop.permute.xlu0 %3441
      %3443 = vrot.lane.b32.xlu0 %v2555, 56
      %v3444 = vpop.permute.xlu0 %3443
      %3445 = vrot.lane.b32.xlu0 %v2556, 56
      %v3446 = vpop.permute.xlu0 %3445
      %3447 = vrot.lane.b32.xlu0 %v2557, 56
      %v3448 = vpop.permute.xlu0 %3447
      %3449 = vrot.lane.b32.xlu0 %v2558, 56
      %v3450 = vpop.permute.xlu0 %3449
      %3451 = vrot.lane.b32.xlu0 %v2559, 56
      %v3452 = vpop.permute.xlu0 %3451
      %3453 = vrot.lane.b32.xlu0 %v2560, 56
      %v3454 = vpop.permute.xlu0 %3453
      %3455 = vrot.lane.b32.xlu0 %v2561, 56
      %v3456 = vpop.permute.xlu0 %3455
      %3457 = vrot.lane.b32.xlu0 %v2562, 56
      %v3458 = vpop.permute.xlu0 %3457
      %3523 = vrot.lane.b32.xlu0 %v2563, 64
      %v3524 = vpop.permute.xlu0 %3523
      %3525 = vrot.lane.b32.xlu0 %v2564, 64
      %v3526 = vpop.permute.xlu0 %3525
      %3527 = vrot.lane.b32.xlu0 %v2565, 64
      %v3528 = vpop.permute.xlu0 %3527
      %3529 = vrot.lane.b32.xlu0 %v2566, 64
      %v3530 = vpop.permute.xlu0 %3529
      %3531 = vrot.lane.b32.xlu0 %v2567, 64
      %v3532 = vpop.permute.xlu0 %3531
      %3533 = vrot.lane.b32.xlu0 %v2568, 64
      %v3534 = vpop.permute.xlu0 %3533
      %3535 = vrot.lane.b32.xlu0 %v2569, 64
      %v3536 = vpop.permute.xlu0 %3535
      %3537 = vrot.lane.b32.xlu0 %v2570, 64
      %v3538 = vpop.permute.xlu0 %3537
      %3539 = vrot.lane.b32.xlu0 %v2571, 64
      %v3540 = vpop.permute.xlu0 %3539
      %3541 = vrot.lane.b32.xlu0 %v2572, 64
      %v3542 = vpop.permute.xlu0 %3541
      %3543 = vrot.lane.b32.xlu0 %v2573, 64
      %v3544 = vpop.permute.xlu0 %3543
      %3545 = vrot.lane.b32.xlu0 %v2574, 64
      %v3546 = vpop.permute.xlu0 %3545
      %3547 = vrot.lane.b32.xlu0 %v2575, 64
      %v3548 = vpop.permute.xlu0 %3547
      %3549 = vrot.lane.b32.xlu0 %v2576, 64
      %v3550 = vpop.permute.xlu0 %3549
      %3551 = vrot.lane.b32.xlu0 %v2577, 64
      %v3552 = vpop.permute.xlu0 %3551
      %3553 = vrot.lane.b32.xlu0 %v2578, 64
      %v3554 = vpop.permute.xlu0 %3553
      %3555 = vrot.lane.b32.xlu0 %v2579, 64
      %v3556 = vpop.permute.xlu0 %3555
      %3557 = vrot.lane.b32.xlu0 %v2580, 64
      %v3558 = vpop.permute.xlu0 %3557
      %3559 = vrot.lane.b32.xlu0 %v2581, 64
      %v3560 = vpop.permute.xlu0 %3559
      %3561 = vrot.lane.b32.xlu0 %v2582, 64
      %v3562 = vpop.permute.xlu0 %3561
      %3563 = vrot.lane.b32.xlu0 %v2583, 64
      %v3564 = vpop.permute.xlu0 %3563
      %3565 = vrot.lane.b32.xlu0 %v2584, 64
      %v3566 = vpop.permute.xlu0 %3565
      %3567 = vrot.lane.b32.xlu0 %v2585, 64
      %v3568 = vpop.permute.xlu0 %3567
      %3569 = vrot.lane.b32.xlu0 %v2586, 64
      %v3570 = vpop.permute.xlu0 %3569
      %3571 = vrot.lane.b32.xlu0 %v2587, 64
      %v3572 = vpop.permute.xlu0 %3571
      %3573 = vrot.lane.b32.xlu0 %v2588, 64
      %v3574 = vpop.permute.xlu0 %3573
      %3575 = vrot.lane.b32.xlu0 %v2589, 64
      %v3576 = vpop.permute.xlu0 %3575
      %3577 = vrot.lane.b32.xlu0 %v2590, 64
      %v3578 = vpop.permute.xlu0 %3577
      %3579 = vrot.lane.b32.xlu0 %v2591, 64
      %v3580 = vpop.permute.xlu0 %3579
      %3581 = vrot.lane.b32.xlu0 %v2592, 64
      %v3582 = vpop.permute.xlu0 %3581
      %3583 = vrot.lane.b32.xlu0 %v2593, 64
      %v3584 = vpop.permute.xlu0 %3583
      %3585 = vrot.lane.b32.xlu0 %v2594, 64
      %v3586 = vpop.permute.xlu0 %3585
      %v3619 = vsel %vm1627, %v2306, %v2628
      %v3620 = vsel %vm1627, %v2307, %v2630
      %v3621 = vsel %vm1627, %v2308, %v2632
      %v3622 = vsel %vm1627, %v2309, %v2634
      %v3623 = vsel %vm1627, %v2310, %v2636
      %v3624 = vsel %vm1627, %v2311, %v2638
      %v3625 = vsel %vm1627, %v2312, %v2640
      %v3626 = vsel %vm1627, %v2313, %v2642
      %v3627 = vsel %vm1627, %v2314, %v2644
      %v3628 = vsel %vm1627, %v2315, %v2646
      %v3629 = vsel %vm1627, %v2316, %v2648
      %v3630 = vsel %vm1627, %v2317, %v2650
      %v3631 = vsel %vm1627, %v2318, %v2652
      %v3632 = vsel %vm1627, %v2319, %v2654
      %v3633 = vsel %vm1627, %v2320, %v2656
      %v3634 = vsel %vm1627, %v2321, %v2658
      %v3635 = vsel %vm1627, %v2322, %v2660
      %v3636 = vsel %vm1627, %v2323, %v2662
      %v3637 = vsel %vm1627, %v2324, %v2664
      %v3638 = vsel %vm1627, %v2325, %v2666
      %v3639 = vsel %vm1627, %v2326, %v2668
      %v3640 = vsel %vm1627, %v2327, %v2670
      %v3641 = vsel %vm1627, %v2328, %v2672
      %v3642 = vsel %vm1627, %v2329, %v2674
      %v3643 = vsel %vm1627, %v2330, %v2676
      %v3644 = vsel %vm1627, %v2331, %v2678
      %v3645 = vsel %vm1627, %v2332, %v2680
      %v3646 = vsel %vm1627, %v2333, %v2682
      %v3647 = vsel %vm1627, %v2334, %v2684
      %v3648 = vsel %vm1627, %v2335, %v2686
      %v3649 = vsel %vm1627, %v2336, %v2688
      %v3650 = vsel %vm1627, %v2337, %v2690
      %v3651 = vsel %vm1693, %v3619, %v2756
      %v3652 = vsel %vm1693, %v3620, %v2758
      %v3653 = vsel %vm1693, %v3621, %v2760
      %v3654 = vsel %vm1693, %v3622, %v2762
      %v3655 = vsel %vm1693, %v3623, %v2764
      %v3656 = vsel %vm1693, %v3624, %v2766
      %v3657 = vsel %vm1693, %v3625, %v2768
      %v3658 = vsel %vm1693, %v3626, %v2770
      %v3659 = vsel %vm1693, %v3627, %v2772
      %v3660 = vsel %vm1693, %v3628, %v2774
      %v3661 = vsel %vm1693, %v3629, %v2776
      %v3662 = vsel %vm1693, %v3630, %v2778
      %v3663 = vsel %vm1693, %v3631, %v2780
      %v3664 = vsel %vm1693, %v3632, %v2782
      %v3665 = vsel %vm1693, %v3633, %v2784
      %v3666 = vsel %vm1693, %v3634, %v2786
      %v3667 = vsel %vm1693, %v3635, %v2788
      %v3668 = vsel %vm1693, %v3636, %v2790
      %v3669 = vsel %vm1693, %v3637, %v2792
      %v3670 = vsel %vm1693, %v3638, %v2794
      %v3671 = vsel %vm1693, %v3639, %v2796
      %v3672 = vsel %vm1693, %v3640, %v2798
      %v3673 = vsel %vm1693, %v3641, %v2800
      %v3674 = vsel %vm1693, %v3642, %v2802
      %v3675 = vsel %vm1693, %v3643, %v2804
      %v3676 = vsel %vm1693, %v3644, %v2806
      %v3677 = vsel %vm1693, %v3645, %v2808
      %v3678 = vsel %vm1693, %v3646, %v2810
      %v3679 = vsel %vm1693, %v3647, %v2812
      %v3680 = vsel %vm1693, %v3648, %v2814
      %v3681 = vsel %vm1693, %v3649, %v2816
      %v3682 = vsel %vm1693, %v3650, %v2818
      %v3683 = vsel %vm1759, %v3651, %v2884
      %v3684 = vsel %vm1759, %v3652, %v2886
      %v3685 = vsel %vm1759, %v3653, %v2888
      %v3686 = vsel %vm1759, %v3654, %v2890
      %v3687 = vsel %vm1759, %v3655, %v2892
      %v3688 = vsel %vm1759, %v3656, %v2894
      %v3689 = vsel %vm1759, %v3657, %v2896
      %v3690 = vsel %vm1759, %v3658, %v2898
      %v3691 = vsel %vm1759, %v3659, %v2900
      %v3692 = vsel %vm1759, %v3660, %v2902
      %v3693 = vsel %vm1759, %v3661, %v2904
      %v3694 = vsel %vm1759, %v3662, %v2906
      %v3695 = vsel %vm1759, %v3663, %v2908
      %v3696 = vsel %vm1759, %v3664, %v2910
      %v3697 = vsel %vm1759, %v3665, %v2912
      %v3698 = vsel %vm1759, %v3666, %v2914
      %v3699 = vsel %vm1759, %v3667, %v2916
      %v3700 = vsel %vm1759, %v3668, %v2918
      %v3701 = vsel %vm1759, %v3669, %v2920
      %v3702 = vsel %vm1759, %v3670, %v2922
      %v3703 = vsel %vm1759, %v3671, %v2924
      %v3704 = vsel %vm1759, %v3672, %v2926
      %v3705 = vsel %vm1759, %v3673, %v2928
      %v3706 = vsel %vm1759, %v3674, %v2930
      %v3707 = vsel %vm1759, %v3675, %v2932
      %v3708 = vsel %vm1759, %v3676, %v2934
      %v3709 = vsel %vm1759, %v3677, %v2936
      %v3710 = vsel %vm1759, %v3678, %v2938
      %v3711 = vsel %vm1759, %v3679, %v2940
      %v3712 = vsel %vm1759, %v3680, %v2942
      %v3713 = vsel %vm1759, %v3681, %v2944
      %v3714 = vsel %vm1759, %v3682, %v2946
      %v3715 = vsel %vm1825, %v3683, %v3012
      %v3716 = vsel %vm1825, %v3684, %v3014
      %v3717 = vsel %vm1825, %v3685, %v3016
      %v3718 = vsel %vm1825, %v3686, %v3018
      %v3719 = vsel %vm1825, %v3687, %v3020
      %v3720 = vsel %vm1825, %v3688, %v3022
      %v3721 = vsel %vm1825, %v3689, %v3024
      %v3722 = vsel %vm1825, %v3690, %v3026
      %v3723 = vsel %vm1825, %v3691, %v3028
      %v3724 = vsel %vm1825, %v3692, %v3030
      %v3725 = vsel %vm1825, %v3693, %v3032
      %v3726 = vsel %vm1825, %v3694, %v3034
      %v3727 = vsel %vm1825, %v3695, %v3036
      %v3728 = vsel %vm1825, %v3696, %v3038
      %v3729 = vsel %vm1825, %v3697, %v3040
      %v3730 = vsel %vm1825, %v3698, %v3042
      %v3731 = vsel %vm1825, %v3699, %v3044
      %v3732 = vsel %vm1825, %v3700, %v3046
      %v3733 = vsel %vm1825, %v3701, %v3048
      %v3734 = vsel %vm1825, %v3702, %v3050
      %v3735 = vsel %vm1825, %v3703, %v3052
      %v3736 = vsel %vm1825, %v3704, %v3054
      %v3737 = vsel %vm1825, %v3705, %v3056
      %v3738 = vsel %vm1825, %v3706, %v3058
      %v3739 = vsel %vm1825, %v3707, %v3060
      %v3740 = vsel %vm1825, %v3708, %v3062
      %v3741 = vsel %vm1825, %v3709, %v3064
      %v3742 = vsel %vm1825, %v3710, %v3066
      %v3743 = vsel %vm1825, %v3711, %v3068
      %v3744 = vsel %vm1825, %v3712, %v3070
      %v3745 = vsel %vm1825, %v3713, %v3072
      %v3746 = vsel %vm1825, %v3714, %v3074
      %vm3747 = vcmask 326656
      %v3748 = vsel %vm3747, %v3715, %v3140
      %v3749 = vsel %vm3747, %v3716, %v3142
      %v3750 = vsel %vm3747, %v3717, %v3144
      %v3751 = vsel %vm3747, %v3718, %v3146
      %v3752 = vsel %vm3747, %v3719, %v3148
      %v3753 = vsel %vm3747, %v3720, %v3150
      %v3754 = vsel %vm3747, %v3721, %v3152
      %v3755 = vsel %vm3747, %v3722, %v3154
      %v3756 = vsel %vm3747, %v3723, %v3156
      %v3757 = vsel %vm3747, %v3724, %v3158
      %v3758 = vsel %vm3747, %v3725, %v3160
      %v3759 = vsel %vm3747, %v3726, %v3162
      %v3760 = vsel %vm3747, %v3727, %v3164
      %v3761 = vsel %vm3747, %v3728, %v3166
      %v3762 = vsel %vm3747, %v3729, %v3168
      %v3763 = vsel %vm3747, %v3730, %v3170
      %v3764 = vsel %vm3747, %v3731, %v3172
      %v3765 = vsel %vm3747, %v3732, %v3174
      %v3766 = vsel %vm3747, %v3733, %v3176
      %v3767 = vsel %vm3747, %v3734, %v3178
      %v3768 = vsel %vm3747, %v3735, %v3180
      %v3769 = vsel %vm3747, %v3736, %v3182
      %v3770 = vsel %vm3747, %v3737, %v3184
      %v3771 = vsel %vm3747, %v3738, %v3186
      %v3772 = vsel %vm3747, %v3739, %v3188
      %v3773 = vsel %vm3747, %v3740, %v3190
      %v3774 = vsel %vm3747, %v3741, %v3192
      %v3775 = vsel %vm3747, %v3742, %v3194
      %v3776 = vsel %vm3747, %v3743, %v3196
      %v3777 = vsel %vm3747, %v3744, %v3198
      %v3778 = vsel %vm3747, %v3745, %v3200
      %v3779 = vsel %vm3747, %v3746, %v3202
      %vm3780 = vcmask 392192
      %v3781 = vsel %vm3780, %v3748, %v3268
      %v3782 = vsel %vm3780, %v3749, %v3270
      %v3783 = vsel %vm3780, %v3750, %v3272
      %v3784 = vsel %vm3780, %v3751, %v3274
      %v3785 = vsel %vm3780, %v3752, %v3276
      %v3786 = vsel %vm3780, %v3753, %v3278
      %v3787 = vsel %vm3780, %v3754, %v3280
      %v3788 = vsel %vm3780, %v3755, %v3282
      %v3789 = vsel %vm3780, %v3756, %v3284
      %v3790 = vsel %vm3780, %v3757, %v3286
      %v3791 = vsel %vm3780, %v3758, %v3288
      %v3792 = vsel %vm3780, %v3759, %v3290
      %v3793 = vsel %vm3780, %v3760, %v3292
      %v3794 = vsel %vm3780, %v3761, %v3294
      %v3795 = vsel %vm3780, %v3762, %v3296
      %v3796 = vsel %vm3780, %v3763, %v3298
      %v3797 = vsel %vm3780, %v3764, %v3300
      %v3798 = vsel %vm3780, %v3765, %v3302
      %v3799 = vsel %vm3780, %v3766, %v3304
      %v3800 = vsel %vm3780, %v3767, %v3306
      %v3801 = vsel %vm3780, %v3768, %v3308
      %v3802 = vsel %vm3780, %v3769, %v3310
      %v3803 = vsel %vm3780, %v3770, %v3312
      %v3804 = vsel %vm3780, %v3771, %v3314
      %v3805 = vsel %vm3780, %v3772, %v3316
      %v3806 = vsel %vm3780, %v3773, %v3318
      %v3807 = vsel %vm3780, %v3774, %v3320
      %v3808 = vsel %vm3780, %v3775, %v3322
      %v3809 = vsel %vm3780, %v3776, %v3324
      %v3810 = vsel %vm3780, %v3777, %v3326
      %v3811 = vsel %vm3780, %v3778, %v3328
      %v3812 = vsel %vm3780, %v3779, %v3330
      %vm3813 = vcmask 457728
      %v3814 = vsel %vm3813, %v3781, %v3396
      %v3815 = vsel %vm3813, %v3782, %v3398
      %v3816 = vsel %vm3813, %v3783, %v3400
      %v3817 = vsel %vm3813, %v3784, %v3402
      %v3818 = vsel %vm3813, %v3785, %v3404
      %v3819 = vsel %vm3813, %v3786, %v3406
      %v3820 = vsel %vm3813, %v3787, %v3408
      %v3821 = vsel %vm3813, %v3788, %v3410
      %v3822 = vsel %vm3813, %v3789, %v3412
      %v3823 = vsel %vm3813, %v3790, %v3414
      %v3824 = vsel %vm3813, %v3791, %v3416
      %v3825 = vsel %vm3813, %v3792, %v3418
      %v3826 = vsel %vm3813, %v3793, %v3420
      %v3827 = vsel %vm3813, %v3794, %v3422
      %v3828 = vsel %vm3813, %v3795, %v3424
      %v3829 = vsel %vm3813, %v3796, %v3426
      %v3830 = vsel %vm3813, %v3797, %v3428
      %v3831 = vsel %vm3813, %v3798, %v3430
      %v3832 = vsel %vm3813, %v3799, %v3432
      %v3833 = vsel %vm3813, %v3800, %v3434
      %v3834 = vsel %vm3813, %v3801, %v3436
      %v3835 = vsel %vm3813, %v3802, %v3438
      %v3836 = vsel %vm3813, %v3803, %v3440
      %v3837 = vsel %vm3813, %v3804, %v3442
      %v3838 = vsel %vm3813, %v3805, %v3444
      %v3839 = vsel %vm3813, %v3806, %v3446
      %v3840 = vsel %vm3813, %v3807, %v3448
      %v3841 = vsel %vm3813, %v3808, %v3450
      %v3842 = vsel %vm3813, %v3809, %v3452
      %v3843 = vsel %vm3813, %v3810, %v3454
      %v3844 = vsel %vm3813, %v3811, %v3456
      %v3845 = vsel %vm3813, %v3812, %v3458
      %vm3846 = vcmask 523264
      %v3847 = vsel %vm3846, %v3814, %v3524
      %v3848 = vsel %vm3846, %v3815, %v3526
      %v3849 = vsel %vm3846, %v3816, %v3528
      %v3850 = vsel %vm3846, %v3817, %v3530
      %v3851 = vsel %vm3846, %v3818, %v3532
      %v3852 = vsel %vm3846, %v3819, %v3534
      %v3853 = vsel %vm3846, %v3820, %v3536
      %v3854 = vsel %vm3846, %v3821, %v3538
      %v3855 = vsel %vm3846, %v3822, %v3540
      %v3856 = vsel %vm3846, %v3823, %v3542
      %v3857 = vsel %vm3846, %v3824, %v3544
      %v3858 = vsel %vm3846, %v3825, %v3546
      %v3859 = vsel %vm3846, %v3826, %v3548
      %v3860 = vsel %vm3846, %v3827, %v3550
      %v3861 = vsel %vm3846, %v3828, %v3552
      %v3862 = vsel %vm3846, %v3829, %v3554
      %v3863 = vsel %vm3846, %v3830, %v3556
      %v3864 = vsel %vm3846, %v3831, %v3558
      %v3865 = vsel %vm3846, %v3832, %v3560
      %v3866 = vsel %vm3846, %v3833, %v3562
      %v3867 = vsel %vm3846, %v3834, %v3564
      %v3868 = vsel %vm3846, %v3835, %v3566
      %v3869 = vsel %vm3846, %v3836, %v3568
      %v3870 = vsel %vm3846, %v3837, %v3570
      %v3871 = vsel %vm3846, %v3838, %v3572
      %v3872 = vsel %vm3846, %v3839, %v3574
      %v3873 = vsel %vm3846, %v3840, %v3576
      %v3874 = vsel %vm3846, %v3841, %v3578
      %v3875 = vsel %vm3846, %v3842, %v3580
      %v3876 = vsel %vm3846, %v3843, %v3582
      %v3877 = vsel %vm3846, %v3844, %v3584
      %v3878 = vsel %vm3846, %v3845, %v3586
      %v3879 = vpack.c.bf16 %v3848, %v3847
      %v3880 = vpack.c.bf16 %v3850, %v3849
      %v3881 = vpack.c.bf16 %v3852, %v3851
      %v3882 = vpack.c.bf16 %v3854, %v3853
      %v3883 = vpack.c.bf16 %v3856, %v3855
      %v3884 = vpack.c.bf16 %v3858, %v3857
      %v3885 = vpack.c.bf16 %v3860, %v3859
      %v3886 = vpack.c.bf16 %v3862, %v3861
      %v3887 = vpack.c.bf16 %v3864, %v3863
      %v3888 = vpack.c.bf16 %v3866, %v3865
      %v3889 = vpack.c.bf16 %v3868, %v3867
      %v3890 = vpack.c.bf16 %v3870, %v3869
      %v3891 = vpack.c.bf16 %v3872, %v3871
      %v3892 = vpack.c.bf16 %v3874, %v3873
      %v3893 = vpack.c.bf16 %v3876, %v3875
      %v3894 = vpack.c.bf16 %v3878, %v3877
      %v3895 = vld [vmem:[%s4] sm:$0xf]
      %v3896 = vld [vmem:[%s4 + $0x4] sm:$0xf]
      %v3897 = vld [vmem:[%s4 + $0x8] sm:$0xf]
      %v3898 = vld [vmem:[%s4 + $0xc] sm:$0xf]
      %v3899 = vld [vmem:[%s4 + $0x10] sm:$0xf]
      %v3900 = vld [vmem:[%s4 + $0x14] sm:$0xf]
      %v3901 = vld [vmem:[%s4 + $0x18] sm:$0xf]
      %v3902 = vld [vmem:[%s4 + $0x1c] sm:$0xf]
      %v3903 = vld [vmem:[%s4 + $0x20] sm:$0xf]
      %v3913 = vunpack.c.l.b16 %v3895
      %v3914 = vunpack.c.l.b16 %v3896
      %v3915 = vunpack.c.l.b16 %v3897
      %v3916 = vunpack.c.l.b16 %v3898
      %v3917 = vunpack.c.l.b16 %v3899
      %v3918 = vunpack.c.l.b16 %v3900
      %v3919 = vunpack.c.l.b16 %v3901
      %v3920 = vunpack.c.l.b16 %v3902
      %v3921 = vunpack.c.l.b16 %v3903
      %v3922 = vpack.c.b16 %v3914, %v3913
      %v3923 = vpack.c.b16 %v3916, %v3915
      %v3924 = vpack.c.b16 %v3918, %v3917
      %v3925 = vpack.c.b16 %v3920, %v3919
      %v3926 = vpack.c.b16 %v3921, %v3921
      %vm3931 = vcmask 588800
      %v3933 = vsel %vm3931, %v3879, 0
      %v3936 = vsel %vm3931, %v3880, 0
      %v3939 = vsel %vm3931, %v3881, 0
      %v3942 = vsel %vm3931, %v3882, 0
      %v3945 = vsel %vm3931, %v3883, 0
      %v3948 = vsel %vm3931, %v3884, 0
      %v3951 = vsel %vm3931, %v3885, 0
      %v3954 = vsel %vm3931, %v3886, 0
      %v3957 = vsel %vm3931, %v3887, 0
      %v3960 = vsel %vm3931, %v3888, 0
      %v3963 = vsel %vm3931, %v3889, 0
      %v3966 = vsel %vm3931, %v3890, 0
      %v3969 = vsel %vm3931, %v3891, 0
      %v3972 = vsel %vm3931, %v3892, 0
      %v3975 = vsel %vm3931, %v3893, 0
      %v3978 = vsel %vm3931, %v3894, 0
      %vm3980 = vcmask 1043456
      %v3982 = vsel %vm3980, %v3926, 0
      %3984 = vmatprep.subr.bf16.mxu0 0
      %3985 = vmatpush1.bf16.msra.mxu0 %v3922
      %3986 = vmatprep.subr.bf16.mxu0 0
      %3987 = vmatpush1.bf16.msra.mxu0 %v3923
      %3988 = vmatprep.subr.bf16.mxu0 0
      %3989 = vmatpush1.bf16.msra.mxu0 %v3924
      %3990 = vmatprep.subr.bf16.mxu0 0
      %3991 = vmatpush1.bf16.msra.mxu0 %v3925
      %3992 = vmatprep.subr.bf16.mxu0 0
      %3993 = vmatpush1.bf16.msra.mxu0 %v3982
      %3994 = vmatprep.subr.bf16.mxu0 0
      %3995 = vmatpush1.bf16.msra.mxu0 0
      %3996 = vmatprep.subr.bf16.mxu0 0
      %3997 = vmatpush1.bf16.msra.mxu0 0
      %3998 = vmatprep.subr.bf16.mxu0 0
      %3999 = vmatpush1.bf16.msra.mxu0 0
      %4000 = vmatprep.subr.bf16.mxu0 0
      %4001 = vmatpush1.bf16.msra.mxu0 0
      %4002 = vmatprep.subr.bf16.mxu0 0
      %4003 = vmatpush1.bf16.msra.mxu0 0
      %4004 = vmatprep.subr.bf16.mxu0 0
      %4005 = vmatpush1.bf16.msra.mxu0 0
      %4006 = vmatprep.subr.bf16.mxu0 0
      %4007 = vmatpush1.bf16.msra.mxu0 0
      %4008 = vmatprep.subr.bf16.mxu0 0
      %4009 = vmatpush1.bf16.msra.mxu0 0
      %4010 = vmatprep.subr.bf16.mxu0 0
      %4011 = vmatpush1.bf16.msra.mxu0 0
      %4012 = vmatprep.subr.bf16.mxu0 0
      %4013 = vmatpush1.bf16.msra.mxu0 0
      %4014 = vmatprep.subr.bf16.mxu0 0
      %4015 = vmatpush1.bf16.msra.mxu0 0
      %4016 = vmatprep.mubr.bf16.mxu0 0
      %4017 = vmatmul.mubr.bf16.gmra.mrb[0].mxu0 %v3933
      %v4018 = vpop.f32.mrb[0].mxu0
      %v4019 = vadd.f32 0.0, %v4018
      %v4020 = vpop.f32.mrb[0].mxu0
      %v4021 = vpop.f32.mrb[0].mxu0
      %v4022 = vadd.f32 0.0, %v4021
      %v4023 = vpop.f32.mrb[0].mxu0
      %4024 = vmatprep.mubr.bf16.mxu0 0
      %4025 = vmatmul.mubr.bf16.gmra.mrb[0].mxu0 %v3936
      %v4026 = vpop.f32.mrb[0].mxu0
      %v4027 = vadd.f32 0.0, %v4026
      %v4028 = vpop.f32.mrb[0].mxu0
      %v4029 = vpop.f32.mrb[0].mxu0
      %v4030 = vadd.f32 0.0, %v4029
      %v4031 = vpop.f32.mrb[0].mxu0
      %4032 = vmatprep.mubr.bf16.mxu0 0
      %4033 = vmatmul.mubr.bf16.gmra.mrb[0].mxu0 %v3939
      %v4034 = vpop.f32.mrb[0].mxu0
      %v4035 = vadd.f32 0.0, %v4034
      %v4036 = vpop.f32.mrb[0].mxu0
      %v4037 = vpop.f32.mrb[0].mxu0
      %v4038 = vadd.f32 0.0, %v4037
      %v4039 = vpop.f32.mrb[0].mxu0
      %4040 = vmatprep.mubr.bf16.mxu0 0
      %4041 = vmatmul.mubr.bf16.gmra.mrb[0].mxu0 %v3942
      %v4042 = vpop.f32.mrb[0].mxu0
      %v4043 = vadd.f32 0.0, %v4042
      %v4044 = vpop.f32.mrb[0].mxu0
      %v4045 = vpop.f32.mrb[0].mxu0
      %v4046 = vadd.f32 0.0, %v4045
      %v4047 = vpop.f32.mrb[0].mxu0
      %4048 = vmatprep.mubr.bf16.mxu0 0
      %4049 = vmatmul.mubr.bf16.gmra.mrb[0].mxu0 %v3945
      %v4050 = vpop.f32.mrb[0].mxu0
      %v4051 = vadd.f32 0.0, %v4050
      %v4052 = vpop.f32.mrb[0].mxu0
      %v4053 = vpop.f32.mrb[0].mxu0
      %v4054 = vadd.f32 0.0, %v4053
      %v4055 = vpop.f32.mrb[0].mxu0
      %4056 = vmatprep.mubr.bf16.mxu0 0
      %4057 = vmatmul.mubr.bf16.gmra.mrb[0].mxu0 %v3948
      %v4058 = vpop.f32.mrb[0].mxu0
      %v4059 = vadd.f32 0.0, %v4058
      %v4060 = vpop.f32.mrb[0].mxu0
      %v4061 = vpop.f32.mrb[0].mxu0
      %v4062 = vadd.f32 0.0, %v4061
      %v4063 = vpop.f32.mrb[0].mxu0
      %4064 = vmatprep.mubr.bf16.mxu0 0
      %4065 = vmatmul.mubr.bf16.gmra.mrb[0].mxu0 %v3951
      %v4066 = vpop.f32.mrb[0].mxu0
      %v4067 = vadd.f32 0.0, %v4066
      %v4068 = vpop.f32.mrb[0].mxu0
      %v4069 = vpop.f32.mrb[0].mxu0
      %v4070 = vadd.f32 0.0, %v4069
      %v4071 = vpop.f32.mrb[0].mxu0
      %4072 = vmatprep.mubr.bf16.mxu0 0
      %4073 = vmatmul.mubr.bf16.gmra.mrb[0].mxu0 %v3954
      %v4074 = vpop.f32.mrb[0].mxu0
      %v4075 = vadd.f32 0.0, %v4074
      %v4076 = vpop.f32.mrb[0].mxu0
      %v4077 = vpop.f32.mrb[0].mxu0
      %v4078 = vadd.f32 0.0, %v4077
      %v4079 = vpop.f32.mrb[0].mxu0
      %4080 = vmatprep.mubr.bf16.mxu0 0
      %4081 = vmatmul.mubr.bf16.gmra.mrb[0].mxu0 %v3957
      %v4082 = vpop.f32.mrb[0].mxu0
      %v4083 = vadd.f32 0.0, %v4082
      %v4084 = vpop.f32.mrb[0].mxu0
      %v4085 = vpop.f32.mrb[0].mxu0
      %v4086 = vadd.f32 0.0, %v4085
      %v4087 = vpop.f32.mrb[0].mxu0
      %4088 = vmatprep.mubr.bf16.mxu0 0
      %4089 = vmatmul.mubr.bf16.gmra.mrb[0].mxu0 %v3960
      %v4090 = vpop.f32.mrb[0].mxu0
      %v4091 = vadd.f32 0.0, %v4090
      %v4092 = vpop.f32.mrb[0].mxu0
      %v4093 = vpop.f32.mrb[0].mxu0
      %v4094 = vadd.f32 0.0, %v4093
      %v4095 = vpop.f32.mrb[0].mxu0
      %4096 = vmatprep.mubr.bf16.mxu0 0
      %4097 = vmatmul.mubr.bf16.gmra.mrb[0].mxu0 %v3963
      %v4098 = vpop.f32.mrb[0].mxu0
      %v4099 = vadd.f32 0.0, %v4098
      %v4100 = vpop.f32.mrb[0].mxu0
      %v4101 = vpop.f32.mrb[0].mxu0
      %v4102 = vadd.f32 0.0, %v4101
      %v4103 = vpop.f32.mrb[0].mxu0
      %4104 = vmatprep.mubr.bf16.mxu0 0
      %4105 = vmatmul.mubr.bf16.gmra.mrb[0].mxu0 %v3966
      %v4106 = vpop.f32.mrb[0].mxu0
      %v4107 = vadd.f32 0.0, %v4106
      %v4108 = vpop.f32.mrb[0].mxu0
      %v4109 = vpop.f32.mrb[0].mxu0
      %v4110 = vadd.f32 0.0, %v4109
      %v4111 = vpop.f32.mrb[0].mxu0
      %4112 = vmatprep.mubr.bf16.mxu0 0
      %4113 = vmatmul.mubr.bf16.gmra.mrb[0].mxu0 %v3969
      %v4114 = vpop.f32.mrb[0].mxu0
      %v4115 = vadd.f32 0.0, %v4114
      %v4116 = vpop.f32.mrb[0].mxu0
      %v4117 = vpop.f32.mrb[0].mxu0
      %v4118 = vadd.f32 0.0, %v4117
      %v4119 = vpop.f32.mrb[0].mxu0
      %4120 = vmatprep.mubr.bf16.mxu0 0
      %4121 = vmatmul.mubr.bf16.gmra.mrb[0].mxu0 %v3972
      %v4122 = vpop.f32.mrb[0].mxu0
      %v4123 = vadd.f32 0.0, %v4122
      %v4124 = vpop.f32.mrb[0].mxu0
      %v4125 = vpop.f32.mrb[0].mxu0
      %v4126 = vadd.f32 0.0, %v4125
      %v4127 = vpop.f32.mrb[0].mxu0
      %4128 = vmatprep.mubr.bf16.mxu0 0
      %4129 = vmatmul.mubr.bf16.gmra.mrb[0].mxu0 %v3975
      %v4130 = vpop.f32.mrb[0].mxu0
      %v4131 = vadd.f32 0.0, %v4130
      %v4132 = vpop.f32.mrb[0].mxu0
      %v4133 = vpop.f32.mrb[0].mxu0
      %v4134 = vadd.f32 0.0, %v4133
      %v4135 = vpop.f32.mrb[0].mxu0
      %4136 = vmatprep.mubr.bf16.mxu0 0
      %4137 = vmatmul.mubr.bf16.gmra.mrb[0].mxu0 %v3978
      %v4138 = vpop.f32.mrb[0].mxu0
      %v4139 = vadd.f32 0.0, %v4138
      %v4140 = vpop.f32.mrb[0].mxu0
      %v4141 = vpop.f32.mrb[0].mxu0
      %v4142 = vadd.f32 0.0, %v4141
      %v4143 = vpop.f32.mrb[0].mxu0
      %4144 = vdwg.mxu0
      %v4145 = vld [vmem:[%s5] sm:$0x1]
      %v4147 = vlaneseq
      %v4148 = vshrl.u32 %v4147, 7
      %v4149 = vsub.s32 0, %v4148
      %v4150 = vrot.slane %v4145, %v4149
      %v4152 = vmul.f32 %v4019, %v4150
      %v4153 = vmul.f32 %v4022, %v4150
      %v4154 = vmul.f32 %v4027, %v4150
      %v4155 = vmul.f32 %v4030, %v4150
      %v4156 = vmul.f32 %v4035, %v4150
      %v4157 = vmul.f32 %v4038, %v4150
      %v4158 = vmul.f32 %v4043, %v4150
      %v4159 = vmul.f32 %v4046, %v4150
      %v4160 = vmul.f32 %v4051, %v4150
      %v4161 = vmul.f32 %v4054, %v4150
      %v4162 = vmul.f32 %v4059, %v4150
      %v4163 = vmul.f32 %v4062, %v4150
      %v4164 = vmul.f32 %v4067, %v4150
      %v4165 = vmul.f32 %v4070, %v4150
      %v4166 = vmul.f32 %v4075, %v4150
      %v4167 = vmul.f32 %v4078, %v4150
      %v4168 = vmul.f32 %v4083, %v4150
      %v4169 = vmul.f32 %v4086, %v4150
      %v4170 = vmul.f32 %v4091, %v4150
      %v4171 = vmul.f32 %v4094, %v4150
      %v4172 = vmul.f32 %v4099, %v4150
      %v4173 = vmul.f32 %v4102, %v4150
      %v4174 = vmul.f32 %v4107, %v4150
      %v4175 = vmul.f32 %v4110, %v4150
      %v4176 = vmul.f32 %v4115, %v4150
      %v4177 = vmul.f32 %v4118, %v4150
      %v4178 = vmul.f32 %v4123, %v4150
      %v4179 = vmul.f32 %v4126, %v4150
      %v4180 = vmul.f32 %v4131, %v4150
      %v4181 = vmul.f32 %v4134, %v4150
      %v4182 = vmul.f32 %v4139, %v4150
      %v4183 = vmul.f32 %v4142, %v4150
      %v4184 = vld [vmem:[%s6] sm:$0x1]
      %v4186 = vlaneseq
      %v4187 = vshrl.u32 %v4186, 7
      %v4188 = vsub.s32 0, %v4187
      %v4189 = vrot.slane %v4184, %v4188
      %v4191 = vadd.f32 %v4152, %v4189
      %v4192 = vadd.f32 %v4153, %v4189
      %v4193 = vadd.f32 %v4154, %v4189
      %v4194 = vadd.f32 %v4155, %v4189
      %v4195 = vadd.f32 %v4156, %v4189
      %v4196 = vadd.f32 %v4157, %v4189
      %v4197 = vadd.f32 %v4158, %v4189
      %v4198 = vadd.f32 %v4159, %v4189
      %v4199 = vadd.f32 %v4160, %v4189
      %v4200 = vadd.f32 %v4161, %v4189
      %v4201 = vadd.f32 %v4162, %v4189
      %v4202 = vadd.f32 %v4163, %v4189
      %v4203 = vadd.f32 %v4164, %v4189
      %v4204 = vadd.f32 %v4165, %v4189
      %v4205 = vadd.f32 %v4166, %v4189
      %v4206 = vadd.f32 %v4167, %v4189
      %v4207 = vadd.f32 %v4168, %v4189
      %v4208 = vadd.f32 %v4169, %v4189
      %v4209 = vadd.f32 %v4170, %v4189
      %v4210 = vadd.f32 %v4171, %v4189
      %v4211 = vadd.f32 %v4172, %v4189
      %v4212 = vadd.f32 %v4173, %v4189
      %v4213 = vadd.f32 %v4174, %v4189
      %v4214 = vadd.f32 %v4175, %v4189
      %v4215 = vadd.f32 %v4176, %v4189
      %v4216 = vadd.f32 %v4177, %v4189
      %v4217 = vadd.f32 %v4178, %v4189
      %v4218 = vadd.f32 %v4179, %v4189
      %v4219 = vadd.f32 %v4180, %v4189
      %v4220 = vadd.f32 %v4181, %v4189
      %v4221 = vadd.f32 %v4182, %v4189
      %v4222 = vadd.f32 %v4183, %v4189
      %v4223 = vmax.f32 %v4191, 0.0
      %v4224 = vmax.f32 %v4192, 0.0
      %v4225 = vmax.f32 %v4193, 0.0
      %v4226 = vmax.f32 %v4194, 0.0
      %v4227 = vmax.f32 %v4195, 0.0
      %v4228 = vmax.f32 %v4196, 0.0
      %v4229 = vmax.f32 %v4197, 0.0
      %v4230 = vmax.f32 %v4198, 0.0
      %v4231 = vmax.f32 %v4199, 0.0
      %v4232 = vmax.f32 %v4200, 0.0
      %v4233 = vmax.f32 %v4201, 0.0
      %v4234 = vmax.f32 %v4202, 0.0
      %v4235 = vmax.f32 %v4203, 0.0
      %v4236 = vmax.f32 %v4204, 0.0
      %v4237 = vmax.f32 %v4205, 0.0
      %v4238 = vmax.f32 %v4206, 0.0
      %v4239 = vmax.f32 %v4207, 0.0
      %v4240 = vmax.f32 %v4208, 0.0
      %v4241 = vmax.f32 %v4209, 0.0
      %v4242 = vmax.f32 %v4210, 0.0
      %v4243 = vmax.f32 %v4211, 0.0
      %v4244 = vmax.f32 %v4212, 0.0
      %v4245 = vmax.f32 %v4213, 0.0
      %v4246 = vmax.f32 %v4214, 0.0
      %v4247 = vmax.f32 %v4215, 0.0
      %v4248 = vmax.f32 %v4216, 0.0
      %v4249 = vmax.f32 %v4217, 0.0
      %v4250 = vmax.f32 %v4218, 0.0
      %v4251 = vmax.f32 %v4219, 0.0
      %v4252 = vmax.f32 %v4220, 0.0
      %v4253 = vmax.f32 %v4221, 0.0
      %v4254 = vmax.f32 %v4222, 0.0
      %4255 = vst.msk [vmem:[%s278] sm:$0xff] %vm1627, %v4223
      %4256 = vst.msk [vmem:[%s278 + $0x8] sm:$0xff] %vm1627, %v4224
      %4257 = vst.msk [vmem:[%s278 + $0x10] sm:$0xff] %vm1627, %v4225
      %4258 = vst.msk [vmem:[%s278 + $0x18] sm:$0xff] %vm1627, %v4226
      %4259 = vst.msk [vmem:[%s278 + $0x20] sm:$0xff] %vm1627, %v4227
      %4260 = vst.msk [vmem:[%s278 + $0x28] sm:$0xff] %vm1627, %v4228
      %4261 = vst.msk [vmem:[%s278 + $0x30] sm:$0xff] %vm1627, %v4229
      %4262 = vst.msk [vmem:[%s278 + $0x38] sm:$0xff] %vm1627, %v4230
      %4263 = vst.msk [vmem:[%s278 + $0x40] sm:$0xff] %vm1627, %v4231
      %4264 = vst.msk [vmem:[%s278 + $0x48] sm:$0xff] %vm1627, %v4232
      %4265 = vst.msk [vmem:[%s278 + $0x50] sm:$0xff] %vm1627, %v4233
      %4266 = vst.msk [vmem:[%s278 + $0x58] sm:$0xff] %vm1627, %v4234
      %4267 = vst.msk [vmem:[%s278 + $0x60] sm:$0xff] %vm1627, %v4235
      %4268 = vst.msk [vmem:[%s278 + $0x68] sm:$0xff] %vm1627, %v4236
      %4269 = vst.msk [vmem:[%s278 + $0x70] sm:$0xff] %vm1627, %v4237
      %4270 = vst.msk [vmem:[%s278 + $0x78] sm:$0xff] %vm1627, %v4238
      %4271 = vst.msk [vmem:[%s278 + $0x80] sm:$0xff] %vm1627, %v4239
      %4272 = vst.msk [vmem:[%s278 + $0x88] sm:$0xff] %vm1627, %v4240
      %4273 = vst.msk [vmem:[%s278 + $0x90] sm:$0xff] %vm1627, %v4241
      %4274 = vst.msk [vmem:[%s278 + $0x98] sm:$0xff] %vm1627, %v4242
      %4275 = vst.msk [vmem:[%s278 + $0xa0] sm:$0xff] %vm1627, %v4243
      %4276 = vst.msk [vmem:[%s278 + $0xa8] sm:$0xff] %vm1627, %v4244
      %4277 = vst.msk [vmem:[%s278 + $0xb0] sm:$0xff] %vm1627, %v4245
      %4278 = vst.msk [vmem:[%s278 + $0xb8] sm:$0xff] %vm1627, %v4246
      %4279 = vst.msk [vmem:[%s278 + $0xc0] sm:$0xff] %vm1627, %v4247
      %4280 = vst.msk [vmem:[%s278 + $0xc8] sm:$0xff] %vm1627, %v4248
      %4281 = vst.msk [vmem:[%s278 + $0xd0] sm:$0xff] %vm1627, %v4249
      %4282 = vst.msk [vmem:[%s278 + $0xd8] sm:$0xff] %vm1627, %v4250
      %4283 = vst.msk [vmem:[%s278 + $0xe0] sm:$0xff] %vm1627, %v4251
      %4284 = vst.msk [vmem:[%s278 + $0xe8] sm:$0xff] %vm1627, %v4252
      %4285 = vst.msk [vmem:[%s278 + $0xf0] sm:$0xff] %vm1627, %v4253
      %4286 = vst.msk [vmem:[%s278 + $0xf8] sm:$0xff] %vm1627, %v4254
      %p4287 = scmp.lt.s32.totalorder %s18, 1
      %s4288 = scalar_select %p4287, %s18, 1
      %s4289 = smul.addr %s4288, 32
      %s4290 = smul.addr %s4289, 8
      %s4291 = scalar_lea.vmem %s7, %s4290
      // Predicated region
      $region49: #{in_conv_forward.1} parent=47 // pred_check
        %p4292 = pneg %p188
      $region50: #{in_conv_forward.1} parent=47 // pred_check_branch
        %4294 = sbr.rel (%p4292) target = $region52
      $region51: #{in_conv_forward.1} parent=47 // pred_region
        _
      $region52: #{in_conv_forward.1} parent=47 // pred_fallthru
        _
    $region48: #{in_conv_forward.1} parent=5 // pred_fallthru
      _
    %p4295 = scmp.le.s32.totalorder 2, %s13
    // Predicated region
    $region53: #{in_conv_forward.1} parent=5 // pred_check
      %p4296 = pneg %p4295
    $region54: #{in_conv_forward.1} parent=5 // pred_check_branch
      %4298 = sbr.rel (%p4296) target = $region56
    $region55: #{in_conv_forward.1} parent=5 // pred_region
      %s4299 = ssub.s32 %s13, 2
      // Predicated region
      $region57: #{in_conv_forward.1} parent=55 // pred_check
        %p4300 = pneg %p194
      $region58: #{in_conv_forward.1} parent=55 // pred_check_branch
        %4302 = sbr.rel (%p4300) target = $region60
      $region59: #{in_conv_forward.1} parent=55 // pred_region
        %p4303 = scmp.lt.s32.totalorder %s19, 1
        %s4304 = scalar_select %p4303, %s19, 1
        %s4305 = smul.addr %s4304, 32
        %s4306 = smul.addr %s4305, 8
        %s4307 = scalar_lea.vmem %s7, %s4306
      $region60: #{in_conv_forward.1} parent=55 // pred_fallthru
        _
    $region56: #{in_conv_forward.1} parent=5 // pred_fallthru
      _
  $region6: #{in_conv_forward.1} parent=0 // loop_footer
    %s17 = sadd.s32 1, %s13
  $region7: #{in_conv_forward.1} parent=0 // loop_footer_branch
    %12 = sbr.rel target = $region3
  $region8: #{in_conv_forward.1} parent=0 // loop_exit
    _

</llo_original>
